<compile_context>
chip_gen: v7x
topology: tpu7x:2x2x1
jax: 0.10.0
libtpu: 0.0.40
codegen_flags: <defaults>
</compile_context>

<pallas_src>
import jax
import jax.numpy as jnp
from jax import lax
from jax.experimental import pallas as pl
from jax.experimental.pallas import tpu as pltpu


def _sab_kernel(x_ref, w_ref, o_ref):
    # x_ref : (H, W, C)      one batch element (NHWC block, N squeezed), f32
    # w_ref : (3, 12C, C)    fused (3x3 + folded 1x1) weight, bf16, ky-major,
    #                        inner channel order = kx*4C + [max,avg,var,x]*C
    # o_ref : (C, H*W)       lane-dense output block (reshaped to NCHW outside)
    H, W, C = x_ref.shape
    C4, C12 = 4 * C, 12 * C
    f32 = jnp.float32

    x = x_ref[...]

    # ---- reflection pad (pad=2), built entirely in registers: rows, then
    #      columns of the row-padded value (corners double-reflect correctly).
    xr = jnp.concatenate(
        [x[2:3], x[1:2], x, x[H - 2:H - 1], x[H - 3:H - 2]], axis=0)          # (H+4, W, C)
    xp = jnp.concatenate(
        [xr[:, 2:3], xr[:, 1:2], xr, xr[:, W - 2:W - 1], xr[:, W - 3:W - 2]],
        axis=1)                                                               # (H+4, W+4, C)

    # ---- separable 5x5 max / avg pooling (stride 1): W pass, then H pass ----
    rmax = xp[:, 0:W]
    rsum = rmax
    for dx in range(1, 5):
        s = xp[:, dx:dx + W]
        rmax = jnp.maximum(rmax, s)
        rsum = rsum + s
    x_max = rmax[0:H]
    x_sum = rsum[0:H]
    for dy in range(1, 5):
        x_max = jnp.maximum(x_max, rmax[dy:dy + H])
        x_sum = x_sum + rsum[dy:dy + H]
    x_avg = x_sum * (1.0 / 25.0)
    x_var = jnp.sqrt((x - x_avg) ** 2 + 1e-7)

    # ---- build the conv operand slab ----------------------------------------
    # y = cat([max, avg, var, x], C); zero-pad W by 1 (conv padding), take the
    # three kx shifts and stack them on the channel axis, then zero-pad H by 1.
    y = jnp.concatenate([x_max, x_avg, x_var, x], axis=-1)                    # (H, W, 4C)
    zw = jnp.zeros((H, 1, C4), f32)
    yw = jnp.concatenate([zw, y, zw], axis=1)                                 # (H, W+2, 4C)
    s3 = jnp.concatenate([yw[:, 0:W], yw[:, 1:W + 1], yw[:, 2:W + 2]],
                         axis=-1)                                             # (H, W, 12C)
    zh = jnp.zeros((1, W, C12), f32)
    sp = jnp.concatenate([zh, s3, zh], axis=0).astype(jnp.bfloat16)           # (H+2, W, 12C)

    # ---- fused 3x3 (+ folded 1x1) conv as 3 ky-tap contractions --------------
    # Per ky: (H*W, 12C)bf16 @ (12C, C)bf16 -> f32.  The ky slice is a
    # leading-dim slice and the reshape only merges leading dims (lane dim
    # unchanged), so the MXU operand is contiguous (no VMEM copies).
    acc = jnp.zeros((H * W, C), f32)
    for ky in range(3):
        tap = sp[ky:ky + H].reshape(H * W, C12)
        acc = acc + jnp.dot(tap, w_ref[ky], preferred_element_type=f32)

    # ---- sigmoid gate, apply to x, emit lane-dense (C, H*W) -----------------
    gated = x.reshape(H * W, C) * jax.nn.sigmoid(acc)                         # (H*W, C)
    o_ref[...] = jnp.transpose(gated).astype(o_ref.dtype)                     # (C, H*W)


def spatial_attention_block(x_nchw, w3_oihw, w1_oihw):
    """x: (N, C, H, W) f32; w3: (C, 4C, 3, 3); w1: (C, C, 1, 1). Returns NCHW."""
    N, C, H, W = x_nchw.shape
    assert H >= 4 and W >= 4, "reflection pad of 2 requires H, W >= 4"

    # Fold the bias-free 1x1 conv into the 3x3 conv (exact: both linear):
    #   wf[ky, kx, i, o] = sum_m w1[o, m] * w3[m, i, ky, kx]
    # then flatten (kx, i) -> kx*4C + i to match the kernel's slab ordering.
    w1m = w1_oihw[:, :, 0, 0].astype(jnp.float32)                  # (C_out, C_mid)
    wf = jnp.einsum("om,miyx->yxio", w1m, w3_oihw.astype(jnp.float32))
    wb = wf.reshape(3, 12 * C, C).astype(jnp.bfloat16)             # (3, 12C, C)

    # NHWC input for the staging/pooling (C on lanes inside the kernel).
    # TODO(synk): keep the surrounding model NHWC end-to-end so this input-side
    # HBM transpose also disappears (the output side is already transpose-free).
    x = jnp.transpose(x_nchw, (0, 2, 3, 1)).astype(jnp.float32)

    out_flat = pl.pallas_call(
        _sab_kernel,
        out_shape=jax.ShapeDtypeStruct((N, C, H * W), jnp.float32),
        grid=(N,),
        in_specs=[
            pl.BlockSpec((None, H, W, C), lambda n: (n, 0, 0, 0)),
            pl.BlockSpec((3, 12 * C, C), lambda n: (0, 0, 0)),
        ],
        out_specs=pl.BlockSpec((None, C, H * W), lambda n: (n, 0, 0)),
        # Batch elements are independent -> shard across v7x's 2 TensorCores;
        # single-core v5e/v6e simply pipeline the batch steps.
        compiler_params=pltpu.CompilerParams(
            dimension_semantics=("parallel",)),
        # TODO(synk): at production sizes add an H-tile grid axis with a 3-row
        # halo (manual DMA), size the tile to the per-generation VMEM budget,
        # and raise vmem_limit_bytes on v5e/v6e for ~2x larger tiles.
    )(x, wb)

    # (N, C, H*W) -> (N, C, H, W): contiguous, metadata-only reshape (no HBM
    # transpose on the output path).
    return out_flat.reshape(N, C, H, W)


def reference_forward(x_nchw, w3_oihw, w1_oihw):
    """Pure-JAX (XLA) reference mirroring the PyTorch module, NCHW."""
    hi = lax.Precision.HIGHEST
    xp = jnp.pad(x_nchw, ((0, 0), (0, 0), (2, 2), (2, 2)), mode="reflect")
    x_max = lax.reduce_window(xp, -jnp.inf, lax.max, (1, 1, 5, 5), (1, 1, 1, 1), "VALID")
    x_avg = lax.reduce_window(xp, 0.0, lax.add, (1, 1, 5, 5), (1, 1, 1, 1), "VALID") / 25.0
    x_var = jnp.sqrt((x_nchw - x_avg) ** 2 + 1e-7)
    y = jnp.concatenate([x_max, x_avg, x_var, x_nchw], axis=1)
    z1 = lax.conv_general_dilated(y, w3_oihw, (1, 1), ((1, 1), (1, 1)),
                                  dimension_numbers=("NCHW", "OIHW", "NCHW"),
                                  precision=hi)
    z2 = lax.conv_general_dilated(z1, w1_oihw, (1, 1), "VALID",
                                  dimension_numbers=("NCHW", "OIHW", "NCHW"),
                                  precision=hi)
    return x_nchw * jax.nn.sigmoid(z2)


if __name__ == "__main__":
    N, C, H, W = 2, 4, 16, 16
    key = jax.random.PRNGKey(0)
    kx_, k3, k1 = jax.random.split(key, 3)
    x = jax.random.normal(kx_, (N, C, H, W), dtype=jnp.float32)
    # deterministic synthetic weights with the module's shapes (bias-free convs)
    w3 = jax.random.normal(k3, (C, 4 * C, 3, 3), dtype=jnp.float32) * 0.1
    w1 = jax.random.normal(k1, (C, C, 1, 1), dtype=jnp.float32) * 0.1

    out = spatial_attention_block(x, w3, w1)
    out = jax.block_until_ready(out)

    ref = reference_forward(x, w3, w1)
    err = float(jnp.max(jnp.abs(out - ref)))
    assert out.shape == (N, C, H, W), out.shape
    # Tolerance covers the bf16 MXU operands (f32 accumulation) vs. the
    # HIGHEST-precision XLA reference; indexing or weight-ordering bugs would
    # produce errors orders of magnitude larger.
    assert err < 5e-2, f"max abs error vs reference: {err}"
    print("KERNEL_OK")
</pallas_src>

<mosaic_0001>
module attributes {stable_mosaic.version = 11 : i64} {
  func.func @_sab_kernel(%arg0: i32, %arg1: memref<1x16x16x4xf32, #tpu.memory_space<vmem>>, %arg2: memref<3x48x4xbf16, #tpu.memory_space<vmem>>, %arg3: memref<1x4x256xf32, #tpu.memory_space<vmem>>) attributes {dimension_semantics = [#tpu.dimension_semantics<parallel>], iteration_bounds = array<i64: 2>, scalar_prefetch = 0 : i64, scratch_operands = 0 : i64, tpu.core_type = #tpu.core_type<tc>, window_params = [{transform_indices = @transform_0, window_bounds = array<i64: 1, 16, 16, 4>}, {pipeline_mode = #tpu.pipeline_mode<synchronous>, transform_indices = @transform_1, window_bounds = array<i64: 3, 48, 4>}, {transform_indices = @transform_2, window_bounds = array<i64: 1, 4, 256>}]} {
    %c0 = arith.constant 0 : index
    %c0_0 = arith.constant 0 : index
    %c0_1 = arith.constant 0 : index
    %c0_2 = arith.constant 0 : index
    %0 = vector.load %arg1[%c0, %c0_0, %c0_1, %c0_2] : memref<1x16x16x4xf32, #tpu.memory_space<vmem>>, vector<1x16x16x4xf32>
    %1 = vector.shape_cast %0 : vector<1x16x16x4xf32> to vector<16x16x4xf32>
    %2 = vector.extract_strided_slice %1 {offsets = [2, 0, 0], sizes = [1, 16, 4], strides = [1, 1, 1]} : vector<16x16x4xf32> to vector<1x16x4xf32>
    %3 = vector.extract_strided_slice %1 {offsets = [1, 0, 0], sizes = [1, 16, 4], strides = [1, 1, 1]} : vector<16x16x4xf32> to vector<1x16x4xf32>
    %4 = vector.extract_strided_slice %1 {offsets = [14, 0, 0], sizes = [1, 16, 4], strides = [1, 1, 1]} : vector<16x16x4xf32> to vector<1x16x4xf32>
    %5 = vector.extract_strided_slice %1 {offsets = [13, 0, 0], sizes = [1, 16, 4], strides = [1, 1, 1]} : vector<16x16x4xf32> to vector<1x16x4xf32>
    %6 = tpu.concatenate %2, %3, %1, %4, %5 in 0 : vector<1x16x4xf32>, vector<1x16x4xf32>, vector<16x16x4xf32>, vector<1x16x4xf32>, vector<1x16x4xf32> -> vector<20x16x4xf32>
    %7 = vector.extract_strided_slice %6 {offsets = [0, 2, 0], sizes = [20, 1, 4], strides = [1, 1, 1]} : vector<20x16x4xf32> to vector<20x1x4xf32>
    %8 = vector.extract_strided_slice %6 {offsets = [0, 1, 0], sizes = [20, 1, 4], strides = [1, 1, 1]} : vector<20x16x4xf32> to vector<20x1x4xf32>
    %9 = vector.extract_strided_slice %6 {offsets = [0, 14, 0], sizes = [20, 1, 4], strides = [1, 1, 1]} : vector<20x16x4xf32> to vector<20x1x4xf32>
    %10 = vector.extract_strided_slice %6 {offsets = [0, 13, 0], sizes = [20, 1, 4], strides = [1, 1, 1]} : vector<20x16x4xf32> to vector<20x1x4xf32>
    %11 = tpu.concatenate %7, %8, %6, %9, %10 in 1 : vector<20x1x4xf32>, vector<20x1x4xf32>, vector<20x16x4xf32>, vector<20x1x4xf32>, vector<20x1x4xf32> -> vector<20x20x4xf32>
    %12 = vector.extract_strided_slice %11 {offsets = [0, 0, 0], sizes = [20, 16, 4], strides = [1, 1, 1]} : vector<20x20x4xf32> to vector<20x16x4xf32>
    %13 = vector.extract_strided_slice %11 {offsets = [0, 1, 0], sizes = [20, 16, 4], strides = [1, 1, 1]} : vector<20x20x4xf32> to vector<20x16x4xf32>
    %14 = arith.maximumf %12, %13 : vector<20x16x4xf32>
    %15 = arith.addf %12, %13 : vector<20x16x4xf32>
    %16 = vector.extract_strided_slice %11 {offsets = [0, 2, 0], sizes = [20, 16, 4], strides = [1, 1, 1]} : vector<20x20x4xf32> to vector<20x16x4xf32>
    %17 = arith.maximumf %14, %16 : vector<20x16x4xf32>
    %18 = arith.addf %15, %16 : vector<20x16x4xf32>
    %19 = vector.extract_strided_slice %11 {offsets = [0, 3, 0], sizes = [20, 16, 4], strides = [1, 1, 1]} : vector<20x20x4xf32> to vector<20x16x4xf32>
    %20 = arith.maximumf %17, %19 : vector<20x16x4xf32>
    %21 = arith.addf %18, %19 : vector<20x16x4xf32>
    %22 = vector.extract_strided_slice %11 {offsets = [0, 4, 0], sizes = [20, 16, 4], strides = [1, 1, 1]} : vector<20x20x4xf32> to vector<20x16x4xf32>
    %23 = arith.maximumf %20, %22 : vector<20x16x4xf32>
    %24 = arith.addf %21, %22 : vector<20x16x4xf32>
    %25 = vector.extract_strided_slice %23 {offsets = [0, 0, 0], sizes = [16, 16, 4], strides = [1, 1, 1]} : vector<20x16x4xf32> to vector<16x16x4xf32>
    %26 = vector.extract_strided_slice %24 {offsets = [0, 0, 0], sizes = [16, 16, 4], strides = [1, 1, 1]} : vector<20x16x4xf32> to vector<16x16x4xf32>
    %27 = vector.extract_strided_slice %23 {offsets = [1, 0, 0], sizes = [16, 16, 4], strides = [1, 1, 1]} : vector<20x16x4xf32> to vector<16x16x4xf32>
    %28 = arith.maximumf %25, %27 : vector<16x16x4xf32>
    %29 = vector.extract_strided_slice %24 {offsets = [1, 0, 0], sizes = [16, 16, 4], strides = [1, 1, 1]} : vector<20x16x4xf32> to vector<16x16x4xf32>
    %30 = arith.addf %26, %29 : vector<16x16x4xf32>
    %31 = vector.extract_strided_slice %23 {offsets = [2, 0, 0], sizes = [16, 16, 4], strides = [1, 1, 1]} : vector<20x16x4xf32> to vector<16x16x4xf32>
    %32 = arith.maximumf %28, %31 : vector<16x16x4xf32>
    %33 = vector.extract_strided_slice %24 {offsets = [2, 0, 0], sizes = [16, 16, 4], strides = [1, 1, 1]} : vector<20x16x4xf32> to vector<16x16x4xf32>
    %34 = arith.addf %30, %33 : vector<16x16x4xf32>
    %35 = vector.extract_strided_slice %23 {offsets = [3, 0, 0], sizes = [16, 16, 4], strides = [1, 1, 1]} : vector<20x16x4xf32> to vector<16x16x4xf32>
    %36 = arith.maximumf %32, %35 : vector<16x16x4xf32>
    %37 = vector.extract_strided_slice %24 {offsets = [3, 0, 0], sizes = [16, 16, 4], strides = [1, 1, 1]} : vector<20x16x4xf32> to vector<16x16x4xf32>
    %38 = arith.addf %34, %37 : vector<16x16x4xf32>
    %39 = vector.extract_strided_slice %23 {offsets = [4, 0, 0], sizes = [16, 16, 4], strides = [1, 1, 1]} : vector<20x16x4xf32> to vector<16x16x4xf32>
    %40 = arith.maximumf %36, %39 : vector<16x16x4xf32>
    %41 = vector.extract_strided_slice %24 {offsets = [4, 0, 0], sizes = [16, 16, 4], strides = [1, 1, 1]} : vector<20x16x4xf32> to vector<16x16x4xf32>
    %42 = arith.addf %38, %41 : vector<16x16x4xf32>
    %cst = arith.constant 4.000000e-02 : f32
    %43 = vector.broadcast %cst : f32 to vector<16x16x4xf32>
    %44 = arith.mulf %42, %43 : vector<16x16x4xf32>
    %45 = arith.subf %1, %44 : vector<16x16x4xf32>
    %46 = arith.mulf %45, %45 : vector<16x16x4xf32>
    %cst_3 = arith.constant 1.000000e-07 : f32
    %47 = vector.broadcast %cst_3 : f32 to vector<16x16x4xf32>
    %48 = arith.addf %46, %47 : vector<16x16x4xf32>
    %49 = math.sqrt %48 : vector<16x16x4xf32>
    %50 = tpu.concatenate %40, %44, %49, %1 in 2 : vector<16x16x4xf32>, vector<16x16x4xf32>, vector<16x16x4xf32>, vector<16x16x4xf32> -> vector<16x16x16xf32>
    %cst_4 = arith.constant 0.000000e+00 : f32
    %51 = vector.broadcast %cst_4 : f32 to vector<16x1x16xf32>
    %52 = tpu.concatenate %51, %50, %51 in 1 : vector<16x1x16xf32>, vector<16x16x16xf32>, vector<16x1x16xf32> -> vector<16x18x16xf32>
    %53 = vector.extract_strided_slice %52 {offsets = [0, 0, 0], sizes = [16, 16, 16], strides = [1, 1, 1]} : vector<16x18x16xf32> to vector<16x16x16xf32>
    %54 = vector.extract_strided_slice %52 {offsets = [0, 1, 0], sizes = [16, 16, 16], strides = [1, 1, 1]} : vector<16x18x16xf32> to vector<16x16x16xf32>
    %55 = vector.extract_strided_slice %52 {offsets = [0, 2, 0], sizes = [16, 16, 16], strides = [1, 1, 1]} : vector<16x18x16xf32> to vector<16x16x16xf32>
    %56 = tpu.concatenate %53, %54, %55 in 2 : vector<16x16x16xf32>, vector<16x16x16xf32>, vector<16x16x16xf32> -> vector<16x16x48xf32>
    %cst_5 = arith.constant 0.000000e+00 : f32
    %57 = vector.broadcast %cst_5 : f32 to vector<1x16x48xf32>
    %58 = tpu.concatenate %57, %56, %57 in 0 : vector<1x16x48xf32>, vector<16x16x48xf32>, vector<1x16x48xf32> -> vector<18x16x48xf32>
    %59 = arith.truncf %58 : vector<18x16x48xf32> to vector<18x16x48xbf16>
    %cst_6 = arith.constant 0.000000e+00 : f32
    %60 = vector.broadcast %cst_6 : f32 to vector<256x4xf32>
    %61 = vector.extract_strided_slice %59 {offsets = [0, 0, 0], sizes = [16, 16, 48], strides = [1, 1, 1]} : vector<18x16x48xbf16> to vector<16x16x48xbf16>
    %62 = vector.shape_cast %61 : vector<16x16x48xbf16> to vector<256x48xbf16>
    %c0_7 = arith.constant 0 : index
    %c0_8 = arith.constant 0 : index
    %c0_9 = arith.constant 0 : index
    %63 = vector.load %arg2[%c0_7, %c0_8, %c0_9] : memref<3x48x4xbf16, #tpu.memory_space<vmem>>, vector<1x48x4xbf16>
    %64 = vector.shape_cast %63 : vector<1x48x4xbf16> to vector<48x4xbf16>
    %cst_10 = arith.constant dense<0.000000e+00> : vector<256x4xf32>
    %65 = tpu.matmul %62, %64, %cst_10 {dimension_numbers = #tpu.dot_dimension_numbers<[1], [0], [0], [1], [0, 0, 1, 1], [], []>} : vector<256x48xbf16>, vector<48x4xbf16>, vector<256x4xf32> -> vector<256x4xf32>
    %66 = arith.addf %60, %65 : vector<256x4xf32>
    %67 = vector.extract_strided_slice %59 {offsets = [1, 0, 0], sizes = [16, 16, 48], strides = [1, 1, 1]} : vector<18x16x48xbf16> to vector<16x16x48xbf16>
    %68 = vector.shape_cast %67 : vector<16x16x48xbf16> to vector<256x48xbf16>
    %c1 = arith.constant 1 : index
    %c0_11 = arith.constant 0 : index
    %c0_12 = arith.constant 0 : index
    %69 = vector.load %arg2[%c1, %c0_11, %c0_12] : memref<3x48x4xbf16, #tpu.memory_space<vmem>>, vector<1x48x4xbf16>
    %70 = vector.shape_cast %69 : vector<1x48x4xbf16> to vector<48x4xbf16>
    %cst_13 = arith.constant dense<0.000000e+00> : vector<256x4xf32>
    %71 = tpu.matmul %68, %70, %cst_13 {dimension_numbers = #tpu.dot_dimension_numbers<[1], [0], [0], [1], [0, 0, 1, 1], [], []>} : vector<256x48xbf16>, vector<48x4xbf16>, vector<256x4xf32> -> vector<256x4xf32>
    %72 = arith.addf %66, %71 : vector<256x4xf32>
    %73 = vector.extract_strided_slice %59 {offsets = [2, 0, 0], sizes = [16, 16, 48], strides = [1, 1, 1]} : vector<18x16x48xbf16> to vector<16x16x48xbf16>
    %74 = vector.shape_cast %73 : vector<16x16x48xbf16> to vector<256x48xbf16>
    %c2 = arith.constant 2 : index
    %c0_14 = arith.constant 0 : index
    %c0_15 = arith.constant 0 : index
    %75 = vector.load %arg2[%c2, %c0_14, %c0_15] : memref<3x48x4xbf16, #tpu.memory_space<vmem>>, vector<1x48x4xbf16>
    %76 = vector.shape_cast %75 : vector<1x48x4xbf16> to vector<48x4xbf16>
    %cst_16 = arith.constant dense<0.000000e+00> : vector<256x4xf32>
    %77 = tpu.matmul %74, %76, %cst_16 {dimension_numbers = #tpu.dot_dimension_numbers<[1], [0], [0], [1], [0, 0, 1, 1], [], []>} : vector<256x48xbf16>, vector<48x4xbf16>, vector<256x4xf32> -> vector<256x4xf32>
    %78 = arith.addf %72, %77 : vector<256x4xf32>
    %79 = vector.shape_cast %1 : vector<16x16x4xf32> to vector<256x4xf32>
    %80 = arith.negf %78 : vector<256x4xf32>
    %81 = math.exp %80 : vector<256x4xf32>
    %cst_17 = arith.constant 1.000000e+00 : f32
    %82 = vector.broadcast %cst_17 : f32 to vector<256x4xf32>
    %83 = arith.addf %82, %81 : vector<256x4xf32>
    %84 = arith.divf %82, %83 : vector<256x4xf32>
    %85 = arith.mulf %79, %84 : vector<256x4xf32>
    %86 = tpu.transpose %85, [1, 0] : vector<256x4xf32> -> vector<4x256xf32>
    %c0_18 = arith.constant 0 : index
    %c0_19 = arith.constant 0 : index
    %c0_20 = arith.constant 0 : index
    %87 = vector.load %arg3[%c0_18, %c0_19, %c0_20] : memref<1x4x256xf32, #tpu.memory_space<vmem>>, vector<1x4x256xf32>
    %88 = vector.shape_cast %87 : vector<1x4x256xf32> to vector<4x256xf32>
    %89 = vector.shape_cast %86 : vector<4x256xf32> to vector<1x4x256xf32>
    tpu.vector_store %arg3[%c0_18, %c0_19, %c0_20], %89 {strides = array<i32>} : memref<1x4x256xf32, #tpu.memory_space<vmem>>, vector<1x4x256xf32>,
    return
  }
  func.func @transform_0(%arg0: i32) -> (i32, i32, i32, i32) {
    %c0_i32 = arith.constant 0 : i32
    %c0_i32_0 = arith.constant 0 : i32
    %c0_i32_1 = arith.constant 0 : i32
    %c0_i32_2 = arith.constant 0 : i32
    return %arg0, %c0_i32, %c0_i32_0, %c0_i32_1 : i32, i32, i32, i32
  }
  func.func @transform_1(%arg0: i32) -> (i32, i32, i32) {
    %c0_i32 = arith.constant 0 : i32
    %c0_i32_0 = arith.constant 0 : i32
    %c0_i32_1 = arith.constant 0 : i32
    %c0_i32_2 = arith.constant 0 : i32
    return %c0_i32, %c0_i32_0, %c0_i32_1 : i32, i32, i32
  }
  func.func @transform_2(%arg0: i32) -> (i32, i32, i32) {
    %c0_i32 = arith.constant 0 : i32
    %c0_i32_0 = arith.constant 0 : i32
    %c0_i32_1 = arith.constant 0 : i32
    return %arg0, %c0_i32, %c0_i32_0 : i32, i32, i32
  }
}

</mosaic_0001>

<llo_original>
// kernel: tpu_custom_call.1
$region0: #{tpu_custom_call.1}
  #allocation0 [shape = 'u32[]', space=smem, size = 0x4, offset = 0x4, fixed_abs, tag = 'smem constant byte address 0x4 - core index']
  #allocation1 [shape = 'u32[144,128]{1,0:T(1,128)}', space=vmem, size = 0x12000, scoped, tag = 'internal scratch']
  %s0 = inlined_call_operand.vmem [shape: f32[2,16,16,4], index: 0, kind: input, shape index: {}]
  %s1 = inlined_call_operand.vmem [shape: bf16[3,48,4], index: 1, kind: input, shape index: {}]
  %s2 = inlined_call_operand.hbm [shape: f32[2,4,256], index: 2, kind: output, shape index: {}]
  %s3 = sld [smem:[#allocation0]]
  $region41: #{tpu_custom_call.1} parent=0
    _
  %s5 = ssub.s32 1, %s3
  %s6 = scalar_select 0, %s5, %s3
  $region1: #{tpu_custom_call.1} parent=0
    #allocation2 [shape = 'u8[8192]{0}', space=vmem, size = 0x2000, scoped, tag = 'output window, operand 0']
    #allocation3 [shape = 's32[2]{0}', space=sflag, size = 0x8, scoped, tag = 'scoped memory for tpu_custom_call.1']
    %7 = vsyncpa [#allocation3], 0
    %s8 = scalar_lea.sflag [#allocation3], 1
    %9 = vsyncpa %s8, 0
    loop: start=0, step=1, limit=4
    $region2: #{tpu_custom_call.1} parent=1 // loop_pre_header
      _
    $region3: #{tpu_custom_call.1} parent=1 // loop_header
      %s11 = sphi 0, %s15
      %p12 = scmp.ge.s32.totalorder %s11, 4
      %s21 = sphi 0, %s23
      %s24 = sphi 0, %s21
      %s25 = sphi 0, %s24
      %s41 = sphi 0, %s25
      %s45 = sphi 0, %s45
      %s47 = sphi 0, %s45
      %s48 = sphi 0, %s47
      %s62 = sphi 0, %s48
      %s68 = sphi 0, %s70
      %s71 = sphi 0, %s68
      %s72 = sphi 0, %s71
      %s88 = sphi 0, %s72
    $region4: #{tpu_custom_call.1} parent=1 // loop_header_branch
      %14 = sbr.rel (%p12) target = $region8
    $region5: #{tpu_custom_call.1} parent=1 // loop_body
      %s16 = ssub.s32 %s11, 1
      %s17 = ssub.s32 %s11, 2
      %s18 = sadd.s32 %s11, 1
      %s19 = ssub.s32 %s11, %s18
      %p20 = scmp.eq.s32.totalorder %s19, 0
      %s22 = sadd.s32 %s21, 1
      %s23 = scalar_select %p20, %s21, %s22
      %p26 = pneg %p20
      %p27 = scmp.eq.s32.totalorder %s11, 1
      %p28 = por %p26, %p27
      %p29 = scmp.ne.s32.totalorder %s21, %s24
      %p30 = scmp.eq.s32.totalorder %s11, 0
      %p31 = por %p29, %p30
      %p32 = scmp.ne.s32.totalorder %s21, %s24
      %p33 = scmp.eq.s32.totalorder %s16, 1
      %p34 = por %p32, %p33
      %p35 = scmp.ne.s32.totalorder %s24, %s25
      %p36 = scmp.eq.s32.totalorder %s16, 0
      %p37 = por %p35, %p36
      %p38 = scmp.ne.s32.totalorder %s24, %s25
      %p39 = scmp.eq.s32.totalorder %s17, 1
      %p40 = por %p38, %p39
      %p42 = scmp.ne.s32.totalorder %s25, %s41
      %p43 = scmp.eq.s32.totalorder %s17, 0
      %p44 = por %p42, %p43
      %s46 = sadd.s32 %s45, 1
      %p49 = scmp.eq.s32.totalorder %s11, 1
      %p50 = scmp.ne.s32.totalorder %s45, %s47
      %p51 = scmp.eq.s32.totalorder %s11, 0
      %p52 = por %p50, %p51
      %p53 = scmp.ne.s32.totalorder %s45, %s47
      %p54 = scmp.eq.s32.totalorder %s16, 1
      %p55 = por %p53, %p54
      %p56 = scmp.ne.s32.totalorder %s47, %s48
      %p57 = scmp.eq.s32.totalorder %s16, 0
      %p58 = por %p56, %p57
      %p59 = scmp.ne.s32.totalorder %s47, %s48
      %p60 = scmp.eq.s32.totalorder %s17, 1
      %p61 = por %p59, %p60
      %p63 = scmp.ne.s32.totalorder %s48, %s62
      %p64 = scmp.eq.s32.totalorder %s17, 0
      %p65 = por %p63, %p64
      %s66 = ssub.s32 %s11, %s18
      %p67 = scmp.eq.s32.totalorder %s66, 0
      %s69 = sadd.s32 %s68, 1
      %s70 = scalar_select %p67, %s68, %s69
      %p73 = pneg %p67
      %p74 = scmp.eq.s32.totalorder %s11, 1
      %p75 = por %p73, %p74
      %p76 = scmp.ne.s32.totalorder %s68, %s71
      %p77 = scmp.eq.s32.totalorder %s11, 0
      %p78 = por %p76, %p77
      %p79 = scmp.ne.s32.totalorder %s68, %s71
      %p80 = scmp.eq.s32.totalorder %s16, 1
      %p81 = por %p79, %p80
      %p82 = scmp.ne.s32.totalorder %s71, %s72
      %p83 = scmp.eq.s32.totalorder %s16, 0
      %p84 = por %p82, %p83
      %p85 = scmp.ne.s32.totalorder %s71, %s72
      %p86 = scmp.eq.s32.totalorder %s17, 1
      %p87 = por %p85, %p86
      %p89 = scmp.ne.s32.totalorder %s72, %s88
      %p90 = scmp.eq.s32.totalorder %s17, 0
      %p91 = por %p89, %p90
      %p92 = scmp.le.s32.totalorder 1, %s11
      %p93 = scmp.lt.s32.totalorder %s11, 3
      %p94 = pnand %p92, %p93
      %p95 = pneg %p94
      // Predicated region
      $region9: #{tpu_custom_call.1} parent=5 // pred_check
        _
      $region10: #{tpu_custom_call.1} parent=5 // pred_check_branch
        %97 = sbr.rel (%p94) target = $region12
      $region11: #{tpu_custom_call.1} parent=5 // pred_region
        %s98 = ssub.s32 %s11, 1
        // Predicated region
        $region13: #{tpu_custom_call.1} parent=11 // pred_check
          %p99 = pneg %p58
        $region14: #{tpu_custom_call.1} parent=11 // pred_check_branch
          %101 = sbr.rel (%p99) target = $region16
        $region15: #{tpu_custom_call.1} parent=11 // pred_region
          _
        $region16: #{tpu_custom_call.1} parent=11 // pred_fallthru
          _
      $region12: #{tpu_custom_call.1} parent=5 // pred_fallthru
        _
      %p102 = scmp.lt.s32.totalorder %s11, 2
      // Predicated region
      $region17: #{tpu_custom_call.1} parent=5 // pred_check
        %p103 = pneg %p102
      $region18: #{tpu_custom_call.1} parent=5 // pred_check_branch
        %105 = sbr.rel (%p103) target = $region20
      $region19: #{tpu_custom_call.1} parent=5 // pred_region
        // Predicated region
        $region21: #{tpu_custom_call.1} parent=19 // pred_check
          %p106 = pneg %p31
        $region22: #{tpu_custom_call.1} parent=19 // pred_check_branch
          %108 = sbr.rel (%p106) target = $region24
        $region23: #{tpu_custom_call.1} parent=19 // pred_region
          %p109 = scmp.lt.s32.totalorder %s11, 1
          %s110 = scalar_select %p109, %s11, 1
          %s111 = smul.addr %s110, 32
          %s112 = smul.addr %s111, 8
          %s113 = scalar_lea.vmem %s0, %s112
        $region24: #{tpu_custom_call.1} parent=19 // pred_fallthru
          _
      $region20: #{tpu_custom_call.1} parent=5 // pred_fallthru
        _
      %p114 = scmp.le.s32.totalorder 1, %s11
      %p115 = scmp.lt.s32.totalorder %s11, 3
      %p116 = pnand %p114, %p115
      %p117 = pneg %p116
      // Predicated region
      $region25: #{tpu_custom_call.1} parent=5 // pred_check
        _
      $region26: #{tpu_custom_call.1} parent=5 // pred_check_branch
        %119 = sbr.rel (%p116) target = $region28
      $region27: #{tpu_custom_call.1} parent=5 // pred_region
        %s120 = ssub.s32 %s11, 1
        %p121 = scmp.lt.s32.totalorder %s16, 1
        %s122 = scalar_select %p121, %s16, 1
        %s123 = smul.addr %s122, 32
        %s124 = smul.addr %s123, 8
        %s125 = scalar_lea.vmem %s0, %s124
        %p126 = pneg %p37
        %p127 = pneg %p34
        %p128 = pneg %p58
        %p129 = pneg %p55
        %p130 = pneg %p84
        %p131 = pneg %p81
        %s132 = sand.u32 %s71, 1
        %s133 = scalar_lea.sflag [#allocation3], %s132
        %s134 = sand.u32 %s71, 1
        %s135 = smul.addr %s134, 8
        %s136 = scalar_lea.vmem [#allocation2], %s135
        %p137 = scmp.lt.s32.totalorder %s16, 1
        %s138 = scalar_select %p137, %s16, 1
        %s139 = smul.addr %s138, 32
        %s140 = smul.addr %s139, 8
        %s141 = scalar_lea.vmem %s0, %s140
        %v143 = vld [vmem:[%s141] sm:$0xff]
        %v144 = vld [vmem:[%s141 + $0x8] sm:$0xff]
        %v145 = vld [vmem:[%s141 + $0x10] sm:$0xff]
        %v146 = vld [vmem:[%s141 + $0x18] sm:$0xff]
        %v147 = vld [vmem:[%s141 + $0x20] sm:$0xff]
        %v148 = vld [vmem:[%s141 + $0x28] sm:$0xff]
        %v149 = vld [vmem:[%s141 + $0x30] sm:$0xff]
        %v150 = vld [vmem:[%s141 + $0x38] sm:$0xff]
        %v151 = vld [vmem:[%s141 + $0x40] sm:$0xff]
        %v152 = vld [vmem:[%s141 + $0x48] sm:$0xff]
        %v153 = vld [vmem:[%s141 + $0x50] sm:$0xff]
        %v154 = vld [vmem:[%s141 + $0x58] sm:$0xff]
        %v155 = vld [vmem:[%s141 + $0x60] sm:$0xff]
        %v156 = vld [vmem:[%s141 + $0x68] sm:$0xff]
        %v157 = vld [vmem:[%s141 + $0x70] sm:$0xff]
        %v158 = vld [vmem:[%s141 + $0x78] sm:$0xff]
        %v159 = vld [vmem:[%s141 + $0x80] sm:$0xff]
        %v160 = vld [vmem:[%s141 + $0x88] sm:$0xff]
        %v161 = vld [vmem:[%s141 + $0x90] sm:$0xff]
        %v162 = vld [vmem:[%s141 + $0x98] sm:$0xff]
        %v163 = vld [vmem:[%s141 + $0xa0] sm:$0xff]
        %v164 = vld [vmem:[%s141 + $0xa8] sm:$0xff]
        %v165 = vld [vmem:[%s141 + $0xb0] sm:$0xff]
        %v166 = vld [vmem:[%s141 + $0xb8] sm:$0xff]
        %v167 = vld [vmem:[%s141 + $0xc0] sm:$0xff]
        %v168 = vld [vmem:[%s141 + $0xc8] sm:$0xff]
        %v169 = vld [vmem:[%s141 + $0xd0] sm:$0xff]
        %v170 = vld [vmem:[%s141 + $0xd8] sm:$0xff]
        %v171 = vld [vmem:[%s141 + $0xe0] sm:$0xff]
        %v172 = vld [vmem:[%s141 + $0xe8] sm:$0xff]
        %v173 = vld [vmem:[%s141 + $0xf0] sm:$0xff]
        %v174 = vld [vmem:[%s141 + $0xf8] sm:$0xff]
        %v191 = vrot.slane %v147, 2
        %v192 = vrot.slane %v145, 2
        %v193 = vrot.slane %v143, 2
        %v194 = vrot.slane %v149, 2
        %v195 = vrot.slane %v151, 2
        %v196 = vrot.slane %v153, 2
        %v197 = vrot.slane %v155, 2
        %v198 = vrot.slane %v157, 2
        %v199 = vrot.slane %v159, 2
        %v200 = vrot.slane %v161, 2
        %v201 = vrot.slane %v163, 2
        %v202 = vrot.slane %v165, 2
        %v203 = vrot.slane %v167, 2
        %v204 = vrot.slane %v169, 2
        %v205 = vrot.slane %v171, 2
        %v206 = vrot.slane %v173, 2
        %vm239 = vcmask 1041408
        %v240 = vrot.slane %v147, 6
        %v241 = vrot.slane %v148, 6
        %v242 = vsel %vm239, %v240, %v241
        %v243 = vrot.slane %v145, 6
        %v244 = vrot.slane %v146, 6
        %v245 = vsel %vm239, %v243, %v244
        %v246 = vrot.slane %v143, 6
        %v247 = vrot.slane %v144, 6
        %v248 = vsel %vm239, %v246, %v247
        %v249 = vrot.slane %v149, 6
        %v250 = vrot.slane %v150, 6
        %v251 = vsel %vm239, %v249, %v250
        %v252 = vrot.slane %v151, 6
        %v253 = vrot.slane %v152, 6
        %v254 = vsel %vm239, %v252, %v253
        %v255 = vrot.slane %v153, 6
        %v256 = vrot.slane %v154, 6
        %v257 = vsel %vm239, %v255, %v256
        %v258 = vrot.slane %v155, 6
        %v259 = vrot.slane %v156, 6
        %v260 = vsel %vm239, %v258, %v259
        %v261 = vrot.slane %v157, 6
        %v262 = vrot.slane %v158, 6
        %v263 = vsel %vm239, %v261, %v262
        %v264 = vrot.slane %v159, 6
        %v265 = vrot.slane %v160, 6
        %v266 = vsel %vm239, %v264, %v265
        %v267 = vrot.slane %v161, 6
        %v268 = vrot.slane %v162, 6
        %v269 = vsel %vm239, %v267, %v268
        %v270 = vrot.slane %v163, 6
        %v271 = vrot.slane %v164, 6
        %v272 = vsel %vm239, %v270, %v271
        %v273 = vrot.slane %v165, 6
        %v274 = vrot.slane %v166, 6
        %v275 = vsel %vm239, %v273, %v274
        %v276 = vrot.slane %v167, 6
        %v277 = vrot.slane %v168, 6
        %v278 = vsel %vm239, %v276, %v277
        %v279 = vrot.slane %v169, 6
        %v280 = vrot.slane %v170, 6
        %v281 = vsel %vm239, %v279, %v280
        %v282 = vrot.slane %v171, 6
        %v283 = vrot.slane %v172, 6
        %v284 = vsel %vm239, %v282, %v283
        %v285 = vrot.slane %v173, 6
        %v286 = vrot.slane %v174, 6
        %v287 = vsel %vm239, %v285, %v286
        %v336 = vrot.slane %v148, 4
        %v337 = vrot.slane %v146, 4
        %v338 = vrot.slane %v144, 4
        %v339 = vrot.slane %v150, 4
        %v340 = vrot.slane %v152, 4
        %v341 = vrot.slane %v154, 4
        %v342 = vrot.slane %v156, 4
        %v343 = vrot.slane %v158, 4
        %v344 = vrot.slane %v160, 4
        %v345 = vrot.slane %v162, 4
        %v346 = vrot.slane %v164, 4
        %v347 = vrot.slane %v166, 4
        %v348 = vrot.slane %v168, 4
        %v349 = vrot.slane %v170, 4
        %v350 = vrot.slane %v172, 4
        %v351 = vrot.slane %v174, 4
        %v368 = vrot.slane %v148, 2
        %v369 = vrot.slane %v146, 2
        %v370 = vrot.slane %v144, 2
        %v371 = vrot.slane %v150, 2
        %v372 = vrot.slane %v152, 2
        %v373 = vrot.slane %v154, 2
        %v374 = vrot.slane %v156, 2
        %v375 = vrot.slane %v158, 2
        %v376 = vrot.slane %v160, 2
        %v377 = vrot.slane %v162, 2
        %v378 = vrot.slane %v164, 2
        %v379 = vrot.slane %v166, 2
        %v380 = vrot.slane %v168, 2
        %v381 = vrot.slane %v170, 2
        %v382 = vrot.slane %v172, 2
        %v383 = vrot.slane %v174, 2
        %vm400 = vcmask 1040384
        %v401 = vsel %vm400, %v191, %v147
        %v402 = vsel %vm400, %v192, %v145
        %v403 = vsel %vm400, %v193, %v143
        %v404 = vsel %vm400, %v194, %v149
        %v405 = vsel %vm400, %v195, %v151
        %v406 = vsel %vm400, %v196, %v153
        %v407 = vsel %vm400, %v197, %v155
        %v408 = vsel %vm400, %v198, %v157
        %v409 = vsel %vm400, %v199, %v159
        %v410 = vsel %vm400, %v200, %v161
        %v411 = vsel %vm400, %v201, %v163
        %v412 = vsel %vm400, %v202, %v165
        %v413 = vsel %vm400, %v203, %v167
        %v414 = vsel %vm400, %v204, %v169
        %v415 = vsel %vm400, %v205, %v171
        %v416 = vsel %vm400, %v206, %v173
        %v417 = vsel %vm239, %v401, %v240
        %v418 = vsel %vm239, %v402, %v243
        %v419 = vsel %vm239, %v403, %v246
        %v420 = vsel %vm239, %v404, %v249
        %v421 = vsel %vm239, %v405, %v252
        %v422 = vsel %vm239, %v406, %v255
        %v423 = vsel %vm239, %v407, %v258
        %v424 = vsel %vm239, %v408, %v261
        %v425 = vsel %vm239, %v409, %v264
        %v426 = vsel %vm239, %v410, %v267
        %v427 = vsel %vm239, %v411, %v270
        %v428 = vsel %vm239, %v412, %v273
        %v429 = vsel %vm239, %v413, %v276
        %v430 = vsel %vm239, %v414, %v279
        %v431 = vsel %vm239, %v415, %v282
        %v432 = vsel %vm239, %v416, %v285
        %v433 = vsel %vm239, %v241, %v336
        %v434 = vsel %vm239, %v244, %v337
        %v435 = vsel %vm239, %v247, %v338
        %v436 = vsel %vm239, %v250, %v339
        %v437 = vsel %vm239, %v253, %v340
        %v438 = vsel %vm239, %v256, %v341
        %v439 = vsel %vm239, %v259, %v342
        %v440 = vsel %vm239, %v262, %v343
        %v441 = vsel %vm239, %v265, %v344
        %v442 = vsel %vm239, %v268, %v345
        %v443 = vsel %vm239, %v271, %v346
        %v444 = vsel %vm239, %v274, %v347
        %v445 = vsel %vm239, %v277, %v348
        %v446 = vsel %vm239, %v280, %v349
        %v447 = vsel %vm239, %v283, %v350
        %v448 = vsel %vm239, %v286, %v351
        %vm449 = vcmask 1042432
        %v450 = vsel %vm449, %v433, %v368
        %v451 = vsel %vm449, %v434, %v369
        %v452 = vsel %vm449, %v435, %v370
        %v453 = vsel %vm449, %v436, %v371
        %v454 = vsel %vm449, %v437, %v372
        %v455 = vsel %vm449, %v438, %v373
        %v456 = vsel %vm449, %v439, %v374
        %v457 = vsel %vm449, %v440, %v375
        %v458 = vsel %vm449, %v441, %v376
        %v459 = vsel %vm449, %v442, %v377
        %v460 = vsel %vm449, %v443, %v378
        %v461 = vsel %vm449, %v444, %v379
        %v462 = vsel %vm449, %v445, %v380
        %v463 = vsel %vm449, %v446, %v381
        %v464 = vsel %vm449, %v447, %v382
        %v465 = vsel %vm449, %v448, %v383
        %vm498 = vcmask 1046528
        %v499 = vrot.slane %v417, 1
        %v500 = vrot.slane %v242, 1
        %v501 = vsel %vm498, %v499, %v500
        %v502 = vrot.slane %v450, 1
        %v503 = vsel %vm498, %v500, %v502
        %v504 = vrot.slane %v418, 1
        %v505 = vrot.slane %v245, 1
        %v506 = vsel %vm498, %v504, %v505
        %v507 = vrot.slane %v451, 1
        %v508 = vsel %vm498, %v505, %v507
        %v509 = vrot.slane %v419, 1
        %v510 = vrot.slane %v248, 1
        %v511 = vsel %vm498, %v509, %v510
        %v512 = vrot.slane %v452, 1
        %v513 = vsel %vm498, %v510, %v512
        %v514 = vrot.slane %v420, 1
        %v515 = vrot.slane %v251, 1
        %v516 = vsel %vm498, %v514, %v515
        %v517 = vrot.slane %v453, 1
        %v518 = vsel %vm498, %v515, %v517
        %v519 = vrot.slane %v421, 1
        %v520 = vrot.slane %v254, 1
        %v521 = vsel %vm498, %v519, %v520
        %v522 = vrot.slane %v454, 1
        %v523 = vsel %vm498, %v520, %v522
        %v524 = vrot.slane %v422, 1
        %v525 = vrot.slane %v257, 1
        %v526 = vsel %vm498, %v524, %v525
        %v527 = vrot.slane %v455, 1
        %v528 = vsel %vm498, %v525, %v527
        %v529 = vrot.slane %v423, 1
        %v530 = vrot.slane %v260, 1
        %v531 = vsel %vm498, %v529, %v530
        %v532 = vrot.slane %v456, 1
        %v533 = vsel %vm498, %v530, %v532
        %v534 = vrot.slane %v424, 1
        %v535 = vrot.slane %v263, 1
        %v536 = vsel %vm498, %v534, %v535
        %v537 = vrot.slane %v457, 1
        %v538 = vsel %vm498, %v535, %v537
        %v539 = vrot.slane %v425, 1
        %v540 = vrot.slane %v266, 1
        %v541 = vsel %vm498, %v539, %v540
        %v542 = vrot.slane %v458, 1
        %v543 = vsel %vm498, %v540, %v542
        %v544 = vrot.slane %v426, 1
        %v545 = vrot.slane %v269, 1
        %v546 = vsel %vm498, %v544, %v545
        %v547 = vrot.slane %v459, 1
        %v548 = vsel %vm498, %v545, %v547
        %v549 = vrot.slane %v427, 1
        %v550 = vrot.slane %v272, 1
        %v551 = vsel %vm498, %v549, %v550
        %v552 = vrot.slane %v460, 1
        %v553 = vsel %vm498, %v550, %v552
        %v554 = vrot.slane %v428, 1
        %v555 = vrot.slane %v275, 1
        %v556 = vsel %vm498, %v554, %v555
        %v557 = vrot.slane %v461, 1
        %v558 = vsel %vm498, %v555, %v557
        %v559 = vrot.slane %v429, 1
        %v560 = vrot.slane %v278, 1
        %v561 = vsel %vm498, %v559, %v560
        %v562 = vrot.slane %v462, 1
        %v563 = vsel %vm498, %v560, %v562
        %v564 = vrot.slane %v430, 1
        %v565 = vrot.slane %v281, 1
        %v566 = vsel %vm498, %v564, %v565
        %v567 = vrot.slane %v463, 1
        %v568 = vsel %vm498, %v565, %v567
        %v569 = vrot.slane %v431, 1
        %v570 = vrot.slane %v284, 1
        %v571 = vsel %vm498, %v569, %v570
        %v572 = vrot.slane %v464, 1
        %v573 = vsel %vm498, %v570, %v572
        %v574 = vrot.slane %v432, 1
        %v575 = vrot.slane %v287, 1
        %v576 = vsel %vm498, %v574, %v575
        %v577 = vrot.slane %v465, 1
        %v578 = vsel %vm498, %v575, %v577
        %v611 = vmax.f32 %v417, %v501
        %v612 = vmax.f32 %v242, %v503
        %v613 = vmax.f32 %v418, %v506
        %v614 = vmax.f32 %v245, %v508
        %v615 = vmax.f32 %v419, %v511
        %v616 = vmax.f32 %v248, %v513
        %v617 = vmax.f32 %v420, %v516
        %v618 = vmax.f32 %v251, %v518
        %v619 = vmax.f32 %v421, %v521
        %v620 = vmax.f32 %v254, %v523
        %v621 = vmax.f32 %v422, %v526
        %v622 = vmax.f32 %v257, %v528
        %v623 = vmax.f32 %v423, %v531
        %v624 = vmax.f32 %v260, %v533
        %v625 = vmax.f32 %v424, %v536
        %v626 = vmax.f32 %v263, %v538
        %v627 = vmax.f32 %v425, %v541
        %v628 = vmax.f32 %v266, %v543
        %v629 = vmax.f32 %v426, %v546
        %v630 = vmax.f32 %v269, %v548
        %v631 = vmax.f32 %v427, %v551
        %v632 = vmax.f32 %v272, %v553
        %v633 = vmax.f32 %v428, %v556
        %v634 = vmax.f32 %v275, %v558
        %v635 = vmax.f32 %v429, %v561
        %v636 = vmax.f32 %v278, %v563
        %v637 = vmax.f32 %v430, %v566
        %v638 = vmax.f32 %v281, %v568
        %v639 = vmax.f32 %v431, %v571
        %v640 = vmax.f32 %v284, %v573
        %v641 = vmax.f32 %v432, %v576
        %v642 = vmax.f32 %v287, %v578
        %v643 = vadd.f32 %v417, %v501
        %v644 = vadd.f32 %v242, %v503
        %v645 = vadd.f32 %v418, %v506
        %v646 = vadd.f32 %v245, %v508
        %v647 = vadd.f32 %v419, %v511
        %v648 = vadd.f32 %v248, %v513
        %v649 = vadd.f32 %v420, %v516
        %v650 = vadd.f32 %v251, %v518
        %v651 = vadd.f32 %v421, %v521
        %v652 = vadd.f32 %v254, %v523
        %v653 = vadd.f32 %v422, %v526
        %v654 = vadd.f32 %v257, %v528
        %v655 = vadd.f32 %v423, %v531
        %v656 = vadd.f32 %v260, %v533
        %v657 = vadd.f32 %v424, %v536
        %v658 = vadd.f32 %v263, %v538
        %v659 = vadd.f32 %v425, %v541
        %v660 = vadd.f32 %v266, %v543
        %v661 = vadd.f32 %v426, %v546
        %v662 = vadd.f32 %v269, %v548
        %v663 = vadd.f32 %v427, %v551
        %v664 = vadd.f32 %v272, %v553
        %v665 = vadd.f32 %v428, %v556
        %v666 = vadd.f32 %v275, %v558
        %v667 = vadd.f32 %v429, %v561
        %v668 = vadd.f32 %v278, %v563
        %v669 = vadd.f32 %v430, %v566
        %v670 = vadd.f32 %v281, %v568
        %v671 = vadd.f32 %v431, %v571
        %v672 = vadd.f32 %v284, %v573
        %v673 = vadd.f32 %v432, %v576
        %v674 = vadd.f32 %v287, %v578
        %vm675 = vcmask 1045504
        %v676 = vrot.slane %v417, 2
        %v677 = vrot.slane %v242, 2
        %v678 = vsel %vm675, %v676, %v677
        %v679 = vrot.slane %v450, 2
        %v680 = vsel %vm675, %v677, %v679
        %v681 = vrot.slane %v418, 2
        %v682 = vrot.slane %v245, 2
        %v683 = vsel %vm675, %v681, %v682
        %v684 = vrot.slane %v451, 2
        %v685 = vsel %vm675, %v682, %v684
        %v686 = vrot.slane %v419, 2
        %v687 = vrot.slane %v248, 2
        %v688 = vsel %vm675, %v686, %v687
        %v689 = vrot.slane %v452, 2
        %v690 = vsel %vm675, %v687, %v689
        %v691 = vrot.slane %v420, 2
        %v692 = vrot.slane %v251, 2
        %v693 = vsel %vm675, %v691, %v692
        %v694 = vrot.slane %v453, 2
        %v695 = vsel %vm675, %v692, %v694
        %v696 = vrot.slane %v421, 2
        %v697 = vrot.slane %v254, 2
        %v698 = vsel %vm675, %v696, %v697
        %v699 = vrot.slane %v454, 2
        %v700 = vsel %vm675, %v697, %v699
        %v701 = vrot.slane %v422, 2
        %v702 = vrot.slane %v257, 2
        %v703 = vsel %vm675, %v701, %v702
        %v704 = vrot.slane %v455, 2
        %v705 = vsel %vm675, %v702, %v704
        %v706 = vrot.slane %v423, 2
        %v707 = vrot.slane %v260, 2
        %v708 = vsel %vm675, %v706, %v707
        %v709 = vrot.slane %v456, 2
        %v710 = vsel %vm675, %v707, %v709
        %v711 = vrot.slane %v424, 2
        %v712 = vrot.slane %v263, 2
        %v713 = vsel %vm675, %v711, %v712
        %v714 = vrot.slane %v457, 2
        %v715 = vsel %vm675, %v712, %v714
        %v716 = vrot.slane %v425, 2
        %v717 = vrot.slane %v266, 2
        %v718 = vsel %vm675, %v716, %v717
        %v719 = vrot.slane %v458, 2
        %v720 = vsel %vm675, %v717, %v719
        %v721 = vrot.slane %v426, 2
        %v722 = vrot.slane %v269, 2
        %v723 = vsel %vm675, %v721, %v722
        %v724 = vrot.slane %v459, 2
        %v725 = vsel %vm675, %v722, %v724
        %v726 = vrot.slane %v427, 2
        %v727 = vrot.slane %v272, 2
        %v728 = vsel %vm675, %v726, %v727
        %v729 = vrot.slane %v460, 2
        %v730 = vsel %vm675, %v727, %v729
        %v731 = vrot.slane %v428, 2
        %v732 = vrot.slane %v275, 2
        %v733 = vsel %vm675, %v731, %v732
        %v734 = vrot.slane %v461, 2
        %v735 = vsel %vm675, %v732, %v734
        %v736 = vrot.slane %v429, 2
        %v737 = vrot.slane %v278, 2
        %v738 = vsel %vm675, %v736, %v737
        %v739 = vrot.slane %v462, 2
        %v740 = vsel %vm675, %v737, %v739
        %v741 = vrot.slane %v430, 2
        %v742 = vrot.slane %v281, 2
        %v743 = vsel %vm675, %v741, %v742
        %v744 = vrot.slane %v463, 2
        %v745 = vsel %vm675, %v742, %v744
        %v746 = vrot.slane %v431, 2
        %v747 = vrot.slane %v284, 2
        %v748 = vsel %vm675, %v746, %v747
        %v749 = vrot.slane %v464, 2
        %v750 = vsel %vm675, %v747, %v749
        %v751 = vrot.slane %v432, 2
        %v752 = vrot.slane %v287, 2
        %v753 = vsel %vm675, %v751, %v752
        %v754 = vrot.slane %v465, 2
        %v755 = vsel %vm675, %v752, %v754
        %v788 = vmax.f32 %v611, %v678
        %v789 = vmax.f32 %v612, %v680
        %v790 = vmax.f32 %v613, %v683
        %v791 = vmax.f32 %v614, %v685
        %v792 = vmax.f32 %v615, %v688
        %v793 = vmax.f32 %v616, %v690
        %v794 = vmax.f32 %v617, %v693
        %v795 = vmax.f32 %v618, %v695
        %v796 = vmax.f32 %v619, %v698
        %v797 = vmax.f32 %v620, %v700
        %v798 = vmax.f32 %v621, %v703
        %v799 = vmax.f32 %v622, %v705
        %v800 = vmax.f32 %v623, %v708
        %v801 = vmax.f32 %v624, %v710
        %v802 = vmax.f32 %v625, %v713
        %v803 = vmax.f32 %v626, %v715
        %v804 = vmax.f32 %v627, %v718
        %v805 = vmax.f32 %v628, %v720
        %v806 = vmax.f32 %v629, %v723
        %v807 = vmax.f32 %v630, %v725
        %v808 = vmax.f32 %v631, %v728
        %v809 = vmax.f32 %v632, %v730
        %v810 = vmax.f32 %v633, %v733
        %v811 = vmax.f32 %v634, %v735
        %v812 = vmax.f32 %v635, %v738
        %v813 = vmax.f32 %v636, %v740
        %v814 = vmax.f32 %v637, %v743
        %v815 = vmax.f32 %v638, %v745
        %v816 = vmax.f32 %v639, %v748
        %v817 = vmax.f32 %v640, %v750
        %v818 = vmax.f32 %v641, %v753
        %v819 = vmax.f32 %v642, %v755
        %v820 = vadd.f32 %v643, %v678
        %v821 = vadd.f32 %v644, %v680
        %v822 = vadd.f32 %v645, %v683
        %v823 = vadd.f32 %v646, %v685
        %v824 = vadd.f32 %v647, %v688
        %v825 = vadd.f32 %v648, %v690
        %v826 = vadd.f32 %v649, %v693
        %v827 = vadd.f32 %v650, %v695
        %v828 = vadd.f32 %v651, %v698
        %v829 = vadd.f32 %v652, %v700
        %v830 = vadd.f32 %v653, %v703
        %v831 = vadd.f32 %v654, %v705
        %v832 = vadd.f32 %v655, %v708
        %v833 = vadd.f32 %v656, %v710
        %v834 = vadd.f32 %v657, %v713
        %v835 = vadd.f32 %v658, %v715
        %v836 = vadd.f32 %v659, %v718
        %v837 = vadd.f32 %v660, %v720
        %v838 = vadd.f32 %v661, %v723
        %v839 = vadd.f32 %v662, %v725
        %v840 = vadd.f32 %v663, %v728
        %v841 = vadd.f32 %v664, %v730
        %v842 = vadd.f32 %v665, %v733
        %v843 = vadd.f32 %v666, %v735
        %v844 = vadd.f32 %v667, %v738
        %v845 = vadd.f32 %v668, %v740
        %v846 = vadd.f32 %v669, %v743
        %v847 = vadd.f32 %v670, %v745
        %v848 = vadd.f32 %v671, %v748
        %v849 = vadd.f32 %v672, %v750
        %v850 = vadd.f32 %v673, %v753
        %v851 = vadd.f32 %v674, %v755
        %vm852 = vcmask 1044480
        %v853 = vrot.slane %v417, 3
        %v854 = vrot.slane %v242, 3
        %v855 = vsel %vm852, %v853, %v854
        %v856 = vrot.slane %v450, 3
        %v857 = vsel %vm852, %v854, %v856
        %v858 = vrot.slane %v418, 3
        %v859 = vrot.slane %v245, 3
        %v860 = vsel %vm852, %v858, %v859
        %v861 = vrot.slane %v451, 3
        %v862 = vsel %vm852, %v859, %v861
        %v863 = vrot.slane %v419, 3
        %v864 = vrot.slane %v248, 3
        %v865 = vsel %vm852, %v863, %v864
        %v866 = vrot.slane %v452, 3
        %v867 = vsel %vm852, %v864, %v866
        %v868 = vrot.slane %v420, 3
        %v869 = vrot.slane %v251, 3
        %v870 = vsel %vm852, %v868, %v869
        %v871 = vrot.slane %v453, 3
        %v872 = vsel %vm852, %v869, %v871
        %v873 = vrot.slane %v421, 3
        %v874 = vrot.slane %v254, 3
        %v875 = vsel %vm852, %v873, %v874
        %v876 = vrot.slane %v454, 3
        %v877 = vsel %vm852, %v874, %v876
        %v878 = vrot.slane %v422, 3
        %v879 = vrot.slane %v257, 3
        %v880 = vsel %vm852, %v878, %v879
        %v881 = vrot.slane %v455, 3
        %v882 = vsel %vm852, %v879, %v881
        %v883 = vrot.slane %v423, 3
        %v884 = vrot.slane %v260, 3
        %v885 = vsel %vm852, %v883, %v884
        %v886 = vrot.slane %v456, 3
        %v887 = vsel %vm852, %v884, %v886
        %v888 = vrot.slane %v424, 3
        %v889 = vrot.slane %v263, 3
        %v890 = vsel %vm852, %v888, %v889
        %v891 = vrot.slane %v457, 3
        %v892 = vsel %vm852, %v889, %v891
        %v893 = vrot.slane %v425, 3
        %v894 = vrot.slane %v266, 3
        %v895 = vsel %vm852, %v893, %v894
        %v896 = vrot.slane %v458, 3
        %v897 = vsel %vm852, %v894, %v896
        %v898 = vrot.slane %v426, 3
        %v899 = vrot.slane %v269, 3
        %v900 = vsel %vm852, %v898, %v899
        %v901 = vrot.slane %v459, 3
        %v902 = vsel %vm852, %v899, %v901
        %v903 = vrot.slane %v427, 3
        %v904 = vrot.slane %v272, 3
        %v905 = vsel %vm852, %v903, %v904
        %v906 = vrot.slane %v460, 3
        %v907 = vsel %vm852, %v904, %v906
        %v908 = vrot.slane %v428, 3
        %v909 = vrot.slane %v275, 3
        %v910 = vsel %vm852, %v908, %v909
        %v911 = vrot.slane %v461, 3
        %v912 = vsel %vm852, %v909, %v911
        %v913 = vrot.slane %v429, 3
        %v914 = vrot.slane %v278, 3
        %v915 = vsel %vm852, %v913, %v914
        %v916 = vrot.slane %v462, 3
        %v917 = vsel %vm852, %v914, %v916
        %v918 = vrot.slane %v430, 3
        %v919 = vrot.slane %v281, 3
        %v920 = vsel %vm852, %v918, %v919
        %v921 = vrot.slane %v463, 3
        %v922 = vsel %vm852, %v919, %v921
        %v923 = vrot.slane %v431, 3
        %v924 = vrot.slane %v284, 3
        %v925 = vsel %vm852, %v923, %v924
        %v926 = vrot.slane %v464, 3
        %v927 = vsel %vm852, %v924, %v926
        %v928 = vrot.slane %v432, 3
        %v929 = vrot.slane %v287, 3
        %v930 = vsel %vm852, %v928, %v929
        %v931 = vrot.slane %v465, 3
        %v932 = vsel %vm852, %v929, %v931
        %v965 = vmax.f32 %v788, %v855
        %v966 = vmax.f32 %v789, %v857
        %v967 = vmax.f32 %v790, %v860
        %v968 = vmax.f32 %v791, %v862
        %v969 = vmax.f32 %v792, %v865
        %v970 = vmax.f32 %v793, %v867
        %v971 = vmax.f32 %v794, %v870
        %v972 = vmax.f32 %v795, %v872
        %v973 = vmax.f32 %v796, %v875
        %v974 = vmax.f32 %v797, %v877
        %v975 = vmax.f32 %v798, %v880
        %v976 = vmax.f32 %v799, %v882
        %v977 = vmax.f32 %v800, %v885
        %v978 = vmax.f32 %v801, %v887
        %v979 = vmax.f32 %v802, %v890
        %v980 = vmax.f32 %v803, %v892
        %v981 = vmax.f32 %v804, %v895
        %v982 = vmax.f32 %v805, %v897
        %v983 = vmax.f32 %v806, %v900
        %v984 = vmax.f32 %v807, %v902
        %v985 = vmax.f32 %v808, %v905
        %v986 = vmax.f32 %v809, %v907
        %v987 = vmax.f32 %v810, %v910
        %v988 = vmax.f32 %v811, %v912
        %v989 = vmax.f32 %v812, %v915
        %v990 = vmax.f32 %v813, %v917
        %v991 = vmax.f32 %v814, %v920
        %v992 = vmax.f32 %v815, %v922
        %v993 = vmax.f32 %v816, %v925
        %v994 = vmax.f32 %v817, %v927
        %v995 = vmax.f32 %v818, %v930
        %v996 = vmax.f32 %v819, %v932
        %v997 = vadd.f32 %v820, %v855
        %v998 = vadd.f32 %v821, %v857
        %v999 = vadd.f32 %v822, %v860
        %v1000 = vadd.f32 %v823, %v862
        %v1001 = vadd.f32 %v824, %v865
        %v1002 = vadd.f32 %v825, %v867
        %v1003 = vadd.f32 %v826, %v870
        %v1004 = vadd.f32 %v827, %v872
        %v1005 = vadd.f32 %v828, %v875
        %v1006 = vadd.f32 %v829, %v877
        %v1007 = vadd.f32 %v830, %v880
        %v1008 = vadd.f32 %v831, %v882
        %v1009 = vadd.f32 %v832, %v885
        %v1010 = vadd.f32 %v833, %v887
        %v1011 = vadd.f32 %v834, %v890
        %v1012 = vadd.f32 %v835, %v892
        %v1013 = vadd.f32 %v836, %v895
        %v1014 = vadd.f32 %v837, %v897
        %v1015 = vadd.f32 %v838, %v900
        %v1016 = vadd.f32 %v839, %v902
        %v1017 = vadd.f32 %v840, %v905
        %v1018 = vadd.f32 %v841, %v907
        %v1019 = vadd.f32 %v842, %v910
        %v1020 = vadd.f32 %v843, %v912
        %v1021 = vadd.f32 %v844, %v915
        %v1022 = vadd.f32 %v845, %v917
        %v1023 = vadd.f32 %v846, %v920
        %v1024 = vadd.f32 %v847, %v922
        %v1025 = vadd.f32 %v848, %v925
        %v1026 = vadd.f32 %v849, %v927
        %v1027 = vadd.f32 %v850, %v930
        %v1028 = vadd.f32 %v851, %v932
        %vm1029 = vcmask 1043456
        %v1030 = vrot.slane %v417, 4
        %v1031 = vrot.slane %v242, 4
        %v1032 = vsel %vm1029, %v1030, %v1031
        %v1033 = vrot.slane %v450, 4
        %v1034 = vsel %vm1029, %v1031, %v1033
        %v1035 = vrot.slane %v418, 4
        %v1036 = vrot.slane %v245, 4
        %v1037 = vsel %vm1029, %v1035, %v1036
        %v1038 = vrot.slane %v451, 4
        %v1039 = vsel %vm1029, %v1036, %v1038
        %v1040 = vrot.slane %v419, 4
        %v1041 = vrot.slane %v248, 4
        %v1042 = vsel %vm1029, %v1040, %v1041
        %v1043 = vrot.slane %v452, 4
        %v1044 = vsel %vm1029, %v1041, %v1043
        %v1045 = vrot.slane %v420, 4
        %v1046 = vrot.slane %v251, 4
        %v1047 = vsel %vm1029, %v1045, %v1046
        %v1048 = vrot.slane %v453, 4
        %v1049 = vsel %vm1029, %v1046, %v1048
        %v1050 = vrot.slane %v421, 4
        %v1051 = vrot.slane %v254, 4
        %v1052 = vsel %vm1029, %v1050, %v1051
        %v1053 = vrot.slane %v454, 4
        %v1054 = vsel %vm1029, %v1051, %v1053
        %v1055 = vrot.slane %v422, 4
        %v1056 = vrot.slane %v257, 4
        %v1057 = vsel %vm1029, %v1055, %v1056
        %v1058 = vrot.slane %v455, 4
        %v1059 = vsel %vm1029, %v1056, %v1058
        %v1060 = vrot.slane %v423, 4
        %v1061 = vrot.slane %v260, 4
        %v1062 = vsel %vm1029, %v1060, %v1061
        %v1063 = vrot.slane %v456, 4
        %v1064 = vsel %vm1029, %v1061, %v1063
        %v1065 = vrot.slane %v424, 4
        %v1066 = vrot.slane %v263, 4
        %v1067 = vsel %vm1029, %v1065, %v1066
        %v1068 = vrot.slane %v457, 4
        %v1069 = vsel %vm1029, %v1066, %v1068
        %v1070 = vrot.slane %v425, 4
        %v1071 = vrot.slane %v266, 4
        %v1072 = vsel %vm1029, %v1070, %v1071
        %v1073 = vrot.slane %v458, 4
        %v1074 = vsel %vm1029, %v1071, %v1073
        %v1075 = vrot.slane %v426, 4
        %v1076 = vrot.slane %v269, 4
        %v1077 = vsel %vm1029, %v1075, %v1076
        %v1078 = vrot.slane %v459, 4
        %v1079 = vsel %vm1029, %v1076, %v1078
        %v1080 = vrot.slane %v427, 4
        %v1081 = vrot.slane %v272, 4
        %v1082 = vsel %vm1029, %v1080, %v1081
        %v1083 = vrot.slane %v460, 4
        %v1084 = vsel %vm1029, %v1081, %v1083
        %v1085 = vrot.slane %v428, 4
        %v1086 = vrot.slane %v275, 4
        %v1087 = vsel %vm1029, %v1085, %v1086
        %v1088 = vrot.slane %v461, 4
        %v1089 = vsel %vm1029, %v1086, %v1088
        %v1090 = vrot.slane %v429, 4
        %v1091 = vrot.slane %v278, 4
        %v1092 = vsel %vm1029, %v1090, %v1091
        %v1093 = vrot.slane %v462, 4
        %v1094 = vsel %vm1029, %v1091, %v1093
        %v1095 = vrot.slane %v430, 4
        %v1096 = vrot.slane %v281, 4
        %v1097 = vsel %vm1029, %v1095, %v1096
        %v1098 = vrot.slane %v463, 4
        %v1099 = vsel %vm1029, %v1096, %v1098
        %v1100 = vrot.slane %v431, 4
        %v1101 = vrot.slane %v284, 4
        %v1102 = vsel %vm1029, %v1100, %v1101
        %v1103 = vrot.slane %v464, 4
        %v1104 = vsel %vm1029, %v1101, %v1103
        %v1105 = vrot.slane %v432, 4
        %v1106 = vrot.slane %v287, 4
        %v1107 = vsel %vm1029, %v1105, %v1106
        %v1108 = vrot.slane %v465, 4
        %v1109 = vsel %vm1029, %v1106, %v1108
        %v1142 = vmax.f32 %v965, %v1032
        %v1143 = vmax.f32 %v966, %v1034
        %v1144 = vmax.f32 %v967, %v1037
        %v1145 = vmax.f32 %v968, %v1039
        %v1146 = vmax.f32 %v969, %v1042
        %v1147 = vmax.f32 %v970, %v1044
        %v1148 = vmax.f32 %v971, %v1047
        %v1149 = vmax.f32 %v972, %v1049
        %v1150 = vmax.f32 %v973, %v1052
        %v1151 = vmax.f32 %v974, %v1054
        %v1152 = vmax.f32 %v975, %v1057
        %v1153 = vmax.f32 %v976, %v1059
        %v1154 = vmax.f32 %v977, %v1062
        %v1155 = vmax.f32 %v978, %v1064
        %v1156 = vmax.f32 %v979, %v1067
        %v1157 = vmax.f32 %v980, %v1069
        %v1158 = vmax.f32 %v981, %v1072
        %v1159 = vmax.f32 %v982, %v1074
        %v1160 = vmax.f32 %v983, %v1077
        %v1161 = vmax.f32 %v984, %v1079
        %v1162 = vmax.f32 %v985, %v1082
        %v1163 = vmax.f32 %v986, %v1084
        %v1164 = vmax.f32 %v987, %v1087
        %v1165 = vmax.f32 %v988, %v1089
        %v1166 = vmax.f32 %v989, %v1092
        %v1167 = vmax.f32 %v990, %v1094
        %v1168 = vmax.f32 %v991, %v1097
        %v1169 = vmax.f32 %v992, %v1099
        %v1170 = vmax.f32 %v993, %v1102
        %v1171 = vmax.f32 %v994, %v1104
        %v1172 = vmax.f32 %v995, %v1107
        %v1173 = vmax.f32 %v996, %v1109
        %v1174 = vadd.f32 %v997, %v1032
        %v1175 = vadd.f32 %v998, %v1034
        %v1176 = vadd.f32 %v999, %v1037
        %v1177 = vadd.f32 %v1000, %v1039
        %v1178 = vadd.f32 %v1001, %v1042
        %v1179 = vadd.f32 %v1002, %v1044
        %v1180 = vadd.f32 %v1003, %v1047
        %v1181 = vadd.f32 %v1004, %v1049
        %v1182 = vadd.f32 %v1005, %v1052
        %v1183 = vadd.f32 %v1006, %v1054
        %v1184 = vadd.f32 %v1007, %v1057
        %v1185 = vadd.f32 %v1008, %v1059
        %v1186 = vadd.f32 %v1009, %v1062
        %v1187 = vadd.f32 %v1010, %v1064
        %v1188 = vadd.f32 %v1011, %v1067
        %v1189 = vadd.f32 %v1012, %v1069
        %v1190 = vadd.f32 %v1013, %v1072
        %v1191 = vadd.f32 %v1014, %v1074
        %v1192 = vadd.f32 %v1015, %v1077
        %v1193 = vadd.f32 %v1016, %v1079
        %v1194 = vadd.f32 %v1017, %v1082
        %v1195 = vadd.f32 %v1018, %v1084
        %v1196 = vadd.f32 %v1019, %v1087
        %v1197 = vadd.f32 %v1020, %v1089
        %v1198 = vadd.f32 %v1021, %v1092
        %v1199 = vadd.f32 %v1022, %v1094
        %v1200 = vadd.f32 %v1023, %v1097
        %v1201 = vadd.f32 %v1024, %v1099
        %v1202 = vadd.f32 %v1025, %v1102
        %v1203 = vadd.f32 %v1026, %v1104
        %v1204 = vadd.f32 %v1027, %v1107
        %v1205 = vadd.f32 %v1028, %v1109
        %v1206 = vmax.f32 %v1142, %v1144
        %v1207 = vmax.f32 %v1143, %v1145
        %v1208 = vmax.f32 %v1144, %v1146
        %v1209 = vmax.f32 %v1145, %v1147
        %v1210 = vmax.f32 %v1142, %v1148
        %v1211 = vmax.f32 %v1143, %v1149
        %v1212 = vmax.f32 %v1148, %v1150
        %v1213 = vmax.f32 %v1149, %v1151
        %v1214 = vmax.f32 %v1150, %v1152
        %v1215 = vmax.f32 %v1151, %v1153
        %v1216 = vmax.f32 %v1152, %v1154
        %v1217 = vmax.f32 %v1153, %v1155
        %v1218 = vmax.f32 %v1154, %v1156
        %v1219 = vmax.f32 %v1155, %v1157
        %v1220 = vmax.f32 %v1156, %v1158
        %v1221 = vmax.f32 %v1157, %v1159
        %v1222 = vmax.f32 %v1158, %v1160
        %v1223 = vmax.f32 %v1159, %v1161
        %v1224 = vmax.f32 %v1160, %v1162
        %v1225 = vmax.f32 %v1161, %v1163
        %v1226 = vmax.f32 %v1162, %v1164
        %v1227 = vmax.f32 %v1163, %v1165
        %v1228 = vmax.f32 %v1164, %v1166
        %v1229 = vmax.f32 %v1165, %v1167
        %v1230 = vmax.f32 %v1166, %v1168
        %v1231 = vmax.f32 %v1167, %v1169
        %v1232 = vmax.f32 %v1168, %v1170
        %v1233 = vmax.f32 %v1169, %v1171
        %v1234 = vadd.f32 %v1174, %v1176
        %v1235 = vadd.f32 %v1175, %v1177
        %v1236 = vadd.f32 %v1176, %v1178
        %v1237 = vadd.f32 %v1177, %v1179
        %v1238 = vadd.f32 %v1174, %v1180
        %v1239 = vadd.f32 %v1175, %v1181
        %v1240 = vadd.f32 %v1180, %v1182
        %v1241 = vadd.f32 %v1181, %v1183
        %v1242 = vadd.f32 %v1182, %v1184
        %v1243 = vadd.f32 %v1183, %v1185
        %v1244 = vadd.f32 %v1184, %v1186
        %v1245 = vadd.f32 %v1185, %v1187
        %v1246 = vadd.f32 %v1186, %v1188
        %v1247 = vadd.f32 %v1187, %v1189
        %v1248 = vadd.f32 %v1188, %v1190
        %v1249 = vadd.f32 %v1189, %v1191
        %v1250 = vadd.f32 %v1190, %v1192
        %v1251 = vadd.f32 %v1191, %v1193
        %v1252 = vadd.f32 %v1192, %v1194
        %v1253 = vadd.f32 %v1193, %v1195
        %v1254 = vadd.f32 %v1194, %v1196
        %v1255 = vadd.f32 %v1195, %v1197
        %v1256 = vadd.f32 %v1196, %v1198
        %v1257 = vadd.f32 %v1197, %v1199
        %v1258 = vadd.f32 %v1198, %v1200
        %v1259 = vadd.f32 %v1199, %v1201
        %v1260 = vadd.f32 %v1200, %v1202
        %v1261 = vadd.f32 %v1201, %v1203
        %v1262 = vmax.f32 %v1206, %v1146
        %v1263 = vmax.f32 %v1207, %v1147
        %v1264 = vmax.f32 %v1208, %v1144
        %v1265 = vmax.f32 %v1209, %v1145
        %v1266 = vmax.f32 %v1208, %v1142
        %v1267 = vmax.f32 %v1209, %v1143
        %v1268 = vmax.f32 %v1206, %v1148
        %v1269 = vmax.f32 %v1207, %v1149
        %v1270 = vmax.f32 %v1210, %v1150
        %v1271 = vmax.f32 %v1211, %v1151
        %v1272 = vmax.f32 %v1212, %v1152
        %v1273 = vmax.f32 %v1213, %v1153
        %v1274 = vmax.f32 %v1214, %v1154
        %v1275 = vmax.f32 %v1215, %v1155
        %v1276 = vmax.f32 %v1216, %v1156
        %v1277 = vmax.f32 %v1217, %v1157
        %v1278 = vmax.f32 %v1218, %v1158
        %v1279 = vmax.f32 %v1219, %v1159
        %v1280 = vmax.f32 %v1220, %v1160
        %v1281 = vmax.f32 %v1221, %v1161
        %v1282 = vmax.f32 %v1222, %v1162
        %v1283 = vmax.f32 %v1223, %v1163
        %v1284 = vmax.f32 %v1224, %v1164
        %v1285 = vmax.f32 %v1225, %v1165
        %v1286 = vmax.f32 %v1226, %v1166
        %v1287 = vmax.f32 %v1227, %v1167
        %v1288 = vmax.f32 %v1228, %v1168
        %v1289 = vmax.f32 %v1229, %v1169
        %v1290 = vmax.f32 %v1230, %v1170
        %v1291 = vmax.f32 %v1231, %v1171
        %v1292 = vmax.f32 %v1232, %v1172
        %v1293 = vmax.f32 %v1233, %v1173
        %v1294 = vadd.f32 %v1234, %v1178
        %v1295 = vadd.f32 %v1235, %v1179
        %v1296 = vadd.f32 %v1236, %v1176
        %v1297 = vadd.f32 %v1237, %v1177
        %v1298 = vadd.f32 %v1236, %v1174
        %v1299 = vadd.f32 %v1237, %v1175
        %v1300 = vadd.f32 %v1234, %v1180
        %v1301 = vadd.f32 %v1235, %v1181
        %v1302 = vadd.f32 %v1238, %v1182
        %v1303 = vadd.f32 %v1239, %v1183
        %v1304 = vadd.f32 %v1240, %v1184
        %v1305 = vadd.f32 %v1241, %v1185
        %v1306 = vadd.f32 %v1242, %v1186
        %v1307 = vadd.f32 %v1243, %v1187
        %v1308 = vadd.f32 %v1244, %v1188
        %v1309 = vadd.f32 %v1245, %v1189
        %v1310 = vadd.f32 %v1246, %v1190
        %v1311 = vadd.f32 %v1247, %v1191
        %v1312 = vadd.f32 %v1248, %v1192
        %v1313 = vadd.f32 %v1249, %v1193
        %v1314 = vadd.f32 %v1250, %v1194
        %v1315 = vadd.f32 %v1251, %v1195
        %v1316 = vadd.f32 %v1252, %v1196
        %v1317 = vadd.f32 %v1253, %v1197
        %v1318 = vadd.f32 %v1254, %v1198
        %v1319 = vadd.f32 %v1255, %v1199
        %v1320 = vadd.f32 %v1256, %v1200
        %v1321 = vadd.f32 %v1257, %v1201
        %v1322 = vadd.f32 %v1258, %v1202
        %v1323 = vadd.f32 %v1259, %v1203
        %v1324 = vadd.f32 %v1260, %v1204
        %v1325 = vadd.f32 %v1261, %v1205
        %v1326 = vmax.f32 %v1262, %v1144
        %v1327 = vmax.f32 %v1263, %v1145
        %v1328 = vmax.f32 %v1264, %v1142
        %v1329 = vmax.f32 %v1265, %v1143
        %v1330 = vmax.f32 %v1266, %v1148
        %v1331 = vmax.f32 %v1267, %v1149
        %v1332 = vmax.f32 %v1268, %v1150
        %v1333 = vmax.f32 %v1269, %v1151
        %v1334 = vmax.f32 %v1270, %v1152
        %v1335 = vmax.f32 %v1271, %v1153
        %v1336 = vmax.f32 %v1272, %v1154
        %v1337 = vmax.f32 %v1273, %v1155
        %v1338 = vmax.f32 %v1274, %v1156
        %v1339 = vmax.f32 %v1275, %v1157
        %v1340 = vmax.f32 %v1276, %v1158
        %v1341 = vmax.f32 %v1277, %v1159
        %v1342 = vmax.f32 %v1278, %v1160
        %v1343 = vmax.f32 %v1279, %v1161
        %v1344 = vmax.f32 %v1280, %v1162
        %v1345 = vmax.f32 %v1281, %v1163
        %v1346 = vmax.f32 %v1282, %v1164
        %v1347 = vmax.f32 %v1283, %v1165
        %v1348 = vmax.f32 %v1284, %v1166
        %v1349 = vmax.f32 %v1285, %v1167
        %v1350 = vmax.f32 %v1286, %v1168
        %v1351 = vmax.f32 %v1287, %v1169
        %v1352 = vmax.f32 %v1288, %v1170
        %v1353 = vmax.f32 %v1289, %v1171
        %v1354 = vmax.f32 %v1290, %v1172
        %v1355 = vmax.f32 %v1291, %v1173
        %v1356 = vmax.f32 %v1292, %v1170
        %v1357 = vmax.f32 %v1293, %v1171
        %v1358 = vadd.f32 %v1294, %v1176
        %v1359 = vadd.f32 %v1295, %v1177
        %v1360 = vadd.f32 %v1296, %v1174
        %v1361 = vadd.f32 %v1297, %v1175
        %v1362 = vadd.f32 %v1298, %v1180
        %v1363 = vadd.f32 %v1299, %v1181
        %v1364 = vadd.f32 %v1300, %v1182
        %v1365 = vadd.f32 %v1301, %v1183
        %v1366 = vadd.f32 %v1302, %v1184
        %v1367 = vadd.f32 %v1303, %v1185
        %v1368 = vadd.f32 %v1304, %v1186
        %v1369 = vadd.f32 %v1305, %v1187
        %v1370 = vadd.f32 %v1306, %v1188
        %v1371 = vadd.f32 %v1307, %v1189
        %v1372 = vadd.f32 %v1308, %v1190
        %v1373 = vadd.f32 %v1309, %v1191
        %v1374 = vadd.f32 %v1310, %v1192
        %v1375 = vadd.f32 %v1311, %v1193
        %v1376 = vadd.f32 %v1312, %v1194
        %v1377 = vadd.f32 %v1313, %v1195
        %v1378 = vadd.f32 %v1314, %v1196
        %v1379 = vadd.f32 %v1315, %v1197
        %v1380 = vadd.f32 %v1316, %v1198
        %v1381 = vadd.f32 %v1317, %v1199
        %v1382 = vadd.f32 %v1318, %v1200
        %v1383 = vadd.f32 %v1319, %v1201
        %v1384 = vadd.f32 %v1320, %v1202
        %v1385 = vadd.f32 %v1321, %v1203
        %v1386 = vadd.f32 %v1322, %v1204
        %v1387 = vadd.f32 %v1323, %v1205
        %v1388 = vadd.f32 %v1324, %v1202
        %v1389 = vadd.f32 %v1325, %v1203
        %v1390 = vmax.f32 %v1326, %v1142
        %v1391 = vmax.f32 %v1327, %v1143
        %v1392 = vmax.f32 %v1328, %v1148
        %v1393 = vmax.f32 %v1329, %v1149
        %v1394 = vmax.f32 %v1330, %v1150
        %v1395 = vmax.f32 %v1331, %v1151
        %v1396 = vmax.f32 %v1332, %v1152
        %v1397 = vmax.f32 %v1333, %v1153
        %v1398 = vmax.f32 %v1334, %v1154
        %v1399 = vmax.f32 %v1335, %v1155
        %v1400 = vmax.f32 %v1336, %v1156
        %v1401 = vmax.f32 %v1337, %v1157
        %v1402 = vmax.f32 %v1338, %v1158
        %v1403 = vmax.f32 %v1339, %v1159
        %v1404 = vmax.f32 %v1340, %v1160
        %v1405 = vmax.f32 %v1341, %v1161
        %v1406 = vmax.f32 %v1342, %v1162
        %v1407 = vmax.f32 %v1343, %v1163
        %v1408 = vmax.f32 %v1344, %v1164
        %v1409 = vmax.f32 %v1345, %v1165
        %v1410 = vmax.f32 %v1346, %v1166
        %v1411 = vmax.f32 %v1347, %v1167
        %v1412 = vmax.f32 %v1348, %v1168
        %v1413 = vmax.f32 %v1349, %v1169
        %v1414 = vmax.f32 %v1350, %v1170
        %v1415 = vmax.f32 %v1351, %v1171
        %v1416 = vmax.f32 %v1352, %v1172
        %v1417 = vmax.f32 %v1353, %v1173
        %v1418 = vmax.f32 %v1354, %v1170
        %v1419 = vmax.f32 %v1355, %v1171
        %v1420 = vmax.f32 %v1356, %v1168
        %v1421 = vmax.f32 %v1357, %v1169
        %v1422 = vadd.f32 %v1358, %v1174
        %v1423 = vadd.f32 %v1359, %v1175
        %v1424 = vadd.f32 %v1360, %v1180
        %v1425 = vadd.f32 %v1361, %v1181
        %v1426 = vadd.f32 %v1362, %v1182
        %v1427 = vadd.f32 %v1363, %v1183
        %v1428 = vadd.f32 %v1364, %v1184
        %v1429 = vadd.f32 %v1365, %v1185
        %v1430 = vadd.f32 %v1366, %v1186
        %v1431 = vadd.f32 %v1367, %v1187
        %v1432 = vadd.f32 %v1368, %v1188
        %v1433 = vadd.f32 %v1369, %v1189
        %v1434 = vadd.f32 %v1370, %v1190
        %v1435 = vadd.f32 %v1371, %v1191
        %v1436 = vadd.f32 %v1372, %v1192
        %v1437 = vadd.f32 %v1373, %v1193
        %v1438 = vadd.f32 %v1374, %v1194
        %v1439 = vadd.f32 %v1375, %v1195
        %v1440 = vadd.f32 %v1376, %v1196
        %v1441 = vadd.f32 %v1377, %v1197
        %v1442 = vadd.f32 %v1378, %v1198
        %v1443 = vadd.f32 %v1379, %v1199
        %v1444 = vadd.f32 %v1380, %v1200
        %v1445 = vadd.f32 %v1381, %v1201
        %v1446 = vadd.f32 %v1382, %v1202
        %v1447 = vadd.f32 %v1383, %v1203
        %v1448 = vadd.f32 %v1384, %v1204
        %v1449 = vadd.f32 %v1385, %v1205
        %v1450 = vadd.f32 %v1386, %v1202
        %v1451 = vadd.f32 %v1387, %v1203
        %v1452 = vadd.f32 %v1388, %v1200
        %v1453 = vadd.f32 %v1389, %v1201
        %v1454 = vmul.f32 %v1422, 0.04
        %v1455 = vmul.f32 %v1423, 0.04
        %v1456 = vmul.f32 %v1424, 0.04
        %v1457 = vmul.f32 %v1425, 0.04
        %v1458 = vmul.f32 %v1426, 0.04
        %v1459 = vmul.f32 %v1427, 0.04
        %v1460 = vmul.f32 %v1428, 0.04
        %v1461 = vmul.f32 %v1429, 0.04
        %v1462 = vmul.f32 %v1430, 0.04
        %v1463 = vmul.f32 %v1431, 0.04
        %v1464 = vmul.f32 %v1432, 0.04
        %v1465 = vmul.f32 %v1433, 0.04
        %v1466 = vmul.f32 %v1434, 0.04
        %v1467 = vmul.f32 %v1435, 0.04
        %v1468 = vmul.f32 %v1436, 0.04
        %v1469 = vmul.f32 %v1437, 0.04
        %v1470 = vmul.f32 %v1438, 0.04
        %v1471 = vmul.f32 %v1439, 0.04
        %v1472 = vmul.f32 %v1440, 0.04
        %v1473 = vmul.f32 %v1441, 0.04
        %v1474 = vmul.f32 %v1442, 0.04
        %v1475 = vmul.f32 %v1443, 0.04
        %v1476 = vmul.f32 %v1444, 0.04
        %v1477 = vmul.f32 %v1445, 0.04
        %v1478 = vmul.f32 %v1446, 0.04
        %v1479 = vmul.f32 %v1447, 0.04
        %v1480 = vmul.f32 %v1448, 0.04
        %v1481 = vmul.f32 %v1449, 0.04
        %v1482 = vmul.f32 %v1450, 0.04
        %v1483 = vmul.f32 %v1451, 0.04
        %v1484 = vmul.f32 %v1452, 0.04
        %v1485 = vmul.f32 %v1453, 0.04
        %v1486 = vsub.f32 %v143, %v1454
        %v1487 = vsub.f32 %v144, %v1455
        %v1488 = vsub.f32 %v145, %v1456
        %v1489 = vsub.f32 %v146, %v1457
        %v1490 = vsub.f32 %v147, %v1458
        %v1491 = vsub.f32 %v148, %v1459
        %v1492 = vsub.f32 %v149, %v1460
        %v1493 = vsub.f32 %v150, %v1461
        %v1494 = vsub.f32 %v151, %v1462
        %v1495 = vsub.f32 %v152, %v1463
        %v1496 = vsub.f32 %v153, %v1464
        %v1497 = vsub.f32 %v154, %v1465
        %v1498 = vsub.f32 %v155, %v1466
        %v1499 = vsub.f32 %v156, %v1467
        %v1500 = vsub.f32 %v157, %v1468
        %v1501 = vsub.f32 %v158, %v1469
        %v1502 = vsub.f32 %v159, %v1470
        %v1503 = vsub.f32 %v160, %v1471
        %v1504 = vsub.f32 %v161, %v1472
        %v1505 = vsub.f32 %v162, %v1473
        %v1506 = vsub.f32 %v163, %v1474
        %v1507 = vsub.f32 %v164, %v1475
        %v1508 = vsub.f32 %v165, %v1476
        %v1509 = vsub.f32 %v166, %v1477
        %v1510 = vsub.f32 %v167, %v1478
        %v1511 = vsub.f32 %v168, %v1479
        %v1512 = vsub.f32 %v169, %v1480
        %v1513 = vsub.f32 %v170, %v1481
        %v1514 = vsub.f32 %v171, %v1482
        %v1515 = vsub.f32 %v172, %v1483
        %v1516 = vsub.f32 %v173, %v1484
        %v1517 = vsub.f32 %v174, %v1485
        %v1518 = vmul.f32 %v1486, %v1486
        %v1519 = vmul.f32 %v1487, %v1487
        %v1520 = vmul.f32 %v1488, %v1488
        %v1521 = vmul.f32 %v1489, %v1489
        %v1522 = vmul.f32 %v1490, %v1490
        %v1523 = vmul.f32 %v1491, %v1491
        %v1524 = vmul.f32 %v1492, %v1492
        %v1525 = vmul.f32 %v1493, %v1493
        %v1526 = vmul.f32 %v1494, %v1494
        %v1527 = vmul.f32 %v1495, %v1495
        %v1528 = vmul.f32 %v1496, %v1496
        %v1529 = vmul.f32 %v1497, %v1497
        %v1530 = vmul.f32 %v1498, %v1498
        %v1531 = vmul.f32 %v1499, %v1499
        %v1532 = vmul.f32 %v1500, %v1500
        %v1533 = vmul.f32 %v1501, %v1501
        %v1534 = vmul.f32 %v1502, %v1502
        %v1535 = vmul.f32 %v1503, %v1503
        %v1536 = vmul.f32 %v1504, %v1504
        %v1537 = vmul.f32 %v1505, %v1505
        %v1538 = vmul.f32 %v1506, %v1506
        %v1539 = vmul.f32 %v1507, %v1507
        %v1540 = vmul.f32 %v1508, %v1508
        %v1541 = vmul.f32 %v1509, %v1509
        %v1542 = vmul.f32 %v1510, %v1510
        %v1543 = vmul.f32 %v1511, %v1511
        %v1544 = vmul.f32 %v1512, %v1512
        %v1545 = vmul.f32 %v1513, %v1513
        %v1546 = vmul.f32 %v1514, %v1514
        %v1547 = vmul.f32 %v1515, %v1515
        %v1548 = vmul.f32 %v1516, %v1516
        %v1549 = vmul.f32 %v1517, %v1517
        %v1550 = vadd.f32 %v1518, 1e-07
        %v1551 = vadd.f32 %v1519, 1e-07
        %v1552 = vadd.f32 %v1520, 1e-07
        %v1553 = vadd.f32 %v1521, 1e-07
        %v1554 = vadd.f32 %v1522, 1e-07
        %v1555 = vadd.f32 %v1523, 1e-07
        %v1556 = vadd.f32 %v1524, 1e-07
        %v1557 = vadd.f32 %v1525, 1e-07
        %v1558 = vadd.f32 %v1526, 1e-07
        %v1559 = vadd.f32 %v1527, 1e-07
        %v1560 = vadd.f32 %v1528, 1e-07
        %v1561 = vadd.f32 %v1529, 1e-07
        %v1562 = vadd.f32 %v1530, 1e-07
        %v1563 = vadd.f32 %v1531, 1e-07
        %v1564 = vadd.f32 %v1532, 1e-07
        %v1565 = vadd.f32 %v1533, 1e-07
        %v1566 = vadd.f32 %v1534, 1e-07
        %v1567 = vadd.f32 %v1535, 1e-07
        %v1568 = vadd.f32 %v1536, 1e-07
        %v1569 = vadd.f32 %v1537, 1e-07
        %v1570 = vadd.f32 %v1538, 1e-07
        %v1571 = vadd.f32 %v1539, 1e-07
        %v1572 = vadd.f32 %v1540, 1e-07
        %v1573 = vadd.f32 %v1541, 1e-07
        %v1574 = vadd.f32 %v1542, 1e-07
        %v1575 = vadd.f32 %v1543, 1e-07
        %v1576 = vadd.f32 %v1544, 1e-07
        %v1577 = vadd.f32 %v1545, 1e-07
        %v1578 = vadd.f32 %v1546, 1e-07
        %v1579 = vadd.f32 %v1547, 1e-07
        %v1580 = vadd.f32 %v1548, 1e-07
        %v1581 = vadd.f32 %v1549, 1e-07
        %v1582 = vrsqrt.pop %v1550
        %v1583 = vmul.f32 %v1550, %v1582
        %vm1584 = vcmp.eq.f32.partialorder %v1550, inf
        %v1585 = vsel %vm1584, %v1550, %v1583
        %vm1586 = vcmp.eq.f32.partialorder %v1550, 0.0
        %v1587 = vand.u32 %v1550, 2147483648
        %v1588 = vsel %vm1586, %v1587, %v1585
        %v1589 = vrsqrt.pop %v1551
        %v1590 = vmul.f32 %v1551, %v1589
        %vm1591 = vcmp.eq.f32.partialorder %v1551, inf
        %v1592 = vsel %vm1591, %v1551, %v1590
        %vm1593 = vcmp.eq.f32.partialorder %v1551, 0.0
        %v1594 = vand.u32 %v1551, 2147483648
        %v1595 = vsel %vm1593, %v1594, %v1592
        %v1596 = vrsqrt.pop %v1552
        %v1597 = vmul.f32 %v1552, %v1596
        %vm1598 = vcmp.eq.f32.partialorder %v1552, inf
        %v1599 = vsel %vm1598, %v1552, %v1597
        %vm1600 = vcmp.eq.f32.partialorder %v1552, 0.0
        %v1601 = vand.u32 %v1552, 2147483648
        %v1602 = vsel %vm1600, %v1601, %v1599
        %v1603 = vrsqrt.pop %v1553
        %v1604 = vmul.f32 %v1553, %v1603
        %vm1605 = vcmp.eq.f32.partialorder %v1553, inf
        %v1606 = vsel %vm1605, %v1553, %v1604
        %vm1607 = vcmp.eq.f32.partialorder %v1553, 0.0
        %v1608 = vand.u32 %v1553, 2147483648
        %v1609 = vsel %vm1607, %v1608, %v1606
        %v1610 = vrsqrt.pop %v1554
        %v1611 = vmul.f32 %v1554, %v1610
        %vm1612 = vcmp.eq.f32.partialorder %v1554, inf
        %v1613 = vsel %vm1612, %v1554, %v1611
        %vm1614 = vcmp.eq.f32.partialorder %v1554, 0.0
        %v1615 = vand.u32 %v1554, 2147483648
        %v1616 = vsel %vm1614, %v1615, %v1613
        %v1617 = vrsqrt.pop %v1555
        %v1618 = vmul.f32 %v1555, %v1617
        %vm1619 = vcmp.eq.f32.partialorder %v1555, inf
        %v1620 = vsel %vm1619, %v1555, %v1618
        %vm1621 = vcmp.eq.f32.partialorder %v1555, 0.0
        %v1622 = vand.u32 %v1555, 2147483648
        %v1623 = vsel %vm1621, %v1622, %v1620
        %v1624 = vrsqrt.pop %v1556
        %v1625 = vmul.f32 %v1556, %v1624
        %vm1626 = vcmp.eq.f32.partialorder %v1556, inf
        %v1627 = vsel %vm1626, %v1556, %v1625
        %vm1628 = vcmp.eq.f32.partialorder %v1556, 0.0
        %v1629 = vand.u32 %v1556, 2147483648
        %v1630 = vsel %vm1628, %v1629, %v1627
        %v1631 = vrsqrt.pop %v1557
        %v1632 = vmul.f32 %v1557, %v1631
        %vm1633 = vcmp.eq.f32.partialorder %v1557, inf
        %v1634 = vsel %vm1633, %v1557, %v1632
        %vm1635 = vcmp.eq.f32.partialorder %v1557, 0.0
        %v1636 = vand.u32 %v1557, 2147483648
        %v1637 = vsel %vm1635, %v1636, %v1634
        %v1638 = vrsqrt.pop %v1558
        %v1639 = vmul.f32 %v1558, %v1638
        %vm1640 = vcmp.eq.f32.partialorder %v1558, inf
        %v1641 = vsel %vm1640, %v1558, %v1639
        %vm1642 = vcmp.eq.f32.partialorder %v1558, 0.0
        %v1643 = vand.u32 %v1558, 2147483648
        %v1644 = vsel %vm1642, %v1643, %v1641
        %v1645 = vrsqrt.pop %v1559
        %v1646 = vmul.f32 %v1559, %v1645
        %vm1647 = vcmp.eq.f32.partialorder %v1559, inf
        %v1648 = vsel %vm1647, %v1559, %v1646
        %vm1649 = vcmp.eq.f32.partialorder %v1559, 0.0
        %v1650 = vand.u32 %v1559, 2147483648
        %v1651 = vsel %vm1649, %v1650, %v1648
        %v1652 = vrsqrt.pop %v1560
        %v1653 = vmul.f32 %v1560, %v1652
        %vm1654 = vcmp.eq.f32.partialorder %v1560, inf
        %v1655 = vsel %vm1654, %v1560, %v1653
        %vm1656 = vcmp.eq.f32.partialorder %v1560, 0.0
        %v1657 = vand.u32 %v1560, 2147483648
        %v1658 = vsel %vm1656, %v1657, %v1655
        %v1659 = vrsqrt.pop %v1561
        %v1660 = vmul.f32 %v1561, %v1659
        %vm1661 = vcmp.eq.f32.partialorder %v1561, inf
        %v1662 = vsel %vm1661, %v1561, %v1660
        %vm1663 = vcmp.eq.f32.partialorder %v1561, 0.0
        %v1664 = vand.u32 %v1561, 2147483648
        %v1665 = vsel %vm1663, %v1664, %v1662
        %v1666 = vrsqrt.pop %v1562
        %v1667 = vmul.f32 %v1562, %v1666
        %vm1668 = vcmp.eq.f32.partialorder %v1562, inf
        %v1669 = vsel %vm1668, %v1562, %v1667
        %vm1670 = vcmp.eq.f32.partialorder %v1562, 0.0
        %v1671 = vand.u32 %v1562, 2147483648
        %v1672 = vsel %vm1670, %v1671, %v1669
        %v1673 = vrsqrt.pop %v1563
        %v1674 = vmul.f32 %v1563, %v1673
        %vm1675 = vcmp.eq.f32.partialorder %v1563, inf
        %v1676 = vsel %vm1675, %v1563, %v1674
        %vm1677 = vcmp.eq.f32.partialorder %v1563, 0.0
        %v1678 = vand.u32 %v1563, 2147483648
        %v1679 = vsel %vm1677, %v1678, %v1676
        %v1680 = vrsqrt.pop %v1564
        %v1681 = vmul.f32 %v1564, %v1680
        %vm1682 = vcmp.eq.f32.partialorder %v1564, inf
        %v1683 = vsel %vm1682, %v1564, %v1681
        %vm1684 = vcmp.eq.f32.partialorder %v1564, 0.0
        %v1685 = vand.u32 %v1564, 2147483648
        %v1686 = vsel %vm1684, %v1685, %v1683
        %v1687 = vrsqrt.pop %v1565
        %v1688 = vmul.f32 %v1565, %v1687
        %vm1689 = vcmp.eq.f32.partialorder %v1565, inf
        %v1690 = vsel %vm1689, %v1565, %v1688
        %vm1691 = vcmp.eq.f32.partialorder %v1565, 0.0
        %v1692 = vand.u32 %v1565, 2147483648
        %v1693 = vsel %vm1691, %v1692, %v1690
        %v1694 = vrsqrt.pop %v1566
        %v1695 = vmul.f32 %v1566, %v1694
        %vm1696 = vcmp.eq.f32.partialorder %v1566, inf
        %v1697 = vsel %vm1696, %v1566, %v1695
        %vm1698 = vcmp.eq.f32.partialorder %v1566, 0.0
        %v1699 = vand.u32 %v1566, 2147483648
        %v1700 = vsel %vm1698, %v1699, %v1697
        %v1701 = vrsqrt.pop %v1567
        %v1702 = vmul.f32 %v1567, %v1701
        %vm1703 = vcmp.eq.f32.partialorder %v1567, inf
        %v1704 = vsel %vm1703, %v1567, %v1702
        %vm1705 = vcmp.eq.f32.partialorder %v1567, 0.0
        %v1706 = vand.u32 %v1567, 2147483648
        %v1707 = vsel %vm1705, %v1706, %v1704
        %v1708 = vrsqrt.pop %v1568
        %v1709 = vmul.f32 %v1568, %v1708
        %vm1710 = vcmp.eq.f32.partialorder %v1568, inf
        %v1711 = vsel %vm1710, %v1568, %v1709
        %vm1712 = vcmp.eq.f32.partialorder %v1568, 0.0
        %v1713 = vand.u32 %v1568, 2147483648
        %v1714 = vsel %vm1712, %v1713, %v1711
        %v1715 = vrsqrt.pop %v1569
        %v1716 = vmul.f32 %v1569, %v1715
        %vm1717 = vcmp.eq.f32.partialorder %v1569, inf
        %v1718 = vsel %vm1717, %v1569, %v1716
        %vm1719 = vcmp.eq.f32.partialorder %v1569, 0.0
        %v1720 = vand.u32 %v1569, 2147483648
        %v1721 = vsel %vm1719, %v1720, %v1718
        %v1722 = vrsqrt.pop %v1570
        %v1723 = vmul.f32 %v1570, %v1722
        %vm1724 = vcmp.eq.f32.partialorder %v1570, inf
        %v1725 = vsel %vm1724, %v1570, %v1723
        %vm1726 = vcmp.eq.f32.partialorder %v1570, 0.0
        %v1727 = vand.u32 %v1570, 2147483648
        %v1728 = vsel %vm1726, %v1727, %v1725
        %v1729 = vrsqrt.pop %v1571
        %v1730 = vmul.f32 %v1571, %v1729
        %vm1731 = vcmp.eq.f32.partialorder %v1571, inf
        %v1732 = vsel %vm1731, %v1571, %v1730
        %vm1733 = vcmp.eq.f32.partialorder %v1571, 0.0
        %v1734 = vand.u32 %v1571, 2147483648
        %v1735 = vsel %vm1733, %v1734, %v1732
        %v1736 = vrsqrt.pop %v1572
        %v1737 = vmul.f32 %v1572, %v1736
        %vm1738 = vcmp.eq.f32.partialorder %v1572, inf
        %v1739 = vsel %vm1738, %v1572, %v1737
        %vm1740 = vcmp.eq.f32.partialorder %v1572, 0.0
        %v1741 = vand.u32 %v1572, 2147483648
        %v1742 = vsel %vm1740, %v1741, %v1739
        %v1743 = vrsqrt.pop %v1573
        %v1744 = vmul.f32 %v1573, %v1743
        %vm1745 = vcmp.eq.f32.partialorder %v1573, inf
        %v1746 = vsel %vm1745, %v1573, %v1744
        %vm1747 = vcmp.eq.f32.partialorder %v1573, 0.0
        %v1748 = vand.u32 %v1573, 2147483648
        %v1749 = vsel %vm1747, %v1748, %v1746
        %v1750 = vrsqrt.pop %v1574
        %v1751 = vmul.f32 %v1574, %v1750
        %vm1752 = vcmp.eq.f32.partialorder %v1574, inf
        %v1753 = vsel %vm1752, %v1574, %v1751
        %vm1754 = vcmp.eq.f32.partialorder %v1574, 0.0
        %v1755 = vand.u32 %v1574, 2147483648
        %v1756 = vsel %vm1754, %v1755, %v1753
        %v1757 = vrsqrt.pop %v1575
        %v1758 = vmul.f32 %v1575, %v1757
        %vm1759 = vcmp.eq.f32.partialorder %v1575, inf
        %v1760 = vsel %vm1759, %v1575, %v1758
        %vm1761 = vcmp.eq.f32.partialorder %v1575, 0.0
        %v1762 = vand.u32 %v1575, 2147483648
        %v1763 = vsel %vm1761, %v1762, %v1760
        %v1764 = vrsqrt.pop %v1576
        %v1765 = vmul.f32 %v1576, %v1764
        %vm1766 = vcmp.eq.f32.partialorder %v1576, inf
        %v1767 = vsel %vm1766, %v1576, %v1765
        %vm1768 = vcmp.eq.f32.partialorder %v1576, 0.0
        %v1769 = vand.u32 %v1576, 2147483648
        %v1770 = vsel %vm1768, %v1769, %v1767
        %v1771 = vrsqrt.pop %v1577
        %v1772 = vmul.f32 %v1577, %v1771
        %vm1773 = vcmp.eq.f32.partialorder %v1577, inf
        %v1774 = vsel %vm1773, %v1577, %v1772
        %vm1775 = vcmp.eq.f32.partialorder %v1577, 0.0
        %v1776 = vand.u32 %v1577, 2147483648
        %v1777 = vsel %vm1775, %v1776, %v1774
        %v1778 = vrsqrt.pop %v1578
        %v1779 = vmul.f32 %v1578, %v1778
        %vm1780 = vcmp.eq.f32.partialorder %v1578, inf
        %v1781 = vsel %vm1780, %v1578, %v1779
        %vm1782 = vcmp.eq.f32.partialorder %v1578, 0.0
        %v1783 = vand.u32 %v1578, 2147483648
        %v1784 = vsel %vm1782, %v1783, %v1781
        %v1785 = vrsqrt.pop %v1579
        %v1786 = vmul.f32 %v1579, %v1785
        %vm1787 = vcmp.eq.f32.partialorder %v1579, inf
        %v1788 = vsel %vm1787, %v1579, %v1786
        %vm1789 = vcmp.eq.f32.partialorder %v1579, 0.0
        %v1790 = vand.u32 %v1579, 2147483648
        %v1791 = vsel %vm1789, %v1790, %v1788
        %v1792 = vrsqrt.pop %v1580
        %v1793 = vmul.f32 %v1580, %v1792
        %vm1794 = vcmp.eq.f32.partialorder %v1580, inf
        %v1795 = vsel %vm1794, %v1580, %v1793
        %vm1796 = vcmp.eq.f32.partialorder %v1580, 0.0
        %v1797 = vand.u32 %v1580, 2147483648
        %v1798 = vsel %vm1796, %v1797, %v1795
        %v1799 = vrsqrt.pop %v1581
        %v1800 = vmul.f32 %v1581, %v1799
        %vm1801 = vcmp.eq.f32.partialorder %v1581, inf
        %v1802 = vsel %vm1801, %v1581, %v1800
        %vm1803 = vcmp.eq.f32.partialorder %v1581, 0.0
        %v1804 = vand.u32 %v1581, 2147483648
        %v1805 = vsel %vm1803, %v1804, %v1802
        %1838 = vrot.lane.b32.xlu0 %v1454, 4
        %v1839 = vpop.permute.xlu0 %1838
        %1840 = vrot.lane.b32.xlu0 %v1455, 4
        %v1841 = vpop.permute.xlu0 %1840
        %1842 = vrot.lane.b32.xlu0 %v1456, 4
        %v1843 = vpop.permute.xlu0 %1842
        %1844 = vrot.lane.b32.xlu0 %v1457, 4
        %v1845 = vpop.permute.xlu0 %1844
        %1846 = vrot.lane.b32.xlu0 %v1458, 4
        %v1847 = vpop.permute.xlu0 %1846
        %1848 = vrot.lane.b32.xlu0 %v1459, 4
        %v1849 = vpop.permute.xlu0 %1848
        %1850 = vrot.lane.b32.xlu0 %v1460, 4
        %v1851 = vpop.permute.xlu0 %1850
        %1852 = vrot.lane.b32.xlu0 %v1461, 4
        %v1853 = vpop.permute.xlu0 %1852
        %1854 = vrot.lane.b32.xlu0 %v1462, 4
        %v1855 = vpop.permute.xlu0 %1854
        %1856 = vrot.lane.b32.xlu0 %v1463, 4
        %v1857 = vpop.permute.xlu0 %1856
        %1858 = vrot.lane.b32.xlu0 %v1464, 4
        %v1859 = vpop.permute.xlu0 %1858
        %1860 = vrot.lane.b32.xlu0 %v1465, 4
        %v1861 = vpop.permute.xlu0 %1860
        %1862 = vrot.lane.b32.xlu0 %v1466, 4
        %v1863 = vpop.permute.xlu0 %1862
        %1864 = vrot.lane.b32.xlu0 %v1467, 4
        %v1865 = vpop.permute.xlu0 %1864
        %1866 = vrot.lane.b32.xlu0 %v1468, 4
        %v1867 = vpop.permute.xlu0 %1866
        %1868 = vrot.lane.b32.xlu0 %v1469, 4
        %v1869 = vpop.permute.xlu0 %1868
        %1870 = vrot.lane.b32.xlu0 %v1470, 4
        %v1871 = vpop.permute.xlu0 %1870
        %1872 = vrot.lane.b32.xlu0 %v1471, 4
        %v1873 = vpop.permute.xlu0 %1872
        %1874 = vrot.lane.b32.xlu0 %v1472, 4
        %v1875 = vpop.permute.xlu0 %1874
        %1876 = vrot.lane.b32.xlu0 %v1473, 4
        %v1877 = vpop.permute.xlu0 %1876
        %1878 = vrot.lane.b32.xlu0 %v1474, 4
        %v1879 = vpop.permute.xlu0 %1878
        %1880 = vrot.lane.b32.xlu0 %v1475, 4
        %v1881 = vpop.permute.xlu0 %1880
        %1882 = vrot.lane.b32.xlu0 %v1476, 4
        %v1883 = vpop.permute.xlu0 %1882
        %1884 = vrot.lane.b32.xlu0 %v1477, 4
        %v1885 = vpop.permute.xlu0 %1884
        %1886 = vrot.lane.b32.xlu0 %v1478, 4
        %v1887 = vpop.permute.xlu0 %1886
        %1888 = vrot.lane.b32.xlu0 %v1479, 4
        %v1889 = vpop.permute.xlu0 %1888
        %1890 = vrot.lane.b32.xlu0 %v1480, 4
        %v1891 = vpop.permute.xlu0 %1890
        %1892 = vrot.lane.b32.xlu0 %v1481, 4
        %v1893 = vpop.permute.xlu0 %1892
        %1894 = vrot.lane.b32.xlu0 %v1482, 4
        %v1895 = vpop.permute.xlu0 %1894
        %1896 = vrot.lane.b32.xlu0 %v1483, 4
        %v1897 = vpop.permute.xlu0 %1896
        %1898 = vrot.lane.b32.xlu0 %v1484, 4
        %v1899 = vpop.permute.xlu0 %1898
        %1900 = vrot.lane.b32.xlu0 %v1485, 4
        %v1901 = vpop.permute.xlu0 %1900
        %1966 = vrot.lane.b32.xlu0 %v1588, 8
        %v1967 = vpop.permute.xlu0 %1966
        %1968 = vrot.lane.b32.xlu0 %v1595, 8
        %v1969 = vpop.permute.xlu0 %1968
        %1970 = vrot.lane.b32.xlu0 %v1602, 8
        %v1971 = vpop.permute.xlu0 %1970
        %1972 = vrot.lane.b32.xlu0 %v1609, 8
        %v1973 = vpop.permute.xlu0 %1972
        %1974 = vrot.lane.b32.xlu0 %v1616, 8
        %v1975 = vpop.permute.xlu0 %1974
        %1976 = vrot.lane.b32.xlu0 %v1623, 8
        %v1977 = vpop.permute.xlu0 %1976
        %1978 = vrot.lane.b32.xlu0 %v1630, 8
        %v1979 = vpop.permute.xlu0 %1978
        %1980 = vrot.lane.b32.xlu0 %v1637, 8
        %v1981 = vpop.permute.xlu0 %1980
        %1982 = vrot.lane.b32.xlu0 %v1644, 8
        %v1983 = vpop.permute.xlu0 %1982
        %1984 = vrot.lane.b32.xlu0 %v1651, 8
        %v1985 = vpop.permute.xlu0 %1984
        %1986 = vrot.lane.b32.xlu0 %v1658, 8
        %v1987 = vpop.permute.xlu0 %1986
        %1988 = vrot.lane.b32.xlu0 %v1665, 8
        %v1989 = vpop.permute.xlu0 %1988
        %1990 = vrot.lane.b32.xlu0 %v1672, 8
        %v1991 = vpop.permute.xlu0 %1990
        %1992 = vrot.lane.b32.xlu0 %v1679, 8
        %v1993 = vpop.permute.xlu0 %1992
        %1994 = vrot.lane.b32.xlu0 %v1686, 8
        %v1995 = vpop.permute.xlu0 %1994
        %1996 = vrot.lane.b32.xlu0 %v1693, 8
        %v1997 = vpop.permute.xlu0 %1996
        %1998 = vrot.lane.b32.xlu0 %v1700, 8
        %v1999 = vpop.permute.xlu0 %1998
        %2000 = vrot.lane.b32.xlu0 %v1707, 8
        %v2001 = vpop.permute.xlu0 %2000
        %2002 = vrot.lane.b32.xlu0 %v1714, 8
        %v2003 = vpop.permute.xlu0 %2002
        %2004 = vrot.lane.b32.xlu0 %v1721, 8
        %v2005 = vpop.permute.xlu0 %2004
        %2006 = vrot.lane.b32.xlu0 %v1728, 8
        %v2007 = vpop.permute.xlu0 %2006
        %2008 = vrot.lane.b32.xlu0 %v1735, 8
        %v2009 = vpop.permute.xlu0 %2008
        %2010 = vrot.lane.b32.xlu0 %v1742, 8
        %v2011 = vpop.permute.xlu0 %2010
        %2012 = vrot.lane.b32.xlu0 %v1749, 8
        %v2013 = vpop.permute.xlu0 %2012
        %2014 = vrot.lane.b32.xlu0 %v1756, 8
        %v2015 = vpop.permute.xlu0 %2014
        %2016 = vrot.lane.b32.xlu0 %v1763, 8
        %v2017 = vpop.permute.xlu0 %2016
        %2018 = vrot.lane.b32.xlu0 %v1770, 8
        %v2019 = vpop.permute.xlu0 %2018
        %2020 = vrot.lane.b32.xlu0 %v1777, 8
        %v2021 = vpop.permute.xlu0 %2020
        %2022 = vrot.lane.b32.xlu0 %v1784, 8
        %v2023 = vpop.permute.xlu0 %2022
        %2024 = vrot.lane.b32.xlu0 %v1791, 8
        %v2025 = vpop.permute.xlu0 %2024
        %2026 = vrot.lane.b32.xlu0 %v1798, 8
        %v2027 = vpop.permute.xlu0 %2026
        %2028 = vrot.lane.b32.xlu0 %v1805, 8
        %v2029 = vpop.permute.xlu0 %2028
        %2062 = vrot.lane.b32.xlu0 %v143, 12
        %v2063 = vpop.permute.xlu0 %2062
        %2064 = vrot.lane.b32.xlu0 %v144, 12
        %v2065 = vpop.permute.xlu0 %2064
        %2066 = vrot.lane.b32.xlu0 %v145, 12
        %v2067 = vpop.permute.xlu0 %2066
        %2068 = vrot.lane.b32.xlu0 %v146, 12
        %v2069 = vpop.permute.xlu0 %2068
        %2070 = vrot.lane.b32.xlu0 %v147, 12
        %v2071 = vpop.permute.xlu0 %2070
        %2072 = vrot.lane.b32.xlu0 %v148, 12
        %v2073 = vpop.permute.xlu0 %2072
        %2074 = vrot.lane.b32.xlu0 %v149, 12
        %v2075 = vpop.permute.xlu0 %2074
        %2076 = vrot.lane.b32.xlu0 %v150, 12
        %v2077 = vpop.permute.xlu0 %2076
        %2078 = vrot.lane.b32.xlu0 %v151, 12
        %v2079 = vpop.permute.xlu0 %2078
        %2080 = vrot.lane.b32.xlu0 %v152, 12
        %v2081 = vpop.permute.xlu0 %2080
        %2082 = vrot.lane.b32.xlu0 %v153, 12
        %v2083 = vpop.permute.xlu0 %2082
        %2084 = vrot.lane.b32.xlu0 %v154, 12
        %v2085 = vpop.permute.xlu0 %2084
        %2086 = vrot.lane.b32.xlu0 %v155, 12
        %v2087 = vpop.permute.xlu0 %2086
        %2088 = vrot.lane.b32.xlu0 %v156, 12
        %v2089 = vpop.permute.xlu0 %2088
        %2090 = vrot.lane.b32.xlu0 %v157, 12
        %v2091 = vpop.permute.xlu0 %2090
        %2092 = vrot.lane.b32.xlu0 %v158, 12
        %v2093 = vpop.permute.xlu0 %2092
        %2094 = vrot.lane.b32.xlu0 %v159, 12
        %v2095 = vpop.permute.xlu0 %2094
        %2096 = vrot.lane.b32.xlu0 %v160, 12
        %v2097 = vpop.permute.xlu0 %2096
        %2098 = vrot.lane.b32.xlu0 %v161, 12
        %v2099 = vpop.permute.xlu0 %2098
        %2100 = vrot.lane.b32.xlu0 %v162, 12
        %v2101 = vpop.permute.xlu0 %2100
        %2102 = vrot.lane.b32.xlu0 %v163, 12
        %v2103 = vpop.permute.xlu0 %2102
        %2104 = vrot.lane.b32.xlu0 %v164, 12
        %v2105 = vpop.permute.xlu0 %2104
        %2106 = vrot.lane.b32.xlu0 %v165, 12
        %v2107 = vpop.permute.xlu0 %2106
        %2108 = vrot.lane.b32.xlu0 %v166, 12
        %v2109 = vpop.permute.xlu0 %2108
        %2110 = vrot.lane.b32.xlu0 %v167, 12
        %v2111 = vpop.permute.xlu0 %2110
        %2112 = vrot.lane.b32.xlu0 %v168, 12
        %v2113 = vpop.permute.xlu0 %2112
        %2114 = vrot.lane.b32.xlu0 %v169, 12
        %v2115 = vpop.permute.xlu0 %2114
        %2116 = vrot.lane.b32.xlu0 %v170, 12
        %v2117 = vpop.permute.xlu0 %2116
        %2118 = vrot.lane.b32.xlu0 %v171, 12
        %v2119 = vpop.permute.xlu0 %2118
        %2120 = vrot.lane.b32.xlu0 %v172, 12
        %v2121 = vpop.permute.xlu0 %2120
        %2122 = vrot.lane.b32.xlu0 %v173, 12
        %v2123 = vpop.permute.xlu0 %2122
        %2124 = vrot.lane.b32.xlu0 %v174, 12
        %v2125 = vpop.permute.xlu0 %2124
        %vm2158 = vcmask 31744
        %v2159 = vsel %vm2158, %v1390, %v1839
        %v2160 = vsel %vm2158, %v1391, %v1841
        %v2161 = vsel %vm2158, %v1392, %v1843
        %v2162 = vsel %vm2158, %v1393, %v1845
        %v2163 = vsel %vm2158, %v1394, %v1847
        %v2164 = vsel %vm2158, %v1395, %v1849
        %v2165 = vsel %vm2158, %v1396, %v1851
        %v2166 = vsel %vm2158, %v1397, %v1853
        %v2167 = vsel %vm2158, %v1398, %v1855
        %v2168 = vsel %vm2158, %v1399, %v1857
        %v2169 = vsel %vm2158, %v1400, %v1859
        %v2170 = vsel %vm2158, %v1401, %v1861
        %v2171 = vsel %vm2158, %v1402, %v1863
        %v2172 = vsel %vm2158, %v1403, %v1865
        %v2173 = vsel %vm2158, %v1404, %v1867
        %v2174 = vsel %vm2158, %v1405, %v1869
        %v2175 = vsel %vm2158, %v1406, %v1871
        %v2176 = vsel %vm2158, %v1407, %v1873
        %v2177 = vsel %vm2158, %v1408, %v1875
        %v2178 = vsel %vm2158, %v1409, %v1877
        %v2179 = vsel %vm2158, %v1410, %v1879
        %v2180 = vsel %vm2158, %v1411, %v1881
        %v2181 = vsel %vm2158, %v1412, %v1883
        %v2182 = vsel %vm2158, %v1413, %v1885
        %v2183 = vsel %vm2158, %v1414, %v1887
        %v2184 = vsel %vm2158, %v1415, %v1889
        %v2185 = vsel %vm2158, %v1416, %v1891
        %v2186 = vsel %vm2158, %v1417, %v1893
        %v2187 = vsel %vm2158, %v1418, %v1895
        %v2188 = vsel %vm2158, %v1419, %v1897
        %v2189 = vsel %vm2158, %v1420, %v1899
        %v2190 = vsel %vm2158, %v1421, %v1901
        %vm2191 = vcmask 64512
        %v2192 = vsel %vm2191, %v2159, %v1967
        %v2193 = vsel %vm2191, %v2160, %v1969
        %v2194 = vsel %vm2191, %v2161, %v1971
        %v2195 = vsel %vm2191, %v2162, %v1973
        %v2196 = vsel %vm2191, %v2163, %v1975
        %v2197 = vsel %vm2191, %v2164, %v1977
        %v2198 = vsel %vm2191, %v2165, %v1979
        %v2199 = vsel %vm2191, %v2166, %v1981
        %v2200 = vsel %vm2191, %v2167, %v1983
        %v2201 = vsel %vm2191, %v2168, %v1985
        %v2202 = vsel %vm2191, %v2169, %v1987
        %v2203 = vsel %vm2191, %v2170, %v1989
        %v2204 = vsel %vm2191, %v2171, %v1991
        %v2205 = vsel %vm2191, %v2172, %v1993
        %v2206 = vsel %vm2191, %v2173, %v1995
        %v2207 = vsel %vm2191, %v2174, %v1997
        %v2208 = vsel %vm2191, %v2175, %v1999
        %v2209 = vsel %vm2191, %v2176, %v2001
        %v2210 = vsel %vm2191, %v2177, %v2003
        %v2211 = vsel %vm2191, %v2178, %v2005
        %v2212 = vsel %vm2191, %v2179, %v2007
        %v2213 = vsel %vm2191, %v2180, %v2009
        %v2214 = vsel %vm2191, %v2181, %v2011
        %v2215 = vsel %vm2191, %v2182, %v2013
        %v2216 = vsel %vm2191, %v2183, %v2015
        %v2217 = vsel %vm2191, %v2184, %v2017
        %v2218 = vsel %vm2191, %v2185, %v2019
        %v2219 = vsel %vm2191, %v2186, %v2021
        %v2220 = vsel %vm2191, %v2187, %v2023
        %v2221 = vsel %vm2191, %v2188, %v2025
        %v2222 = vsel %vm2191, %v2189, %v2027
        %v2223 = vsel %vm2191, %v2190, %v2029
        %vm2224 = vcmask 97280
        %v2225 = vsel %vm2224, %v2192, %v2063
        %v2226 = vsel %vm2224, %v2193, %v2065
        %v2227 = vsel %vm2224, %v2194, %v2067
        %v2228 = vsel %vm2224, %v2195, %v2069
        %v2229 = vsel %vm2224, %v2196, %v2071
        %v2230 = vsel %vm2224, %v2197, %v2073
        %v2231 = vsel %vm2224, %v2198, %v2075
        %v2232 = vsel %vm2224, %v2199, %v2077
        %v2233 = vsel %vm2224, %v2200, %v2079
        %v2234 = vsel %vm2224, %v2201, %v2081
        %v2235 = vsel %vm2224, %v2202, %v2083
        %v2236 = vsel %vm2224, %v2203, %v2085
        %v2237 = vsel %vm2224, %v2204, %v2087
        %v2238 = vsel %vm2224, %v2205, %v2089
        %v2239 = vsel %vm2224, %v2206, %v2091
        %v2240 = vsel %vm2224, %v2207, %v2093
        %v2241 = vsel %vm2224, %v2208, %v2095
        %v2242 = vsel %vm2224, %v2209, %v2097
        %v2243 = vsel %vm2224, %v2210, %v2099
        %v2244 = vsel %vm2224, %v2211, %v2101
        %v2245 = vsel %vm2224, %v2212, %v2103
        %v2246 = vsel %vm2224, %v2213, %v2105
        %v2247 = vsel %vm2224, %v2214, %v2107
        %v2248 = vsel %vm2224, %v2215, %v2109
        %v2249 = vsel %vm2224, %v2216, %v2111
        %v2250 = vsel %vm2224, %v2217, %v2113
        %v2251 = vsel %vm2224, %v2218, %v2115
        %v2252 = vsel %vm2224, %v2219, %v2117
        %v2253 = vsel %vm2224, %v2220, %v2119
        %v2254 = vsel %vm2224, %v2221, %v2121
        %v2255 = vsel %vm2224, %v2222, %v2123
        %v2256 = vsel %vm2224, %v2223, %v2125
        %v2289 = vrot.slane %v2225, 7
        %v2290 = vrot.slane %v2226, 7
        %v2291 = vsel %vm400, %v2289, %v2290
        %v2292 = vrot.slane %v2227, 7
        %v2293 = vrot.slane %v2228, 7
        %v2294 = vsel %vm400, %v2292, %v2293
        %v2295 = vrot.slane %v2229, 7
        %v2296 = vrot.slane %v2230, 7
        %v2297 = vsel %vm400, %v2295, %v2296
        %v2298 = vrot.slane %v2231, 7
        %v2299 = vrot.slane %v2232, 7
        %v2300 = vsel %vm400, %v2298, %v2299
        %v2301 = vrot.slane %v2233, 7
        %v2302 = vrot.slane %v2234, 7
        %v2303 = vsel %vm400, %v2301, %v2302
        %v2304 = vrot.slane %v2235, 7
        %v2305 = vrot.slane %v2236, 7
        %v2306 = vsel %vm400, %v2304, %v2305
        %v2307 = vrot.slane %v2237, 7
        %v2308 = vrot.slane %v2238, 7
        %v2309 = vsel %vm400, %v2307, %v2308
        %v2310 = vrot.slane %v2239, 7
        %v2311 = vrot.slane %v2240, 7
        %v2312 = vsel %vm400, %v2310, %v2311
        %v2313 = vrot.slane %v2241, 7
        %v2314 = vrot.slane %v2242, 7
        %v2315 = vsel %vm400, %v2313, %v2314
        %v2316 = vrot.slane %v2243, 7
        %v2317 = vrot.slane %v2244, 7
        %v2318 = vsel %vm400, %v2316, %v2317
        %v2319 = vrot.slane %v2245, 7
        %v2320 = vrot.slane %v2246, 7
        %v2321 = vsel %vm400, %v2319, %v2320
        %v2322 = vrot.slane %v2247, 7
        %v2323 = vrot.slane %v2248, 7
        %v2324 = vsel %vm400, %v2322, %v2323
        %v2325 = vrot.slane %v2249, 7
        %v2326 = vrot.slane %v2250, 7
        %v2327 = vsel %vm400, %v2325, %v2326
        %v2328 = vrot.slane %v2251, 7
        %v2329 = vrot.slane %v2252, 7
        %v2330 = vsel %vm400, %v2328, %v2329
        %v2331 = vrot.slane %v2253, 7
        %v2332 = vrot.slane %v2254, 7
        %v2333 = vsel %vm400, %v2331, %v2332
        %v2334 = vrot.slane %v2255, 7
        %v2335 = vrot.slane %v2256, 7
        %v2336 = vsel %vm400, %v2334, %v2335
        %v2385 = vsel %vm400, 0.0, %v2289
        %v2386 = vsel %vm400, 0.0, %v2292
        %v2387 = vsel %vm400, 0.0, %v2295
        %v2388 = vsel %vm400, 0.0, %v2298
        %v2389 = vsel %vm400, 0.0, %v2301
        %v2390 = vsel %vm400, 0.0, %v2304
        %v2391 = vsel %vm400, 0.0, %v2307
        %v2392 = vsel %vm400, 0.0, %v2310
        %v2393 = vsel %vm400, 0.0, %v2313
        %v2394 = vsel %vm400, 0.0, %v2316
        %v2395 = vsel %vm400, 0.0, %v2319
        %v2396 = vsel %vm400, 0.0, %v2322
        %v2397 = vsel %vm400, 0.0, %v2325
        %v2398 = vsel %vm400, 0.0, %v2328
        %v2399 = vsel %vm400, 0.0, %v2331
        %v2400 = vsel %vm400, 0.0, %v2334
        %v2401 = vsel %vm400, %v2290, 0.0
        %v2402 = vsel %vm400, %v2293, 0.0
        %v2403 = vsel %vm400, %v2296, 0.0
        %v2404 = vsel %vm400, %v2299, 0.0
        %v2405 = vsel %vm400, %v2302, 0.0
        %v2406 = vsel %vm400, %v2305, 0.0
        %v2407 = vsel %vm400, %v2308, 0.0
        %v2408 = vsel %vm400, %v2311, 0.0
        %v2409 = vsel %vm400, %v2314, 0.0
        %v2410 = vsel %vm400, %v2317, 0.0
        %v2411 = vsel %vm400, %v2320, 0.0
        %v2412 = vsel %vm400, %v2323, 0.0
        %v2413 = vsel %vm400, %v2326, 0.0
        %v2414 = vsel %vm400, %v2329, 0.0
        %v2415 = vsel %vm400, %v2332, 0.0
        %v2416 = vsel %vm400, %v2335, 0.0
        %v2449 = vrot.slane %v2385, 1
        %v2450 = vrot.slane %v2291, 1
        %v2451 = vsel %vm498, %v2449, %v2450
        %v2452 = vrot.slane %v2401, 1
        %v2453 = vsel %vm498, %v2450, %v2452
        %v2454 = vrot.slane %v2386, 1
        %v2455 = vrot.slane %v2294, 1
        %v2456 = vsel %vm498, %v2454, %v2455
        %v2457 = vrot.slane %v2402, 1
        %v2458 = vsel %vm498, %v2455, %v2457
        %v2459 = vrot.slane %v2387, 1
        %v2460 = vrot.slane %v2297, 1
        %v2461 = vsel %vm498, %v2459, %v2460
        %v2462 = vrot.slane %v2403, 1
        %v2463 = vsel %vm498, %v2460, %v2462
        %v2464 = vrot.slane %v2388, 1
        %v2465 = vrot.slane %v2300, 1
        %v2466 = vsel %vm498, %v2464, %v2465
        %v2467 = vrot.slane %v2404, 1
        %v2468 = vsel %vm498, %v2465, %v2467
        %v2469 = vrot.slane %v2389, 1
        %v2470 = vrot.slane %v2303, 1
        %v2471 = vsel %vm498, %v2469, %v2470
        %v2472 = vrot.slane %v2405, 1
        %v2473 = vsel %vm498, %v2470, %v2472
        %v2474 = vrot.slane %v2390, 1
        %v2475 = vrot.slane %v2306, 1
        %v2476 = vsel %vm498, %v2474, %v2475
        %v2477 = vrot.slane %v2406, 1
        %v2478 = vsel %vm498, %v2475, %v2477
        %v2479 = vrot.slane %v2391, 1
        %v2480 = vrot.slane %v2309, 1
        %v2481 = vsel %vm498, %v2479, %v2480
        %v2482 = vrot.slane %v2407, 1
        %v2483 = vsel %vm498, %v2480, %v2482
        %v2484 = vrot.slane %v2392, 1
        %v2485 = vrot.slane %v2312, 1
        %v2486 = vsel %vm498, %v2484, %v2485
        %v2487 = vrot.slane %v2408, 1
        %v2488 = vsel %vm498, %v2485, %v2487
        %v2489 = vrot.slane %v2393, 1
        %v2490 = vrot.slane %v2315, 1
        %v2491 = vsel %vm498, %v2489, %v2490
        %v2492 = vrot.slane %v2409, 1
        %v2493 = vsel %vm498, %v2490, %v2492
        %v2494 = vrot.slane %v2394, 1
        %v2495 = vrot.slane %v2318, 1
        %v2496 = vsel %vm498, %v2494, %v2495
        %v2497 = vrot.slane %v2410, 1
        %v2498 = vsel %vm498, %v2495, %v2497
        %v2499 = vrot.slane %v2395, 1
        %v2500 = vrot.slane %v2321, 1
        %v2501 = vsel %vm498, %v2499, %v2500
        %v2502 = vrot.slane %v2411, 1
        %v2503 = vsel %vm498, %v2500, %v2502
        %v2504 = vrot.slane %v2396, 1
        %v2505 = vrot.slane %v2324, 1
        %v2506 = vsel %vm498, %v2504, %v2505
        %v2507 = vrot.slane %v2412, 1
        %v2508 = vsel %vm498, %v2505, %v2507
        %v2509 = vrot.slane %v2397, 1
        %v2510 = vrot.slane %v2327, 1
        %v2511 = vsel %vm498, %v2509, %v2510
        %v2512 = vrot.slane %v2413, 1
        %v2513 = vsel %vm498, %v2510, %v2512
        %v2514 = vrot.slane %v2398, 1
        %v2515 = vrot.slane %v2330, 1
        %v2516 = vsel %vm498, %v2514, %v2515
        %v2517 = vrot.slane %v2414, 1
        %v2518 = vsel %vm498, %v2515, %v2517
        %v2519 = vrot.slane %v2399, 1
        %v2520 = vrot.slane %v2333, 1
        %v2521 = vsel %vm498, %v2519, %v2520
        %v2522 = vrot.slane %v2415, 1
        %v2523 = vsel %vm498, %v2520, %v2522
        %v2524 = vrot.slane %v2400, 1
        %v2525 = vrot.slane %v2336, 1
        %v2526 = vsel %vm498, %v2524, %v2525
        %v2527 = vrot.slane %v2416, 1
        %v2528 = vsel %vm498, %v2525, %v2527
        %2529 = vrot.lane.b32.xlu0 %v2451, 16
        %v2530 = vpop.permute.xlu0 %2529
        %2531 = vrot.lane.b32.xlu0 %v2453, 16
        %v2532 = vpop.permute.xlu0 %2531
        %2533 = vrot.lane.b32.xlu0 %v2456, 16
        %v2534 = vpop.permute.xlu0 %2533
        %2535 = vrot.lane.b32.xlu0 %v2458, 16
        %v2536 = vpop.permute.xlu0 %2535
        %2537 = vrot.lane.b32.xlu0 %v2461, 16
        %v2538 = vpop.permute.xlu0 %2537
        %2539 = vrot.lane.b32.xlu0 %v2463, 16
        %v2540 = vpop.permute.xlu0 %2539
        %2541 = vrot.lane.b32.xlu0 %v2466, 16
        %v2542 = vpop.permute.xlu0 %2541
        %2543 = vrot.lane.b32.xlu0 %v2468, 16
        %v2544 = vpop.permute.xlu0 %2543
        %2545 = vrot.lane.b32.xlu0 %v2471, 16
        %v2546 = vpop.permute.xlu0 %2545
        %2547 = vrot.lane.b32.xlu0 %v2473, 16
        %v2548 = vpop.permute.xlu0 %2547
        %2549 = vrot.lane.b32.xlu0 %v2476, 16
        %v2550 = vpop.permute.xlu0 %2549
        %2551 = vrot.lane.b32.xlu0 %v2478, 16
        %v2552 = vpop.permute.xlu0 %2551
        %2553 = vrot.lane.b32.xlu0 %v2481, 16
        %v2554 = vpop.permute.xlu0 %2553
        %2555 = vrot.lane.b32.xlu0 %v2483, 16
        %v2556 = vpop.permute.xlu0 %2555
        %2557 = vrot.lane.b32.xlu0 %v2486, 16
        %v2558 = vpop.permute.xlu0 %2557
        %2559 = vrot.lane.b32.xlu0 %v2488, 16
        %v2560 = vpop.permute.xlu0 %2559
        %2561 = vrot.lane.b32.xlu0 %v2491, 16
        %v2562 = vpop.permute.xlu0 %2561
        %2563 = vrot.lane.b32.xlu0 %v2493, 16
        %v2564 = vpop.permute.xlu0 %2563
        %2565 = vrot.lane.b32.xlu0 %v2496, 16
        %v2566 = vpop.permute.xlu0 %2565
        %2567 = vrot.lane.b32.xlu0 %v2498, 16
        %v2568 = vpop.permute.xlu0 %2567
        %2569 = vrot.lane.b32.xlu0 %v2501, 16
        %v2570 = vpop.permute.xlu0 %2569
        %2571 = vrot.lane.b32.xlu0 %v2503, 16
        %v2572 = vpop.permute.xlu0 %2571
        %2573 = vrot.lane.b32.xlu0 %v2506, 16
        %v2574 = vpop.permute.xlu0 %2573
        %2575 = vrot.lane.b32.xlu0 %v2508, 16
        %v2576 = vpop.permute.xlu0 %2575
        %2577 = vrot.lane.b32.xlu0 %v2511, 16
        %v2578 = vpop.permute.xlu0 %2577
        %2579 = vrot.lane.b32.xlu0 %v2513, 16
        %v2580 = vpop.permute.xlu0 %2579
        %2581 = vrot.lane.b32.xlu0 %v2516, 16
        %v2582 = vpop.permute.xlu0 %2581
        %2583 = vrot.lane.b32.xlu0 %v2518, 16
        %v2584 = vpop.permute.xlu0 %2583
        %2585 = vrot.lane.b32.xlu0 %v2521, 16
        %v2586 = vpop.permute.xlu0 %2585
        %2587 = vrot.lane.b32.xlu0 %v2523, 16
        %v2588 = vpop.permute.xlu0 %2587
        %2589 = vrot.lane.b32.xlu0 %v2526, 16
        %v2590 = vpop.permute.xlu0 %2589
        %2591 = vrot.lane.b32.xlu0 %v2528, 16
        %v2592 = vpop.permute.xlu0 %2591
        %v2625 = vrot.slane %v2385, 2
        %v2626 = vrot.slane %v2291, 2
        %v2627 = vsel %vm675, %v2625, %v2626
        %v2628 = vrot.slane %v2401, 2
        %v2629 = vsel %vm675, %v2626, %v2628
        %v2630 = vrot.slane %v2386, 2
        %v2631 = vrot.slane %v2294, 2
        %v2632 = vsel %vm675, %v2630, %v2631
        %v2633 = vrot.slane %v2402, 2
        %v2634 = vsel %vm675, %v2631, %v2633
        %v2635 = vrot.slane %v2387, 2
        %v2636 = vrot.slane %v2297, 2
        %v2637 = vsel %vm675, %v2635, %v2636
        %v2638 = vrot.slane %v2403, 2
        %v2639 = vsel %vm675, %v2636, %v2638
        %v2640 = vrot.slane %v2388, 2
        %v2641 = vrot.slane %v2300, 2
        %v2642 = vsel %vm675, %v2640, %v2641
        %v2643 = vrot.slane %v2404, 2
        %v2644 = vsel %vm675, %v2641, %v2643
        %v2645 = vrot.slane %v2389, 2
        %v2646 = vrot.slane %v2303, 2
        %v2647 = vsel %vm675, %v2645, %v2646
        %v2648 = vrot.slane %v2405, 2
        %v2649 = vsel %vm675, %v2646, %v2648
        %v2650 = vrot.slane %v2390, 2
        %v2651 = vrot.slane %v2306, 2
        %v2652 = vsel %vm675, %v2650, %v2651
        %v2653 = vrot.slane %v2406, 2
        %v2654 = vsel %vm675, %v2651, %v2653
        %v2655 = vrot.slane %v2391, 2
        %v2656 = vrot.slane %v2309, 2
        %v2657 = vsel %vm675, %v2655, %v2656
        %v2658 = vrot.slane %v2407, 2
        %v2659 = vsel %vm675, %v2656, %v2658
        %v2660 = vrot.slane %v2392, 2
        %v2661 = vrot.slane %v2312, 2
        %v2662 = vsel %vm675, %v2660, %v2661
        %v2663 = vrot.slane %v2408, 2
        %v2664 = vsel %vm675, %v2661, %v2663
        %v2665 = vrot.slane %v2393, 2
        %v2666 = vrot.slane %v2315, 2
        %v2667 = vsel %vm675, %v2665, %v2666
        %v2668 = vrot.slane %v2409, 2
        %v2669 = vsel %vm675, %v2666, %v2668
        %v2670 = vrot.slane %v2394, 2
        %v2671 = vrot.slane %v2318, 2
        %v2672 = vsel %vm675, %v2670, %v2671
        %v2673 = vrot.slane %v2410, 2
        %v2674 = vsel %vm675, %v2671, %v2673
        %v2675 = vrot.slane %v2395, 2
        %v2676 = vrot.slane %v2321, 2
        %v2677 = vsel %vm675, %v2675, %v2676
        %v2678 = vrot.slane %v2411, 2
        %v2679 = vsel %vm675, %v2676, %v2678
        %v2680 = vrot.slane %v2396, 2
        %v2681 = vrot.slane %v2324, 2
        %v2682 = vsel %vm675, %v2680, %v2681
        %v2683 = vrot.slane %v2412, 2
        %v2684 = vsel %vm675, %v2681, %v2683
        %v2685 = vrot.slane %v2397, 2
        %v2686 = vrot.slane %v2327, 2
        %v2687 = vsel %vm675, %v2685, %v2686
        %v2688 = vrot.slane %v2413, 2
        %v2689 = vsel %vm675, %v2686, %v2688
        %v2690 = vrot.slane %v2398, 2
        %v2691 = vrot.slane %v2330, 2
        %v2692 = vsel %vm675, %v2690, %v2691
        %v2693 = vrot.slane %v2414, 2
        %v2694 = vsel %vm675, %v2691, %v2693
        %v2695 = vrot.slane %v2399, 2
        %v2696 = vrot.slane %v2333, 2
        %v2697 = vsel %vm675, %v2695, %v2696
        %v2698 = vrot.slane %v2415, 2
        %v2699 = vsel %vm675, %v2696, %v2698
        %v2700 = vrot.slane %v2400, 2
        %v2701 = vrot.slane %v2336, 2
        %v2702 = vsel %vm675, %v2700, %v2701
        %v2703 = vrot.slane %v2416, 2
        %v2704 = vsel %vm675, %v2701, %v2703
        %2705 = vrot.lane.b32.xlu0 %v2627, 32
        %v2706 = vpop.permute.xlu0 %2705
        %2707 = vrot.lane.b32.xlu0 %v2629, 32
        %v2708 = vpop.permute.xlu0 %2707
        %2709 = vrot.lane.b32.xlu0 %v2632, 32
        %v2710 = vpop.permute.xlu0 %2709
        %2711 = vrot.lane.b32.xlu0 %v2634, 32
        %v2712 = vpop.permute.xlu0 %2711
        %2713 = vrot.lane.b32.xlu0 %v2637, 32
        %v2714 = vpop.permute.xlu0 %2713
        %2715 = vrot.lane.b32.xlu0 %v2639, 32
        %v2716 = vpop.permute.xlu0 %2715
        %2717 = vrot.lane.b32.xlu0 %v2642, 32
        %v2718 = vpop.permute.xlu0 %2717
        %2719 = vrot.lane.b32.xlu0 %v2644, 32
        %v2720 = vpop.permute.xlu0 %2719
        %2721 = vrot.lane.b32.xlu0 %v2647, 32
        %v2722 = vpop.permute.xlu0 %2721
        %2723 = vrot.lane.b32.xlu0 %v2649, 32
        %v2724 = vpop.permute.xlu0 %2723
        %2725 = vrot.lane.b32.xlu0 %v2652, 32
        %v2726 = vpop.permute.xlu0 %2725
        %2727 = vrot.lane.b32.xlu0 %v2654, 32
        %v2728 = vpop.permute.xlu0 %2727
        %2729 = vrot.lane.b32.xlu0 %v2657, 32
        %v2730 = vpop.permute.xlu0 %2729
        %2731 = vrot.lane.b32.xlu0 %v2659, 32
        %v2732 = vpop.permute.xlu0 %2731
        %2733 = vrot.lane.b32.xlu0 %v2662, 32
        %v2734 = vpop.permute.xlu0 %2733
        %2735 = vrot.lane.b32.xlu0 %v2664, 32
        %v2736 = vpop.permute.xlu0 %2735
        %2737 = vrot.lane.b32.xlu0 %v2667, 32
        %v2738 = vpop.permute.xlu0 %2737
        %2739 = vrot.lane.b32.xlu0 %v2669, 32
        %v2740 = vpop.permute.xlu0 %2739
        %2741 = vrot.lane.b32.xlu0 %v2672, 32
        %v2742 = vpop.permute.xlu0 %2741
        %2743 = vrot.lane.b32.xlu0 %v2674, 32
        %v2744 = vpop.permute.xlu0 %2743
        %2745 = vrot.lane.b32.xlu0 %v2677, 32
        %v2746 = vpop.permute.xlu0 %2745
        %2747 = vrot.lane.b32.xlu0 %v2679, 32
        %v2748 = vpop.permute.xlu0 %2747
        %2749 = vrot.lane.b32.xlu0 %v2682, 32
        %v2750 = vpop.permute.xlu0 %2749
        %2751 = vrot.lane.b32.xlu0 %v2684, 32
        %v2752 = vpop.permute.xlu0 %2751
        %2753 = vrot.lane.b32.xlu0 %v2687, 32
        %v2754 = vpop.permute.xlu0 %2753
        %2755 = vrot.lane.b32.xlu0 %v2689, 32
        %v2756 = vpop.permute.xlu0 %2755
        %2757 = vrot.lane.b32.xlu0 %v2692, 32
        %v2758 = vpop.permute.xlu0 %2757
        %2759 = vrot.lane.b32.xlu0 %v2694, 32
        %v2760 = vpop.permute.xlu0 %2759
        %2761 = vrot.lane.b32.xlu0 %v2697, 32
        %v2762 = vpop.permute.xlu0 %2761
        %2763 = vrot.lane.b32.xlu0 %v2699, 32
        %v2764 = vpop.permute.xlu0 %2763
        %2765 = vrot.lane.b32.xlu0 %v2702, 32
        %v2766 = vpop.permute.xlu0 %2765
        %2767 = vrot.lane.b32.xlu0 %v2704, 32
        %v2768 = vpop.permute.xlu0 %2767
        %vm2801 = vcmask 130048
        %v2802 = vsel %vm2801, %v2385, %v2530
        %v2803 = vsel %vm2801, %v2291, %v2532
        %v2804 = vsel %vm2801, %v2386, %v2534
        %v2805 = vsel %vm2801, %v2294, %v2536
        %v2806 = vsel %vm2801, %v2387, %v2538
        %v2807 = vsel %vm2801, %v2297, %v2540
        %v2808 = vsel %vm2801, %v2388, %v2542
        %v2809 = vsel %vm2801, %v2300, %v2544
        %v2810 = vsel %vm2801, %v2389, %v2546
        %v2811 = vsel %vm2801, %v2303, %v2548
        %v2812 = vsel %vm2801, %v2390, %v2550
        %v2813 = vsel %vm2801, %v2306, %v2552
        %v2814 = vsel %vm2801, %v2391, %v2554
        %v2815 = vsel %vm2801, %v2309, %v2556
        %v2816 = vsel %vm2801, %v2392, %v2558
        %v2817 = vsel %vm2801, %v2312, %v2560
        %v2818 = vsel %vm2801, %v2393, %v2562
        %v2819 = vsel %vm2801, %v2315, %v2564
        %v2820 = vsel %vm2801, %v2394, %v2566
        %v2821 = vsel %vm2801, %v2318, %v2568
        %v2822 = vsel %vm2801, %v2395, %v2570
        %v2823 = vsel %vm2801, %v2321, %v2572
        %v2824 = vsel %vm2801, %v2396, %v2574
        %v2825 = vsel %vm2801, %v2324, %v2576
        %v2826 = vsel %vm2801, %v2397, %v2578
        %v2827 = vsel %vm2801, %v2327, %v2580
        %v2828 = vsel %vm2801, %v2398, %v2582
        %v2829 = vsel %vm2801, %v2330, %v2584
        %v2830 = vsel %vm2801, %v2399, %v2586
        %v2831 = vsel %vm2801, %v2333, %v2588
        %v2832 = vsel %vm2801, %v2400, %v2590
        %v2833 = vsel %vm2801, %v2336, %v2592
        %vm2834 = vcmask 261120
        %v2835 = vsel %vm2834, %v2802, %v2706
        %v2836 = vsel %vm2834, %v2803, %v2708
        %v2837 = vsel %vm2834, %v2804, %v2710
        %v2838 = vsel %vm2834, %v2805, %v2712
        %v2839 = vsel %vm2834, %v2806, %v2714
        %v2840 = vsel %vm2834, %v2807, %v2716
        %v2841 = vsel %vm2834, %v2808, %v2718
        %v2842 = vsel %vm2834, %v2809, %v2720
        %v2843 = vsel %vm2834, %v2810, %v2722
        %v2844 = vsel %vm2834, %v2811, %v2724
        %v2845 = vsel %vm2834, %v2812, %v2726
        %v2846 = vsel %vm2834, %v2813, %v2728
        %v2847 = vsel %vm2834, %v2814, %v2730
        %v2848 = vsel %vm2834, %v2815, %v2732
        %v2849 = vsel %vm2834, %v2816, %v2734
        %v2850 = vsel %vm2834, %v2817, %v2736
        %v2851 = vsel %vm2834, %v2818, %v2738
        %v2852 = vsel %vm2834, %v2819, %v2740
        %v2853 = vsel %vm2834, %v2820, %v2742
        %v2854 = vsel %vm2834, %v2821, %v2744
        %v2855 = vsel %vm2834, %v2822, %v2746
        %v2856 = vsel %vm2834, %v2823, %v2748
        %v2857 = vsel %vm2834, %v2824, %v2750
        %v2858 = vsel %vm2834, %v2825, %v2752
        %v2859 = vsel %vm2834, %v2826, %v2754
        %v2860 = vsel %vm2834, %v2827, %v2756
        %v2861 = vsel %vm2834, %v2828, %v2758
        %v2862 = vsel %vm2834, %v2829, %v2760
        %v2863 = vsel %vm2834, %v2830, %v2762
        %v2864 = vsel %vm2834, %v2831, %v2764
        %v2865 = vsel %vm2834, %v2832, %v2766
        %v2866 = vsel %vm2834, %v2833, %v2768
        %v2867 = vpack.c.bf16 0.0, 0.0
        %v2868 = vpack.c.bf16 %v2836, %v2835
        %v2869 = vpack.c.bf16 %v2838, %v2837
        %v2870 = vpack.c.bf16 %v2840, %v2839
        %v2871 = vpack.c.bf16 %v2842, %v2841
        %v2872 = vpack.c.bf16 %v2844, %v2843
        %v2873 = vpack.c.bf16 %v2846, %v2845
        %v2874 = vpack.c.bf16 %v2848, %v2847
        %v2875 = vpack.c.bf16 %v2850, %v2849
        %v2876 = vpack.c.bf16 %v2852, %v2851
        %v2877 = vpack.c.bf16 %v2854, %v2853
        %v2878 = vpack.c.bf16 %v2856, %v2855
        %v2879 = vpack.c.bf16 %v2858, %v2857
        %v2880 = vpack.c.bf16 %v2860, %v2859
        %v2881 = vpack.c.bf16 %v2862, %v2861
        %v2882 = vpack.c.bf16 %v2864, %v2863
        %v2883 = vpack.c.bf16 %v2866, %v2865
        %v2884 = vld [vmem:[%s1] sm:$0xf]
        %v2885 = vld [vmem:[%s1 + $0x4] sm:$0xf]
        %v2886 = vld [vmem:[%s1 + $0x8] sm:$0xf]
        %v2887 = vld [vmem:[%s1 + $0xc] sm:$0xf]
        %v2888 = vld [vmem:[%s1 + $0x10] sm:$0xf]
        %v2889 = vld [vmem:[%s1 + $0x14] sm:$0xf]
        %s2890 = scalar_lea.vmem %s1, 24
        %v2891 = vld [vmem:[%s2890] sm:$0xf]
        %v2892 = vld [vmem:[%s2890 + $0x4] sm:$0xf]
        %v2893 = vld [vmem:[%s2890 + $0x8] sm:$0xf]
        %v2894 = vld [vmem:[%s2890 + $0xc] sm:$0xf]
        %v2895 = vld [vmem:[%s2890 + $0x10] sm:$0xf]
        %v2896 = vld [vmem:[%s2890 + $0x14] sm:$0xf]
        %v2903 = vunpack.c.l.b16 %v2891
        %v2904 = vunpack.c.l.b16 %v2892
        %v2905 = vunpack.c.l.b16 %v2893
        %v2906 = vunpack.c.l.b16 %v2894
        %v2907 = vunpack.c.l.b16 %v2895
        %v2908 = vunpack.c.l.b16 %v2896
        %v2909 = vpack.c.b16 %v2904, %v2903
        %v2910 = vpack.c.b16 %v2906, %v2905
        %v2911 = vpack.c.b16 %v2908, %v2907
        %vm2915 = vcmask 392192
        %v2917 = vsel %vm2915, %v2868, 0
        %v2920 = vsel %vm2915, %v2869, 0
        %v2923 = vsel %vm2915, %v2870, 0
        %v2926 = vsel %vm2915, %v2871, 0
        %v2929 = vsel %vm2915, %v2872, 0
        %v2932 = vsel %vm2915, %v2873, 0
        %v2935 = vsel %vm2915, %v2874, 0
        %v2938 = vsel %vm2915, %v2875, 0
        %v2941 = vsel %vm2915, %v2876, 0
        %v2944 = vsel %vm2915, %v2877, 0
        %v2947 = vsel %vm2915, %v2878, 0
        %v2950 = vsel %vm2915, %v2879, 0
        %v2953 = vsel %vm2915, %v2880, 0
        %v2956 = vsel %vm2915, %v2881, 0
        %v2959 = vsel %vm2915, %v2882, 0
        %v2962 = vsel %vm2915, %v2883, 0
        %2964 = vmatprep.subr.bf16.mxu0 0
        %2965 = vmatpush1.bf16.msra.mxu0 %v2909
        %2966 = vmatprep.subr.bf16.mxu0 0
        %2967 = vmatpush1.bf16.msra.mxu0 %v2910
        %2968 = vmatprep.subr.bf16.mxu0 0
        %2969 = vmatpush1.bf16.msra.mxu0 %v2911
        %2970 = vmatprep.subr.bf16.mxu0 0
        %2971 = vmatpush1.bf16.msra.mxu0 0
        %2972 = vmatprep.subr.bf16.mxu0 0
        %2973 = vmatpush1.bf16.msra.mxu0 0
        %2974 = vmatprep.subr.bf16.mxu0 0
        %2975 = vmatpush1.bf16.msra.mxu0 0
        %2976 = vmatprep.subr.bf16.mxu0 0
        %2977 = vmatpush1.bf16.msra.mxu0 0
        %2978 = vmatprep.subr.bf16.mxu0 0
        %2979 = vmatpush1.bf16.msra.mxu0 0
        %2980 = vmatprep.subr.bf16.mxu0 0
        %2981 = vmatpush1.bf16.msra.mxu0 0
        %2982 = vmatprep.subr.bf16.mxu0 0
        %2983 = vmatpush1.bf16.msra.mxu0 0
        %2984 = vmatprep.subr.bf16.mxu0 0
        %2985 = vmatpush1.bf16.msra.mxu0 0
        %2986 = vmatprep.subr.bf16.mxu0 0
        %2987 = vmatpush1.bf16.msra.mxu0 0
        %2988 = vmatprep.subr.bf16.mxu0 0
        %2989 = vmatpush1.bf16.msra.mxu0 0
        %2990 = vmatprep.subr.bf16.mxu0 0
        %2991 = vmatpush1.bf16.msra.mxu0 0
        %2992 = vmatprep.subr.bf16.mxu0 0
        %2993 = vmatpush1.bf16.msra.mxu0 0
        %2994 = vmatprep.subr.bf16.mxu0 0
        %2995 = vmatpush1.bf16.msra.mxu0 0
        %2996 = vmatprep.mubr.bf16.mxu0 0
        %2997 = vmatmul.mubr.bf16.gmra.mrb[0].mxu0 %v2917
        %v2998 = vpop.f32.mrb[0].mxu0
        %v2999 = vadd.f32 0.0, %v2998
        %v3000 = vpop.f32.mrb[0].mxu0
        %v3001 = vpop.f32.mrb[0].mxu0
        %v3002 = vadd.f32 0.0, %v3001
        %v3003 = vpop.f32.mrb[0].mxu0
        %3004 = vmatprep.mubr.bf16.mxu0 0
        %3005 = vmatmul.mubr.bf16.gmra.mrb[0].mxu0 %v2920
        %v3006 = vpop.f32.mrb[0].mxu0
        %v3007 = vadd.f32 0.0, %v3006
        %v3008 = vpop.f32.mrb[0].mxu0
        %v3009 = vpop.f32.mrb[0].mxu0
        %v3010 = vadd.f32 0.0, %v3009
        %v3011 = vpop.f32.mrb[0].mxu0
        %3012 = vmatprep.mubr.bf16.mxu0 0
        %3013 = vmatmul.mubr.bf16.gmra.mrb[0].mxu0 %v2923
        %v3014 = vpop.f32.mrb[0].mxu0
        %v3015 = vadd.f32 0.0, %v3014
        %v3016 = vpop.f32.mrb[0].mxu0
        %v3017 = vpop.f32.mrb[0].mxu0
        %v3018 = vadd.f32 0.0, %v3017
        %v3019 = vpop.f32.mrb[0].mxu0
        %3020 = vmatprep.mubr.bf16.mxu0 0
        %3021 = vmatmul.mubr.bf16.gmra.mrb[0].mxu0 %v2926
        %v3022 = vpop.f32.mrb[0].mxu0
        %v3023 = vadd.f32 0.0, %v3022
        %v3024 = vpop.f32.mrb[0].mxu0
        %v3025 = vpop.f32.mrb[0].mxu0
        %v3026 = vadd.f32 0.0, %v3025
        %v3027 = vpop.f32.mrb[0].mxu0
        %3028 = vmatprep.mubr.bf16.mxu0 0
        %3029 = vmatmul.mubr.bf16.gmra.mrb[0].mxu0 %v2929
        %v3030 = vpop.f32.mrb[0].mxu0
        %v3031 = vadd.f32 0.0, %v3030
        %v3032 = vpop.f32.mrb[0].mxu0
        %v3033 = vpop.f32.mrb[0].mxu0
        %v3034 = vadd.f32 0.0, %v3033
        %v3035 = vpop.f32.mrb[0].mxu0
        %3036 = vmatprep.mubr.bf16.mxu0 0
        %3037 = vmatmul.mubr.bf16.gmra.mrb[0].mxu0 %v2932
        %v3038 = vpop.f32.mrb[0].mxu0
        %v3039 = vadd.f32 0.0, %v3038
        %v3040 = vpop.f32.mrb[0].mxu0
        %v3041 = vpop.f32.mrb[0].mxu0
        %v3042 = vadd.f32 0.0, %v3041
        %v3043 = vpop.f32.mrb[0].mxu0
        %3044 = vmatprep.mubr.bf16.mxu0 0
        %3045 = vmatmul.mubr.bf16.gmra.mrb[0].mxu0 %v2935
        %v3046 = vpop.f32.mrb[0].mxu0
        %v3047 = vadd.f32 0.0, %v3046
        %v3048 = vpop.f32.mrb[0].mxu0
        %v3049 = vpop.f32.mrb[0].mxu0
        %v3050 = vadd.f32 0.0, %v3049
        %v3051 = vpop.f32.mrb[0].mxu0
        %3052 = vmatprep.mubr.bf16.mxu0 0
        %3053 = vmatmul.mubr.bf16.gmra.mrb[0].mxu0 %v2938
        %v3054 = vpop.f32.mrb[0].mxu0
        %v3055 = vadd.f32 0.0, %v3054
        %v3056 = vpop.f32.mrb[0].mxu0
        %v3057 = vpop.f32.mrb[0].mxu0
        %v3058 = vadd.f32 0.0, %v3057
        %v3059 = vpop.f32.mrb[0].mxu0
        %3060 = vmatprep.mubr.bf16.mxu0 0
        %3061 = vmatmul.mubr.bf16.gmra.mrb[0].mxu0 %v2941
        %v3062 = vpop.f32.mrb[0].mxu0
        %v3063 = vadd.f32 0.0, %v3062
        %v3064 = vpop.f32.mrb[0].mxu0
        %v3065 = vpop.f32.mrb[0].mxu0
        %v3066 = vadd.f32 0.0, %v3065
        %v3067 = vpop.f32.mrb[0].mxu0
        %3068 = vmatprep.mubr.bf16.mxu0 0
        %3069 = vmatmul.mubr.bf16.gmra.mrb[0].mxu0 %v2944
        %v3070 = vpop.f32.mrb[0].mxu0
        %v3071 = vadd.f32 0.0, %v3070
        %v3072 = vpop.f32.mrb[0].mxu0
        %v3073 = vpop.f32.mrb[0].mxu0
        %v3074 = vadd.f32 0.0, %v3073
        %v3075 = vpop.f32.mrb[0].mxu0
        %3076 = vmatprep.mubr.bf16.mxu0 0
        %3077 = vmatmul.mubr.bf16.gmra.mrb[0].mxu0 %v2947
        %v3078 = vpop.f32.mrb[0].mxu0
        %v3079 = vadd.f32 0.0, %v3078
        %v3080 = vpop.f32.mrb[0].mxu0
        %v3081 = vpop.f32.mrb[0].mxu0
        %v3082 = vadd.f32 0.0, %v3081
        %v3083 = vpop.f32.mrb[0].mxu0
        %3084 = vmatprep.mubr.bf16.mxu0 0
        %3085 = vmatmul.mubr.bf16.gmra.mrb[0].mxu0 %v2950
        %v3086 = vpop.f32.mrb[0].mxu0
        %v3087 = vadd.f32 0.0, %v3086
        %v3088 = vpop.f32.mrb[0].mxu0
        %v3089 = vpop.f32.mrb[0].mxu0
        %v3090 = vadd.f32 0.0, %v3089
        %v3091 = vpop.f32.mrb[0].mxu0
        %3092 = vmatprep.mubr.bf16.mxu0 0
        %3093 = vmatmul.mubr.bf16.gmra.mrb[0].mxu0 %v2953
        %v3094 = vpop.f32.mrb[0].mxu0
        %v3095 = vadd.f32 0.0, %v3094
        %v3096 = vpop.f32.mrb[0].mxu0
        %v3097 = vpop.f32.mrb[0].mxu0
        %v3098 = vadd.f32 0.0, %v3097
        %v3099 = vpop.f32.mrb[0].mxu0
        %3100 = vmatprep.mubr.bf16.mxu0 0
        %3101 = vmatmul.mubr.bf16.gmra.mrb[0].mxu0 %v2956
        %v3102 = vpop.f32.mrb[0].mxu0
        %v3103 = vadd.f32 0.0, %v3102
        %v3104 = vpop.f32.mrb[0].mxu0
        %v3105 = vpop.f32.mrb[0].mxu0
        %v3106 = vadd.f32 0.0, %v3105
        %v3107 = vpop.f32.mrb[0].mxu0
        %3108 = vmatprep.mubr.bf16.mxu0 0
        %3109 = vmatmul.mubr.bf16.gmra.mrb[0].mxu0 %v2959
        %v3110 = vpop.f32.mrb[0].mxu0
        %v3111 = vadd.f32 0.0, %v3110
        %v3112 = vpop.f32.mrb[0].mxu0
        %v3113 = vpop.f32.mrb[0].mxu0
        %v3114 = vadd.f32 0.0, %v3113
        %v3115 = vpop.f32.mrb[0].mxu0
        %3116 = vmatprep.mubr.bf16.mxu0 0
        %3117 = vmatmul.mubr.bf16.gmra.mrb[0].mxu0 %v2962
        %v3118 = vpop.f32.mrb[0].mxu0
        %v3119 = vadd.f32 0.0, %v3118
        %v3120 = vpop.f32.mrb[0].mxu0
        %v3121 = vpop.f32.mrb[0].mxu0
        %v3122 = vadd.f32 0.0, %v3121
        %v3123 = vpop.f32.mrb[0].mxu0
        %3124 = vdwg.mxu0
        %v3131 = vunpack.c.l.b16 %v2884
        %v3132 = vunpack.c.l.b16 %v2885
        %v3133 = vunpack.c.l.b16 %v2886
        %v3134 = vunpack.c.l.b16 %v2887
        %v3135 = vunpack.c.l.b16 %v2888
        %v3136 = vunpack.c.l.b16 %v2889
        %v3137 = vpack.c.b16 %v3132, %v3131
        %v3138 = vpack.c.b16 %v3134, %v3133
        %v3139 = vpack.c.b16 %v3136, %v3135
        %v3144 = vsel %vm2915, %v2867, 0
        %3146 = vmatprep.subr.bf16.mxu0 0
        %3147 = vmatpush1.bf16.msra.mxu0 %v3137
        %3148 = vmatprep.subr.bf16.mxu0 0
        %3149 = vmatpush1.bf16.msra.mxu0 %v3138
        %3150 = vmatprep.subr.bf16.mxu0 0
        %3151 = vmatpush1.bf16.msra.mxu0 %v3139
        %3152 = vmatprep.subr.bf16.mxu0 0
        %3153 = vmatpush1.bf16.msra.mxu0 0
        %3154 = vmatprep.subr.bf16.mxu0 0
        %3155 = vmatpush1.bf16.msra.mxu0 0
        %3156 = vmatprep.subr.bf16.mxu0 0
        %3157 = vmatpush1.bf16.msra.mxu0 0
        %3158 = vmatprep.subr.bf16.mxu0 0
        %3159 = vmatpush1.bf16.msra.mxu0 0
        %3160 = vmatprep.subr.bf16.mxu0 0
        %3161 = vmatpush1.bf16.msra.mxu0 0
        %3162 = vmatprep.subr.bf16.mxu0 0
        %3163 = vmatpush1.bf16.msra.mxu0 0
        %3164 = vmatprep.subr.bf16.mxu0 0
        %3165 = vmatpush1.bf16.msra.mxu0 0
        %3166 = vmatprep.subr.bf16.mxu0 0
        %3167 = vmatpush1.bf16.msra.mxu0 0
        %3168 = vmatprep.subr.bf16.mxu0 0
        %3169 = vmatpush1.bf16.msra.mxu0 0
        %3170 = vmatprep.subr.bf16.mxu0 0
        %3171 = vmatpush1.bf16.msra.mxu0 0
        %3172 = vmatprep.subr.bf16.mxu0 0
        %3173 = vmatpush1.bf16.msra.mxu0 0
        %3174 = vmatprep.subr.bf16.mxu0 0
        %3175 = vmatpush1.bf16.msra.mxu0 0
        %3176 = vmatprep.subr.bf16.mxu0 0
        %3177 = vmatpush1.bf16.msra.mxu0 0
        %3178 = vmatprep.mubr.bf16.mxu0 0
        %3179 = vmatmul.mubr.bf16.gmra.mrb[0].mxu0 %v3144
        %v3180 = vpop.f32.mrb[0].mxu0
        %v3181 = vadd.f32 %v2999, %v3180
        %v3182 = vpop.f32.mrb[0].mxu0
        %v3183 = vpop.f32.mrb[0].mxu0
        %v3184 = vadd.f32 %v3002, %v3183
        %v3185 = vpop.f32.mrb[0].mxu0
        %3186 = vmatprep.mubr.bf16.mxu0 0
        %3187 = vmatmul.mubr.bf16.gmra.mrb[0].mxu0 %v2917
        %v3188 = vpop.f32.mrb[0].mxu0
        %v3189 = vadd.f32 %v3007, %v3188
        %v3190 = vpop.f32.mrb[0].mxu0
        %v3191 = vpop.f32.mrb[0].mxu0
        %v3192 = vadd.f32 %v3010, %v3191
        %v3193 = vpop.f32.mrb[0].mxu0
        %3194 = vmatprep.mubr.bf16.mxu0 0
        %3195 = vmatmul.mubr.bf16.gmra.mrb[0].mxu0 %v2920
        %v3196 = vpop.f32.mrb[0].mxu0
        %v3197 = vadd.f32 %v3015, %v3196
        %v3198 = vpop.f32.mrb[0].mxu0
        %v3199 = vpop.f32.mrb[0].mxu0
        %v3200 = vadd.f32 %v3018, %v3199
        %v3201 = vpop.f32.mrb[0].mxu0
        %3202 = vmatprep.mubr.bf16.mxu0 0
        %3203 = vmatmul.mubr.bf16.gmra.mrb[0].mxu0 %v2923
        %v3204 = vpop.f32.mrb[0].mxu0
        %v3205 = vadd.f32 %v3023, %v3204
        %v3206 = vpop.f32.mrb[0].mxu0
        %v3207 = vpop.f32.mrb[0].mxu0
        %v3208 = vadd.f32 %v3026, %v3207
        %v3209 = vpop.f32.mrb[0].mxu0
        %3210 = vmatprep.mubr.bf16.mxu0 0
        %3211 = vmatmul.mubr.bf16.gmra.mrb[0].mxu0 %v2926
        %v3212 = vpop.f32.mrb[0].mxu0
        %v3213 = vadd.f32 %v3031, %v3212
        %v3214 = vpop.f32.mrb[0].mxu0
        %v3215 = vpop.f32.mrb[0].mxu0
        %v3216 = vadd.f32 %v3034, %v3215
        %v3217 = vpop.f32.mrb[0].mxu0
        %3218 = vmatprep.mubr.bf16.mxu0 0
        %3219 = vmatmul.mubr.bf16.gmra.mrb[0].mxu0 %v2929
        %v3220 = vpop.f32.mrb[0].mxu0
        %v3221 = vadd.f32 %v3039, %v3220
        %v3222 = vpop.f32.mrb[0].mxu0
        %v3223 = vpop.f32.mrb[0].mxu0
        %v3224 = vadd.f32 %v3042, %v3223
        %v3225 = vpop.f32.mrb[0].mxu0
        %3226 = vmatprep.mubr.bf16.mxu0 0
        %3227 = vmatmul.mubr.bf16.gmra.mrb[0].mxu0 %v2932
        %v3228 = vpop.f32.mrb[0].mxu0
        %v3229 = vadd.f32 %v3047, %v3228
        %v3230 = vpop.f32.mrb[0].mxu0
        %v3231 = vpop.f32.mrb[0].mxu0
        %v3232 = vadd.f32 %v3050, %v3231
        %v3233 = vpop.f32.mrb[0].mxu0
        %3234 = vmatprep.mubr.bf16.mxu0 0
        %3235 = vmatmul.mubr.bf16.gmra.mrb[0].mxu0 %v2935
        %v3236 = vpop.f32.mrb[0].mxu0
        %v3237 = vadd.f32 %v3055, %v3236
        %v3238 = vpop.f32.mrb[0].mxu0
        %v3239 = vpop.f32.mrb[0].mxu0
        %v3240 = vadd.f32 %v3058, %v3239
        %v3241 = vpop.f32.mrb[0].mxu0
        %3242 = vmatprep.mubr.bf16.mxu0 0
        %3243 = vmatmul.mubr.bf16.gmra.mrb[0].mxu0 %v2938
        %v3244 = vpop.f32.mrb[0].mxu0
        %v3245 = vadd.f32 %v3063, %v3244
        %v3246 = vpop.f32.mrb[0].mxu0
        %v3247 = vpop.f32.mrb[0].mxu0
        %v3248 = vadd.f32 %v3066, %v3247
        %v3249 = vpop.f32.mrb[0].mxu0
        %3250 = vmatprep.mubr.bf16.mxu0 0
        %3251 = vmatmul.mubr.bf16.gmra.mrb[0].mxu0 %v2941
        %v3252 = vpop.f32.mrb[0].mxu0
        %v3253 = vadd.f32 %v3071, %v3252
        %v3254 = vpop.f32.mrb[0].mxu0
        %v3255 = vpop.f32.mrb[0].mxu0
        %v3256 = vadd.f32 %v3074, %v3255
        %v3257 = vpop.f32.mrb[0].mxu0
        %3258 = vmatprep.mubr.bf16.mxu0 0
        %3259 = vmatmul.mubr.bf16.gmra.mrb[0].mxu0 %v2944
        %v3260 = vpop.f32.mrb[0].mxu0
        %v3261 = vadd.f32 %v3079, %v3260
        %v3262 = vpop.f32.mrb[0].mxu0
        %v3263 = vpop.f32.mrb[0].mxu0
        %v3264 = vadd.f32 %v3082, %v3263
        %v3265 = vpop.f32.mrb[0].mxu0
        %3266 = vmatprep.mubr.bf16.mxu0 0
        %3267 = vmatmul.mubr.bf16.gmra.mrb[0].mxu0 %v2947
        %v3268 = vpop.f32.mrb[0].mxu0
        %v3269 = vadd.f32 %v3087, %v3268
        %v3270 = vpop.f32.mrb[0].mxu0
        %v3271 = vpop.f32.mrb[0].mxu0
        %v3272 = vadd.f32 %v3090, %v3271
        %v3273 = vpop.f32.mrb[0].mxu0
        %3274 = vmatprep.mubr.bf16.mxu0 0
        %3275 = vmatmul.mubr.bf16.gmra.mrb[0].mxu0 %v2950
        %v3276 = vpop.f32.mrb[0].mxu0
        %v3277 = vadd.f32 %v3095, %v3276
        %v3278 = vpop.f32.mrb[0].mxu0
        %v3279 = vpop.f32.mrb[0].mxu0
        %v3280 = vadd.f32 %v3098, %v3279
        %v3281 = vpop.f32.mrb[0].mxu0
        %3282 = vmatprep.mubr.bf16.mxu0 0
        %3283 = vmatmul.mubr.bf16.gmra.mrb[0].mxu0 %v2953
        %v3284 = vpop.f32.mrb[0].mxu0
        %v3285 = vadd.f32 %v3103, %v3284
        %v3286 = vpop.f32.mrb[0].mxu0
        %v3287 = vpop.f32.mrb[0].mxu0
        %v3288 = vadd.f32 %v3106, %v3287
        %v3289 = vpop.f32.mrb[0].mxu0
        %3290 = vmatprep.mubr.bf16.mxu0 0
        %3291 = vmatmul.mubr.bf16.gmra.mrb[0].mxu0 %v2956
        %v3292 = vpop.f32.mrb[0].mxu0
        %v3293 = vadd.f32 %v3111, %v3292
        %v3294 = vpop.f32.mrb[0].mxu0
        %v3295 = vpop.f32.mrb[0].mxu0
        %v3296 = vadd.f32 %v3114, %v3295
        %v3297 = vpop.f32.mrb[0].mxu0
        %3298 = vmatprep.mubr.bf16.mxu0 0
        %3299 = vmatmul.mubr.bf16.gmra.mrb[0].mxu0 %v2959
        %v3300 = vpop.f32.mrb[0].mxu0
        %v3301 = vadd.f32 %v3119, %v3300
        %v3302 = vpop.f32.mrb[0].mxu0
        %v3303 = vpop.f32.mrb[0].mxu0
        %v3304 = vadd.f32 %v3122, %v3303
        %v3305 = vpop.f32.mrb[0].mxu0
        %3306 = vdwg.mxu0
        %s3307 = scalar_lea.vmem %s1, 48
        %v3308 = vld [vmem:[%s3307] sm:$0xf]
        %v3309 = vld [vmem:[%s3307 + $0x4] sm:$0xf]
        %v3310 = vld [vmem:[%s3307 + $0x8] sm:$0xf]
        %v3311 = vld [vmem:[%s3307 + $0xc] sm:$0xf]
        %v3312 = vld [vmem:[%s3307 + $0x10] sm:$0xf]
        %v3313 = vld [vmem:[%s3307 + $0x14] sm:$0xf]
        %v3320 = vunpack.c.l.b16 %v3308
        %v3321 = vunpack.c.l.b16 %v3309
        %v3322 = vunpack.c.l.b16 %v3310
        %v3323 = vunpack.c.l.b16 %v3311
        %v3324 = vunpack.c.l.b16 %v3312
        %v3325 = vunpack.c.l.b16 %v3313
        %v3326 = vpack.c.b16 %v3321, %v3320
        %v3327 = vpack.c.b16 %v3323, %v3322
        %v3328 = vpack.c.b16 %v3325, %v3324
        %3332 = vmatprep.subr.bf16.mxu0 0
        %3333 = vmatpush1.bf16.msra.mxu0 %v3326
        %3334 = vmatprep.subr.bf16.mxu0 0
        %3335 = vmatpush1.bf16.msra.mxu0 %v3327
        %3336 = vmatprep.subr.bf16.mxu0 0
        %3337 = vmatpush1.bf16.msra.mxu0 %v3328
        %3338 = vmatprep.subr.bf16.mxu0 0
        %3339 = vmatpush1.bf16.msra.mxu0 0
        %3340 = vmatprep.subr.bf16.mxu0 0
        %3341 = vmatpush1.bf16.msra.mxu0 0
        %3342 = vmatprep.subr.bf16.mxu0 0
        %3343 = vmatpush1.bf16.msra.mxu0 0
        %3344 = vmatprep.subr.bf16.mxu0 0
        %3345 = vmatpush1.bf16.msra.mxu0 0
        %3346 = vmatprep.subr.bf16.mxu0 0
        %3347 = vmatpush1.bf16.msra.mxu0 0
        %3348 = vmatprep.subr.bf16.mxu0 0
        %3349 = vmatpush1.bf16.msra.mxu0 0
        %3350 = vmatprep.subr.bf16.mxu0 0
        %3351 = vmatpush1.bf16.msra.mxu0 0
        %3352 = vmatprep.subr.bf16.mxu0 0
        %3353 = vmatpush1.bf16.msra.mxu0 0
        %3354 = vmatprep.subr.bf16.mxu0 0
        %3355 = vmatpush1.bf16.msra.mxu0 0
        %3356 = vmatprep.subr.bf16.mxu0 0
        %3357 = vmatpush1.bf16.msra.mxu0 0
        %3358 = vmatprep.subr.bf16.mxu0 0
        %3359 = vmatpush1.bf16.msra.mxu0 0
        %3360 = vmatprep.subr.bf16.mxu0 0
        %3361 = vmatpush1.bf16.msra.mxu0 0
        %3362 = vmatprep.subr.bf16.mxu0 0
        %3363 = vmatpush1.bf16.msra.mxu0 0
        %3364 = vmatprep.mubr.bf16.mxu0 0
        %3365 = vmatmul.mubr.bf16.gmra.mrb[0].mxu0 %v2920
        %v3366 = vpop.f32.mrb[0].mxu0
        %v3367 = vadd.f32 0.0, %v3366
        %v3368 = vpop.f32.mrb[0].mxu0
        %v3369 = vpop.f32.mrb[0].mxu0
        %v3370 = vadd.f32 0.0, %v3369
        %v3371 = vpop.f32.mrb[0].mxu0
        %3372 = vmatprep.mubr.bf16.mxu0 0
        %3373 = vmatmul.mubr.bf16.gmra.mrb[0].mxu0 %v2923
        %v3374 = vpop.f32.mrb[0].mxu0
        %v3375 = vadd.f32 0.0, %v3374
        %v3376 = vpop.f32.mrb[0].mxu0
        %v3377 = vpop.f32.mrb[0].mxu0
        %v3378 = vadd.f32 0.0, %v3377
        %v3379 = vpop.f32.mrb[0].mxu0
        %3380 = vmatprep.mubr.bf16.mxu0 0
        %3381 = vmatmul.mubr.bf16.gmra.mrb[0].mxu0 %v2926
        %v3382 = vpop.f32.mrb[0].mxu0
        %v3383 = vadd.f32 0.0, %v3382
        %v3384 = vpop.f32.mrb[0].mxu0
        %v3385 = vpop.f32.mrb[0].mxu0
        %v3386 = vadd.f32 0.0, %v3385
        %v3387 = vpop.f32.mrb[0].mxu0
        %3388 = vmatprep.mubr.bf16.mxu0 0
        %3389 = vmatmul.mubr.bf16.gmra.mrb[0].mxu0 %v2929
        %v3390 = vpop.f32.mrb[0].mxu0
        %v3391 = vadd.f32 0.0, %v3390
        %v3392 = vpop.f32.mrb[0].mxu0
        %v3393 = vpop.f32.mrb[0].mxu0
        %v3394 = vadd.f32 0.0, %v3393
        %v3395 = vpop.f32.mrb[0].mxu0
        %3396 = vmatprep.mubr.bf16.mxu0 0
        %3397 = vmatmul.mubr.bf16.gmra.mrb[0].mxu0 %v2932
        %v3398 = vpop.f32.mrb[0].mxu0
        %v3399 = vadd.f32 0.0, %v3398
        %v3400 = vpop.f32.mrb[0].mxu0
        %v3401 = vpop.f32.mrb[0].mxu0
        %v3402 = vadd.f32 0.0, %v3401
        %v3403 = vpop.f32.mrb[0].mxu0
        %3404 = vmatprep.mubr.bf16.mxu0 0
        %3405 = vmatmul.mubr.bf16.gmra.mrb[0].mxu0 %v2935
        %v3406 = vpop.f32.mrb[0].mxu0
        %v3407 = vadd.f32 0.0, %v3406
        %v3408 = vpop.f32.mrb[0].mxu0
        %v3409 = vpop.f32.mrb[0].mxu0
        %v3410 = vadd.f32 0.0, %v3409
        %v3411 = vpop.f32.mrb[0].mxu0
        %3412 = vmatprep.mubr.bf16.mxu0 0
        %3413 = vmatmul.mubr.bf16.gmra.mrb[0].mxu0 %v2938
        %v3414 = vpop.f32.mrb[0].mxu0
        %v3415 = vadd.f32 0.0, %v3414
        %v3416 = vpop.f32.mrb[0].mxu0
        %v3417 = vpop.f32.mrb[0].mxu0
        %v3418 = vadd.f32 0.0, %v3417
        %v3419 = vpop.f32.mrb[0].mxu0
        %3420 = vmatprep.mubr.bf16.mxu0 0
        %3421 = vmatmul.mubr.bf16.gmra.mrb[0].mxu0 %v2941
        %v3422 = vpop.f32.mrb[0].mxu0
        %v3423 = vadd.f32 0.0, %v3422
        %v3424 = vpop.f32.mrb[0].mxu0
        %v3425 = vpop.f32.mrb[0].mxu0
        %v3426 = vadd.f32 0.0, %v3425
        %v3427 = vpop.f32.mrb[0].mxu0
        %3428 = vmatprep.mubr.bf16.mxu0 0
        %3429 = vmatmul.mubr.bf16.gmra.mrb[0].mxu0 %v2944
        %v3430 = vpop.f32.mrb[0].mxu0
        %v3431 = vadd.f32 0.0, %v3430
        %v3432 = vpop.f32.mrb[0].mxu0
        %v3433 = vpop.f32.mrb[0].mxu0
        %v3434 = vadd.f32 0.0, %v3433
        %v3435 = vpop.f32.mrb[0].mxu0
        %3436 = vmatprep.mubr.bf16.mxu0 0
        %3437 = vmatmul.mubr.bf16.gmra.mrb[0].mxu0 %v2947
        %v3438 = vpop.f32.mrb[0].mxu0
        %v3439 = vadd.f32 0.0, %v3438
        %v3440 = vpop.f32.mrb[0].mxu0
        %v3441 = vpop.f32.mrb[0].mxu0
        %v3442 = vadd.f32 0.0, %v3441
        %v3443 = vpop.f32.mrb[0].mxu0
        %3444 = vmatprep.mubr.bf16.mxu0 0
        %3445 = vmatmul.mubr.bf16.gmra.mrb[0].mxu0 %v2950
        %v3446 = vpop.f32.mrb[0].mxu0
        %v3447 = vadd.f32 0.0, %v3446
        %v3448 = vpop.f32.mrb[0].mxu0
        %v3449 = vpop.f32.mrb[0].mxu0
        %v3450 = vadd.f32 0.0, %v3449
        %v3451 = vpop.f32.mrb[0].mxu0
        %3452 = vmatprep.mubr.bf16.mxu0 0
        %3453 = vmatmul.mubr.bf16.gmra.mrb[0].mxu0 %v2953
        %v3454 = vpop.f32.mrb[0].mxu0
        %v3455 = vadd.f32 0.0, %v3454
        %v3456 = vpop.f32.mrb[0].mxu0
        %v3457 = vpop.f32.mrb[0].mxu0
        %v3458 = vadd.f32 0.0, %v3457
        %v3459 = vpop.f32.mrb[0].mxu0
        %3460 = vmatprep.mubr.bf16.mxu0 0
        %3461 = vmatmul.mubr.bf16.gmra.mrb[0].mxu0 %v2956
        %v3462 = vpop.f32.mrb[0].mxu0
        %v3463 = vadd.f32 0.0, %v3462
        %v3464 = vpop.f32.mrb[0].mxu0
        %v3465 = vpop.f32.mrb[0].mxu0
        %v3466 = vadd.f32 0.0, %v3465
        %v3467 = vpop.f32.mrb[0].mxu0
        %3468 = vmatprep.mubr.bf16.mxu0 0
        %3469 = vmatmul.mubr.bf16.gmra.mrb[0].mxu0 %v2959
        %v3470 = vpop.f32.mrb[0].mxu0
        %v3471 = vadd.f32 0.0, %v3470
        %v3472 = vpop.f32.mrb[0].mxu0
        %v3473 = vpop.f32.mrb[0].mxu0
        %v3474 = vadd.f32 0.0, %v3473
        %v3475 = vpop.f32.mrb[0].mxu0
        %3476 = vmatprep.mubr.bf16.mxu0 0
        %3477 = vmatmul.mubr.bf16.gmra.mrb[0].mxu0 %v2962
        %v3478 = vpop.f32.mrb[0].mxu0
        %v3479 = vadd.f32 0.0, %v3478
        %v3480 = vpop.f32.mrb[0].mxu0
        %v3481 = vpop.f32.mrb[0].mxu0
        %v3482 = vadd.f32 0.0, %v3481
        %v3483 = vpop.f32.mrb[0].mxu0
        %3484 = vmatprep.mubr.bf16.mxu0 0
        %3485 = vmatmul.mubr.bf16.gmra.mrb[0].mxu0 %v3144
        %v3486 = vpop.f32.mrb[0].mxu0
        %v3487 = vadd.f32 0.0, %v3486
        %v3488 = vpop.f32.mrb[0].mxu0
        %v3489 = vpop.f32.mrb[0].mxu0
        %v3490 = vadd.f32 0.0, %v3489
        %v3491 = vpop.f32.mrb[0].mxu0
        %3492 = vdwg.mxu0
        %v3493 = vadd.f32 %v3181, %v3367
        %v3494 = vadd.f32 %v3184, %v3370
        %v3495 = vadd.f32 %v3189, %v3375
        %v3496 = vadd.f32 %v3192, %v3378
        %v3497 = vadd.f32 %v3197, %v3383
        %v3498 = vadd.f32 %v3200, %v3386
        %v3499 = vadd.f32 %v3205, %v3391
        %v3500 = vadd.f32 %v3208, %v3394
        %v3501 = vadd.f32 %v3213, %v3399
        %v3502 = vadd.f32 %v3216, %v3402
        %v3503 = vadd.f32 %v3221, %v3407
        %v3504 = vadd.f32 %v3224, %v3410
        %v3505 = vadd.f32 %v3229, %v3415
        %v3506 = vadd.f32 %v3232, %v3418
        %v3507 = vadd.f32 %v3237, %v3423
        %v3508 = vadd.f32 %v3240, %v3426
        %v3509 = vadd.f32 %v3245, %v3431
        %v3510 = vadd.f32 %v3248, %v3434
        %v3511 = vadd.f32 %v3253, %v3439
        %v3512 = vadd.f32 %v3256, %v3442
        %v3513 = vadd.f32 %v3261, %v3447
        %v3514 = vadd.f32 %v3264, %v3450
        %v3515 = vadd.f32 %v3269, %v3455
        %v3516 = vadd.f32 %v3272, %v3458
        %v3517 = vadd.f32 %v3277, %v3463
        %v3518 = vadd.f32 %v3280, %v3466
        %v3519 = vadd.f32 %v3285, %v3471
        %v3520 = vadd.f32 %v3288, %v3474
        %v3521 = vadd.f32 %v3293, %v3479
        %v3522 = vadd.f32 %v3296, %v3482
        %v3523 = vadd.f32 %v3301, %v3487
        %v3524 = vadd.f32 %v3304, %v3490
        %v3525 = vxor.u32 %v3493, 2147483648
        %v3526 = vxor.u32 %v3494, 2147483648
        %v3527 = vxor.u32 %v3495, 2147483648
        %v3528 = vxor.u32 %v3496, 2147483648
        %v3529 = vxor.u32 %v3497, 2147483648
        %v3530 = vxor.u32 %v3498, 2147483648
        %v3531 = vxor.u32 %v3499, 2147483648
        %v3532 = vxor.u32 %v3500, 2147483648
        %v3533 = vxor.u32 %v3501, 2147483648
        %v3534 = vxor.u32 %v3502, 2147483648
        %v3535 = vxor.u32 %v3503, 2147483648
        %v3536 = vxor.u32 %v3504, 2147483648
        %v3537 = vxor.u32 %v3505, 2147483648
        %v3538 = vxor.u32 %v3506, 2147483648
        %v3539 = vxor.u32 %v3507, 2147483648
        %v3540 = vxor.u32 %v3508, 2147483648
        %v3541 = vxor.u32 %v3509, 2147483648
        %v3542 = vxor.u32 %v3510, 2147483648
        %v3543 = vxor.u32 %v3511, 2147483648
        %v3544 = vxor.u32 %v3512, 2147483648
        %v3545 = vxor.u32 %v3513, 2147483648
        %v3546 = vxor.u32 %v3514, 2147483648
        %v3547 = vxor.u32 %v3515, 2147483648
        %v3548 = vxor.u32 %v3516, 2147483648
        %v3549 = vxor.u32 %v3517, 2147483648
        %v3550 = vxor.u32 %v3518, 2147483648
        %v3551 = vxor.u32 %v3519, 2147483648
        %v3552 = vxor.u32 %v3520, 2147483648
        %v3553 = vxor.u32 %v3521, 2147483648
        %v3554 = vxor.u32 %v3522, 2147483648
        %v3555 = vxor.u32 %v3523, 2147483648
        %v3556 = vxor.u32 %v3524, 2147483648
        %v3557 = vmul.f32 %v3525, 1.442695
        %v3558 = vpow.pop %v3557
        %v3559 = vmul.f32 %v3526, 1.442695
        %v3560 = vpow.pop %v3559
        %v3561 = vmul.f32 %v3527, 1.442695
        %v3562 = vpow.pop %v3561
        %v3563 = vmul.f32 %v3528, 1.442695
        %v3564 = vpow.pop %v3563
        %v3565 = vmul.f32 %v3529, 1.442695
        %v3566 = vpow.pop %v3565
        %v3567 = vmul.f32 %v3530, 1.442695
        %v3568 = vpow.pop %v3567
        %v3569 = vmul.f32 %v3531, 1.442695
        %v3570 = vpow.pop %v3569
        %v3571 = vmul.f32 %v3532, 1.442695
        %v3572 = vpow.pop %v3571
        %v3573 = vmul.f32 %v3533, 1.442695
        %v3574 = vpow.pop %v3573
        %v3575 = vmul.f32 %v3534, 1.442695
        %v3576 = vpow.pop %v3575
        %v3577 = vmul.f32 %v3535, 1.442695
        %v3578 = vpow.pop %v3577
        %v3579 = vmul.f32 %v3536, 1.442695
        %v3580 = vpow.pop %v3579
        %v3581 = vmul.f32 %v3537, 1.442695
        %v3582 = vpow.pop %v3581
        %v3583 = vmul.f32 %v3538, 1.442695
        %v3584 = vpow.pop %v3583
        %v3585 = vmul.f32 %v3539, 1.442695
        %v3586 = vpow.pop %v3585
        %v3587 = vmul.f32 %v3540, 1.442695
        %v3588 = vpow.pop %v3587
        %v3589 = vmul.f32 %v3541, 1.442695
        %v3590 = vpow.pop %v3589
        %v3591 = vmul.f32 %v3542, 1.442695
        %v3592 = vpow.pop %v3591
        %v3593 = vmul.f32 %v3543, 1.442695
        %v3594 = vpow.pop %v3593
        %v3595 = vmul.f32 %v3544, 1.442695
        %v3596 = vpow.pop %v3595
        %v3597 = vmul.f32 %v3545, 1.442695
        %v3598 = vpow.pop %v3597
        %v3599 = vmul.f32 %v3546, 1.442695
        %v3600 = vpow.pop %v3599
        %v3601 = vmul.f32 %v3547, 1.442695
        %v3602 = vpow.pop %v3601
        %v3603 = vmul.f32 %v3548, 1.442695
        %v3604 = vpow.pop %v3603
        %v3605 = vmul.f32 %v3549, 1.442695
        %v3606 = vpow.pop %v3605
        %v3607 = vmul.f32 %v3550, 1.442695
        %v3608 = vpow.pop %v3607
        %v3609 = vmul.f32 %v3551, 1.442695
        %v3610 = vpow.pop %v3609
        %v3611 = vmul.f32 %v3552, 1.442695
        %v3612 = vpow.pop %v3611
        %v3613 = vmul.f32 %v3553, 1.442695
        %v3614 = vpow.pop %v3613
        %v3615 = vmul.f32 %v3554, 1.442695
        %v3616 = vpow.pop %v3615
        %v3617 = vmul.f32 %v3555, 1.442695
        %v3618 = vpow.pop %v3617
        %v3619 = vmul.f32 %v3556, 1.442695
        %v3620 = vpow.pop %v3619
        %v3621 = vadd.f32 %v3558, 1.0
        %v3622 = vadd.f32 %v3560, 1.0
        %v3623 = vadd.f32 %v3562, 1.0
        %v3624 = vadd.f32 %v3564, 1.0
        %v3625 = vadd.f32 %v3566, 1.0
        %v3626 = vadd.f32 %v3568, 1.0
        %v3627 = vadd.f32 %v3570, 1.0
        %v3628 = vadd.f32 %v3572, 1.0
        %v3629 = vadd.f32 %v3574, 1.0
        %v3630 = vadd.f32 %v3576, 1.0
        %v3631 = vadd.f32 %v3578, 1.0
        %v3632 = vadd.f32 %v3580, 1.0
        %v3633 = vadd.f32 %v3582, 1.0
        %v3634 = vadd.f32 %v3584, 1.0
        %v3635 = vadd.f32 %v3586, 1.0
        %v3636 = vadd.f32 %v3588, 1.0
        %v3637 = vadd.f32 %v3590, 1.0
        %v3638 = vadd.f32 %v3592, 1.0
        %v3639 = vadd.f32 %v3594, 1.0
        %v3640 = vadd.f32 %v3596, 1.0
        %v3641 = vadd.f32 %v3598, 1.0
        %v3642 = vadd.f32 %v3600, 1.0
        %v3643 = vadd.f32 %v3602, 1.0
        %v3644 = vadd.f32 %v3604, 1.0
        %v3645 = vadd.f32 %v3606, 1.0
        %v3646 = vadd.f32 %v3608, 1.0
        %v3647 = vadd.f32 %v3610, 1.0
        %v3648 = vadd.f32 %v3612, 1.0
        %v3649 = vadd.f32 %v3614, 1.0
        %v3650 = vadd.f32 %v3616, 1.0
        %v3651 = vadd.f32 %v3618, 1.0
        %v3652 = vadd.f32 %v3620, 1.0
        %v3653 = vrcp.pop %v3621
        %v3654 = vmul.f32 1.0, %v3653
        %v3655 = vrcp.pop %v3622
        %v3656 = vmul.f32 1.0, %v3655
        %v3657 = vrcp.pop %v3623
        %v3658 = vmul.f32 1.0, %v3657
        %v3659 = vrcp.pop %v3624
        %v3660 = vmul.f32 1.0, %v3659
        %v3661 = vrcp.pop %v3625
        %v3662 = vmul.f32 1.0, %v3661
        %v3663 = vrcp.pop %v3626
        %v3664 = vmul.f32 1.0, %v3663
        %v3665 = vrcp.pop %v3627
        %v3666 = vmul.f32 1.0, %v3665
        %v3667 = vrcp.pop %v3628
        %v3668 = vmul.f32 1.0, %v3667
        %v3669 = vrcp.pop %v3629
        %v3670 = vmul.f32 1.0, %v3669
        %v3671 = vrcp.pop %v3630
        %v3672 = vmul.f32 1.0, %v3671
        %v3673 = vrcp.pop %v3631
        %v3674 = vmul.f32 1.0, %v3673
        %v3675 = vrcp.pop %v3632
        %v3676 = vmul.f32 1.0, %v3675
        %v3677 = vrcp.pop %v3633
        %v3678 = vmul.f32 1.0, %v3677
        %v3679 = vrcp.pop %v3634
        %v3680 = vmul.f32 1.0, %v3679
        %v3681 = vrcp.pop %v3635
        %v3682 = vmul.f32 1.0, %v3681
        %v3683 = vrcp.pop %v3636
        %v3684 = vmul.f32 1.0, %v3683
        %v3685 = vrcp.pop %v3637
        %v3686 = vmul.f32 1.0, %v3685
        %v3687 = vrcp.pop %v3638
        %v3688 = vmul.f32 1.0, %v3687
        %v3689 = vrcp.pop %v3639
        %v3690 = vmul.f32 1.0, %v3689
        %v3691 = vrcp.pop %v3640
        %v3692 = vmul.f32 1.0, %v3691
        %v3693 = vrcp.pop %v3641
        %v3694 = vmul.f32 1.0, %v3693
        %v3695 = vrcp.pop %v3642
        %v3696 = vmul.f32 1.0, %v3695
        %v3697 = vrcp.pop %v3643
        %v3698 = vmul.f32 1.0, %v3697
        %v3699 = vrcp.pop %v3644
        %v3700 = vmul.f32 1.0, %v3699
        %v3701 = vrcp.pop %v3645
        %v3702 = vmul.f32 1.0, %v3701
        %v3703 = vrcp.pop %v3646
        %v3704 = vmul.f32 1.0, %v3703
        %v3705 = vrcp.pop %v3647
        %v3706 = vmul.f32 1.0, %v3705
        %v3707 = vrcp.pop %v3648
        %v3708 = vmul.f32 1.0, %v3707
        %v3709 = vrcp.pop %v3649
        %v3710 = vmul.f32 1.0, %v3709
        %v3711 = vrcp.pop %v3650
        %v3712 = vmul.f32 1.0, %v3711
        %v3713 = vrcp.pop %v3651
        %v3714 = vmul.f32 1.0, %v3713
        %v3715 = vrcp.pop %v3652
        %v3716 = vmul.f32 1.0, %v3715
        %v3717 = vmul.f32 %v143, %v3654
        %v3718 = vmul.f32 %v144, %v3656
        %v3719 = vmul.f32 %v145, %v3658
        %v3720 = vmul.f32 %v146, %v3660
        %v3721 = vmul.f32 %v147, %v3662
        %v3722 = vmul.f32 %v148, %v3664
        %v3723 = vmul.f32 %v149, %v3666
        %v3724 = vmul.f32 %v150, %v3668
        %v3725 = vmul.f32 %v151, %v3670
        %v3726 = vmul.f32 %v152, %v3672
        %v3727 = vmul.f32 %v153, %v3674
        %v3728 = vmul.f32 %v154, %v3676
        %v3729 = vmul.f32 %v155, %v3678
        %v3730 = vmul.f32 %v156, %v3680
        %v3731 = vmul.f32 %v157, %v3682
        %v3732 = vmul.f32 %v158, %v3684
        %v3733 = vmul.f32 %v159, %v3686
        %v3734 = vmul.f32 %v160, %v3688
        %v3735 = vmul.f32 %v161, %v3690
        %v3736 = vmul.f32 %v162, %v3692
        %v3737 = vmul.f32 %v163, %v3694
        %v3738 = vmul.f32 %v164, %v3696
        %v3739 = vmul.f32 %v165, %v3698
        %v3740 = vmul.f32 %v166, %v3700
        %v3741 = vmul.f32 %v167, %v3702
        %v3742 = vmul.f32 %v168, %v3704
        %v3743 = vmul.f32 %v169, %v3706
        %v3744 = vmul.f32 %v170, %v3708
        %v3745 = vmul.f32 %v171, %v3710
        %v3746 = vmul.f32 %v172, %v3712
        %v3747 = vmul.f32 %v173, %v3714
        %v3748 = vmul.f32 %v174, %v3716
        %3749 = vxpose.xlu0.b32.start [1/16] %v3717, 128
        %3750 = vxpose.xlu0.b32.cont [2/16] %v3718, 128
        %3751 = vxpose.xlu0.b32.cont [3/16] %v3719, 128
        %3752 = vxpose.xlu0.b32.cont [4/16] %v3720, 128
        %3753 = vxpose.xlu0.b32.cont [5/16] %v3721, 128
        %3754 = vxpose.xlu0.b32.cont [6/16] %v3722, 128
        %3755 = vxpose.xlu0.b32.cont [7/16] %v3723, 128
        %3756 = vxpose.xlu0.b32.cont [8/16] %v3724, 128
        %3757 = vxpose.xlu0.b32.cont [9/16] %v3725, 128
        %3758 = vxpose.xlu0.b32.cont [10/16] %v3726, 128
        %3759 = vxpose.xlu0.b32.cont [11/16] %v3727, 128
        %3760 = vxpose.xlu0.b32.cont [12/16] %v3728, 128
        %3761 = vxpose.xlu0.b32.cont [13/16] %v3729, 128
        %3762 = vxpose.xlu0.b32.cont [14/16] %v3730, 128
        %3763 = vxpose.xlu0.b32.cont [15/16] %v3731, 128
        %3764 = vxpose.xlu0.b32.end [16/16] %v3732, 128
        %v3765 = vpop.trf.xlu0
        %v3766 = vpop.trf.xlu0
        %v3767 = vpop.trf.xlu0
        %v3768 = vpop.trf.xlu0
        %v3769 = vpop.trf.xlu0
        %v3770 = vpop.trf.xlu0
        %v3771 = vpop.trf.xlu0
        %v3772 = vpop.trf.xlu0
        %v3773 = vpop.trf.xlu0
        %v3774 = vpop.trf.xlu0
        %v3775 = vpop.trf.xlu0
        %v3776 = vpop.trf.xlu0
        %v3777 = vpop.trf.xlu0
        %v3778 = vpop.trf.xlu0
        %v3779 = vpop.trf.xlu0
        %v3780 = vpop.trf.xlu0
        %3781 = vxpose.xlu0.b32.start [1/16] %v3733, 128
        %3782 = vxpose.xlu0.b32.cont [2/16] %v3734, 128
        %3783 = vxpose.xlu0.b32.cont [3/16] %v3735, 128
        %3784 = vxpose.xlu0.b32.cont [4/16] %v3736, 128
        %3785 = vxpose.xlu0.b32.cont [5/16] %v3737, 128
        %3786 = vxpose.xlu0.b32.cont [6/16] %v3738, 128
        %3787 = vxpose.xlu0.b32.cont [7/16] %v3739, 128
        %3788 = vxpose.xlu0.b32.cont [8/16] %v3740, 128
        %3789 = vxpose.xlu0.b32.cont [9/16] %v3741, 128
        %3790 = vxpose.xlu0.b32.cont [10/16] %v3742, 128
        %3791 = vxpose.xlu0.b32.cont [11/16] %v3743, 128
        %3792 = vxpose.xlu0.b32.cont [12/16] %v3744, 128
        %3793 = vxpose.xlu0.b32.cont [13/16] %v3745, 128
        %3794 = vxpose.xlu0.b32.cont [14/16] %v3746, 128
        %3795 = vxpose.xlu0.b32.cont [15/16] %v3747, 128
        %3796 = vxpose.xlu0.b32.end [16/16] %v3748, 128
        %v3797 = vpop.trf.xlu0
        %v3798 = vpop.trf.xlu0
        %v3799 = vpop.trf.xlu0
        %v3800 = vpop.trf.xlu0
        %v3801 = vpop.trf.xlu0
        %v3802 = vpop.trf.xlu0
        %v3803 = vpop.trf.xlu0
        %v3804 = vpop.trf.xlu0
        %v3805 = vpop.trf.xlu0
        %v3806 = vpop.trf.xlu0
        %v3807 = vpop.trf.xlu0
        %v3808 = vpop.trf.xlu0
        %v3809 = vpop.trf.xlu0
        %v3810 = vpop.trf.xlu0
        %v3811 = vpop.trf.xlu0
        %v3812 = vpop.trf.xlu0
        %v3815 = vcombine.low %v3765, %v3797
        %3817 = vst [vmem:[%s136] sm:$0xff] %v3815
        %s3818 = sand.u32 %s71, 1
        %s3819 = scalar_lea.sflag [#allocation3], %s3818
        %s3820 = sand.u32 %s71, 1
        %s3821 = smul.addr %s3820, 8
        %s3822 = scalar_lea.vmem [#allocation2], %s3821
        // Predicated region
        $region29: #{tpu_custom_call.1} parent=27 // pred_check
          %p3823 = pneg %p81
        $region30: #{tpu_custom_call.1} parent=27 // pred_check_branch
          %3825 = sbr.rel (%p3823) target = $region32
        $region31: #{tpu_custom_call.1} parent=27 // pred_region
          %s3827 = ssub.s32 128, 128
          %3828 = vsyncadd %s3819, %s3827
          %s3829 = smul.addr %s16, 2
          %s3830 = smul.addr %s3829, 64
          %s3831 = scalar_lea.hbm %s2, %s3830
          %s3833 = sshll.u32 %s3822, 4
          %s3834 = int_to_ptr.vmem [resolvable:$true] %s3833
          %3836 = dma.vmem_to_hbm [thread:$0]  %s3834, 128, %s3831, %s3819
        $region32: #{tpu_custom_call.1} parent=27 // pred_fallthru
          _
      $region28: #{tpu_custom_call.1} parent=5 // pred_fallthru
        _
      %p3837 = scmp.le.s32.totalorder 2, %s11
      // Predicated region
      $region33: #{tpu_custom_call.1} parent=5 // pred_check
        %p3838 = pneg %p3837
      $region34: #{tpu_custom_call.1} parent=5 // pred_check_branch
        %3840 = sbr.rel (%p3838) target = $region36
      $region35: #{tpu_custom_call.1} parent=5 // pred_region
        %s3841 = ssub.s32 %s11, 2
        // Predicated region
        $region37: #{tpu_custom_call.1} parent=35 // pred_check
          %p3842 = pneg %p87
        $region38: #{tpu_custom_call.1} parent=35 // pred_check_branch
          %3844 = sbr.rel (%p3842) target = $region40
        $region39: #{tpu_custom_call.1} parent=35 // pred_region
          %s3845 = sand.u32 %s72, 1
          %s3846 = scalar_lea.sflag [#allocation3], %s3845
          %s3847 = sand.u32 %s72, 1
          %s3848 = smul.addr %s3847, 8
          %s3849 = scalar_lea.vmem [#allocation2], %s3848
          %3850 = dma.done %s3846, 128
        $region40: #{tpu_custom_call.1} parent=35 // pred_fallthru
          _
      $region36: #{tpu_custom_call.1} parent=5 // pred_fallthru
        _
    $region6: #{tpu_custom_call.1} parent=1 // loop_footer
      %s15 = sadd.s32 1, %s11
    $region7: #{tpu_custom_call.1} parent=1 // loop_footer_branch
      %10 = sbr.rel target = $region3
    $region8: #{tpu_custom_call.1} parent=1 // loop_exit
      _
    %3851 = vsyncpa [#allocation3], 1
    %s3852 = scalar_lea.sflag [#allocation3], 1
    %3853 = vsyncpa %s3852, 1

</llo_original>
